<compile_context>
chip_gen: v7x
topology: tpu7x:2x2x1
jax: 0.10.0
libtpu: 0.0.40
codegen_flags: <defaults>
</compile_context>

<pallas_src>
import functools

import numpy as np
import jax
import jax.numpy as jnp
from jax.experimental import pallas as pl
from jax.experimental.pallas import tpu as pltpu


# ----------------------------------------------------------------------------
# Fused PSA kernel (one grid step == Bb images)
# ----------------------------------------------------------------------------
def _psa_kernel(x_ref,
                cv1_w_ref, cv1_b_ref,
                qkv_w_ref, qkv_b_ref,
                pe_mw_ref, pe_b_ref,
                proj_w_ref, proj_b_ref,
                ffn1_w_ref, ffn1_b_ref, ffn2_w_ref, ffn2_b_ref,
                cv2a_wt_ref, cv2b_wt_ref, cv2_b_ref,
                out_ref,
                *, N, c, nh, kd, hd, Bb, shifts):
    f32, bf16 = jnp.float32, jnp.bfloat16
    R = Bb * N
    nq = nh * kd

    def silu(z):
        return z * jax.nn.sigmoid(z)

    # ---- cv1: single fused (C1 -> 2c) matmul straight off the NCHW slabs ----
    x_all = x_ref[...].astype(bf16)                         # (Bb, C1, N)
    w1 = cv1_w_ref[...]                                     # (C1, 2c) bf16
    ys = []
    for i in range(Bb):
        # Contract LHS dim 0 (channels): the MXU consumes the transposed LHS,
        # so no activation transpose is ever materialized.
        ys.append(jax.lax.dot_general(
            x_all[i], w1, (((0,), (0,)), ((), ())),
            preferred_element_type=f32))                    # (N, 2c)
    y = ys[0] if Bb == 1 else jnp.concatenate(ys, axis=0)   # (R, 2c) f32
    y = silu(y + cv1_b_ref[...])
    a_bf = y[:, :c].astype(bf16)                            # "a" half for cv2
    b = y[:, c:]                                            # (R, c) f32
    b_bf = b.astype(bf16)

    # ---- fused qkv (c -> nh*(2kd+hd)); attn scale folded into the Q cols ----
    qkv = (jnp.dot(b_bf, qkv_w_ref[...], preferred_element_type=f32)
           + qkv_b_ref[...])                                # (R, h) f32
    v_f32 = qkv[:, 2 * nq:]                                 # (R, c) for the PE
    qkv_bf = qkv.astype(bf16)
    q_all = qkv_bf[:, :nq]
    k_all = qkv_bf[:, nq:2 * nq]
    v_all = qkv_bf[:, 2 * nq:]

    # ---- attention (per image, per head; (N, N) scores stay on chip) --------
    o_imgs = []
    for i in range(Bb):
        r0 = i * N
        o_heads = []
        for h in range(nh):
            if nh == 1:
                q = q_all[r0:r0 + N]
                k = k_all[r0:r0 + N]
                v = v_all[r0:r0 + N]
            else:
                q = q_all[r0:r0 + N, h * kd:(h + 1) * kd]
                k = k_all[r0:r0 + N, h * kd:(h + 1) * kd]
                v = v_all[r0:r0 + N, h * hd:(h + 1) * hd]
            # q @ k^T via rhs-transposed dot (no materialized transpose).
            s = jax.lax.dot_general(q, k, (((1,), (1,)), ((), ())),
                                    preferred_element_type=f32)   # (N, N)
            s = s - jnp.max(s, axis=-1, keepdims=True)
            p = jnp.exp(s)
            l = jnp.sum(p, axis=-1, keepdims=True)                # (N, 1)
            ov = jnp.dot(p.astype(bf16), v, preferred_element_type=f32)
            # Normalize the small (N, hd) output, reciprocal on the EUP.
            o_heads.append(ov * pl.reciprocal(l, approx=True))
        o_imgs.append(o_heads[0] if nh == 1 else jnp.concatenate(o_heads, -1))
    o = o_imgs[0] if Bb == 1 else jnp.concatenate(o_imgs, axis=0)  # (R, c) f32

    # ---- depthwise 3x3 positional encoding: 9 rolls x fused mask*weight -----
    # Masked positions only ever read inside their own image, so rolling the
    # whole (Bb*N, c) block at once is safe; the boundary taps are zeroed by
    # the host-precomputed pe_mw factors.
    for t in range(9):
        sh = shifts[t]
        tap = v_f32 if sh == 0 else pltpu.roll(v_f32, shift=(-sh) % R, axis=0)
        o = o + tap * pe_mw_ref[t]
    o = o + pe_b_ref[...]

    # ---- proj (1x1, no act) + residual ---------------------------------------
    b = b + (jnp.dot(o.astype(bf16), proj_w_ref[...],
                     preferred_element_type=f32) + proj_b_ref[...])

    # ---- FFN (c -> 2c SiLU -> c) + residual ----------------------------------
    f = silu(jnp.dot(b.astype(bf16), ffn1_w_ref[...],
                     preferred_element_type=f32) + ffn1_b_ref[...])
    b = b + (jnp.dot(f.astype(bf16), ffn2_w_ref[...],
                     preferred_element_type=f32) + ffn2_b_ref[...])
    b_bf2 = b.astype(bf16)

    # ---- cv2 on concat(a, b): emit channels-first (C1, N) directly ----------
    # out_cn = W2a^T @ a^T + W2b^T @ b^T via rhs-transposed dots against the
    # host-pre-transposed cv2 weights -> no output transpose in or out of the
    # kernel; the wrapper reshape back to NCHW is free.
    wa_t = cv2a_wt_ref[...]                                 # (C1, c) bf16
    wb_t = cv2b_wt_ref[...]                                 # (C1, c) bf16
    bias2 = cv2_b_ref[...]                                  # (C1, 1) f32
    for i in range(Bb):
        a_i = a_bf[i * N:(i + 1) * N]
        b_i = b_bf2[i * N:(i + 1) * N]
        out_cn = (jax.lax.dot_general(wa_t, a_i, (((1,), (1,)), ((), ())),
                                      preferred_element_type=f32)
                  + jax.lax.dot_general(wb_t, b_i, (((1,), (1,)), ((), ())),
                                        preferred_element_type=f32)
                  + bias2)                                  # (C1, N)
        out_ref[i] = silu(out_cn).astype(out_ref.dtype)


# ----------------------------------------------------------------------------
# Wrapper: NCHW in / NCHW out, zero host-side transposes, single pallas_call
# ----------------------------------------------------------------------------
def psa_forward(params, x_nchw, *, block_b=None):
    B, C1, H, W = x_nchw.shape
    N = H * W
    c = params["c"]
    nh = params["num_heads"]
    kd = params["key_dim"]
    hd = params["head_dim"]

    # Images per grid step: target ~256 matmul rows, must divide B.
    if block_b is None:
        block_b = max(1, 256 // N)
    Bb = max(1, min(block_b, B))
    while B % Bb:
        Bb -= 1
    R = Bb * N

    x = x_nchw.reshape(B, C1, N)          # free reshape, no layout transpose

    # Host-side (numpy) fused masked PE weights: (9, Bb*N, c).  One multiply
    # per tap in the kernel, no lane-padded (N, 1) mask, no traced wrapper ops.
    ii, jj = np.meshgrid(np.arange(H), np.arange(W), indexing="ij")
    masks = []
    for dh in range(3):
        for dw in range(3):
            m = ((ii + dh - 1 >= 0) & (ii + dh - 1 < H)
                 & (jj + dw - 1 >= 0) & (jj + dw - 1 < W))
            masks.append(m.reshape(-1))
    mask = np.stack(masks).astype(np.float32)                    # (9, N)
    pe_w = np.asarray(params["pe_w"], dtype=np.float32)          # (9, c)
    pe_mw = np.tile(mask[:, :, None] * pe_w[:, None, :], (1, Bb, 1))
    pe_mw = jnp.asarray(pe_mw)                                   # (9, R, c)

    shifts = tuple((dh - 1) * W + (dw - 1)
                   for dh in range(3) for dw in range(3))

    ins = (x,
           params["cv1_w"], params["cv1_b"],
           params["qkv_w"], params["qkv_b"],
           pe_mw, params["pe_b"],
           params["proj_w"], params["proj_b"],
           params["ffn1_w"], params["ffn1_b"],
           params["ffn2_w"], params["ffn2_b"],
           params["cv2_wa_t"], params["cv2_wb_t"], params["cv2_b"])

    def _const_spec(arr):
        nd = arr.ndim
        return pl.BlockSpec(arr.shape, lambda i, _nd=nd: (0,) * _nd)

    in_specs = [pl.BlockSpec((Bb, C1, N), lambda i: (i, 0, 0))]
    in_specs += [_const_spec(arr) for arr in ins[1:]]

    kernel = functools.partial(_psa_kernel, N=N, c=c, nh=nh, kd=kd, hd=hd,
                               Bb=Bb, shifts=shifts)

    out = pl.pallas_call(
        kernel,
        out_shape=jax.ShapeDtypeStruct((B, C1, N), jnp.float32),
        grid_spec=pltpu.PrefetchScalarGridSpec(
            num_scalar_prefetch=0,
            grid=(B // Bb,),
            in_specs=in_specs,
            out_specs=pl.BlockSpec((Bb, C1, N), lambda i: (i, 0, 0)),
        ),
        compiler_params=pltpu.CompilerParams(
            dimension_semantics=("parallel",)),
    )(*ins)

    return out.reshape(B, C1, H, W)       # free reshape; output stays NCHW


# ----------------------------------------------------------------------------
# Deterministic parameters: Conv weight + folded BatchNorm, fused / pre-split
# ----------------------------------------------------------------------------
def _fold_bn(key, cout):
    """BN (running_mean=0, running_var=1, eps=1e-5) -> (scale, bias)."""
    kg, kb = jax.random.split(key)
    gamma = jax.random.uniform(kg, (cout,), jnp.float32, 0.5, 1.5)
    beta = jax.random.normal(kb, (cout,), jnp.float32) * 0.1
    return gamma / jnp.sqrt(1.0 + 1e-5), beta


def make_params(key, c1, e=0.5):
    c = int(c1 * e)
    nh = max(c // 64, 1)
    hd = c // nh
    kd = int(hd * 0.5)
    per = 2 * kd + hd
    h_qkv = nh * per
    attn_scale = float(kd) ** -0.5

    keys = jax.random.split(key, 7)

    def conv1x1(k, cin, cout):
        kw, kbn = jax.random.split(k)
        w = jax.random.normal(kw, (cin, cout), jnp.float32) / jnp.sqrt(float(cin))
        s, bias = _fold_bn(kbn, cout)
        return w * s[None, :], bias       # BN scale folded into the weight

    def as_w(w):
        return w.astype(jnp.bfloat16)

    def as_b(b):
        return b.reshape(1, -1).astype(jnp.float32)

    # cv1: c1 -> 2c (single fused weight; a = first c cols, b = last c cols)
    w_cv1, b_cv1 = conv1x1(keys[0], c1, 2 * c)
    # cv2: 2c -> c1, stored transposed + row-split so the kernel emits (C1, N)
    w_cv2, b_cv2 = conv1x1(keys[1], 2 * c, c1)
    # qkv: c -> nh*(2kd+hd), reordered to [Q | K | V] (head-major inside each
    # group) with the attention scale folded into the Q columns and bias.
    w_qkv, b_qkv = conv1x1(keys[2], c, h_qkv)
    q_idx = np.concatenate([h * per + np.arange(kd) for h in range(nh)])
    k_idx = np.concatenate([h * per + kd + np.arange(kd) for h in range(nh)])
    v_idx = np.concatenate([h * per + 2 * kd + np.arange(hd) for h in range(nh)])
    perm = np.concatenate([q_idx, k_idx, v_idx])
    col_scale = np.concatenate([np.full(nh * kd, attn_scale, np.float32),
                                np.ones(nh * kd + nh * hd, np.float32)])
    w_qkv = w_qkv[:, perm] * col_scale[None, :]
    b_qkv = b_qkv[perm] * col_scale

    w_proj, b_proj = conv1x1(keys[3], c, c)
    w_ffn1, b_ffn1 = conv1x1(keys[4], c, 2 * c)
    w_ffn2, b_ffn2 = conv1x1(keys[5], 2 * c, c)

    # depthwise 3x3 positional encoding (+ folded BN), flattened to 9 taps
    kw, kbn = jax.random.split(keys[6])
    w_pe = jax.random.normal(kw, (3, 3, c), jnp.float32) / 3.0
    s_pe, bias_pe = _fold_bn(kbn, c)
    w_pe = (w_pe * s_pe[None, None, :]).reshape(9, c)        # keep f32 (VPU path)

    return {
        "c": c, "num_heads": nh, "key_dim": kd, "head_dim": hd,
        "cv1_w": as_w(w_cv1), "cv1_b": as_b(b_cv1),
        "qkv_w": as_w(w_qkv), "qkv_b": as_b(b_qkv),
        "pe_w": w_pe, "pe_b": as_b(bias_pe),
        "proj_w": as_w(w_proj), "proj_b": as_b(b_proj),
        "ffn1_w": as_w(w_ffn1), "ffn1_b": as_b(b_ffn1),
        "ffn2_w": as_w(w_ffn2), "ffn2_b": as_b(b_ffn2),
        "cv2_wa_t": as_w(w_cv2[:c, :].T), "cv2_wb_t": as_w(w_cv2[c:, :].T),
        "cv2_b": b_cv2.reshape(-1, 1).astype(jnp.float32),
    }


if __name__ == "__main__":
    key = jax.random.PRNGKey(0)
    kp, kx = jax.random.split(key)

    # PSA(c1=128, c2=128, e=0.5) -> c=64, Attention(dim=64, num_heads=1, attn_ratio=0.5)
    c1 = 128
    params = make_params(kp, c1, e=0.5)

    # Small NCHW input consistent with the module (num_heads = c // 64 >= 1).
    x = jax.random.normal(kx, (2, c1, 8, 8), jnp.float32)

    fwd = jax.jit(lambda inp: psa_forward(params, inp))
    out = fwd(x)
    jax.block_until_ready(out)
    assert out.shape == x.shape and out.dtype == x.dtype
    print("KERNEL_OK")
</pallas_src>

<mosaic_0001>
module attributes {stable_mosaic.version = 11 : i64} {
  func.func @_psa_kernel(%arg0: i32, %arg1: memref<2x128x64xf32, #tpu.memory_space<vmem>>, %arg2: memref<128x128xbf16, #tpu.memory_space<vmem>>, %arg3: memref<1x128xf32, #tpu.memory_space<vmem>>, %arg4: memref<64x128xbf16, #tpu.memory_space<vmem>>, %arg5: memref<1x128xf32, #tpu.memory_space<vmem>>, %arg6: memref<9x128x64xf32, #tpu.memory_space<vmem>>, %arg7: memref<1x64xf32, #tpu.memory_space<vmem>>, %arg8: memref<64x64xbf16, #tpu.memory_space<vmem>>, %arg9: memref<1x64xf32, #tpu.memory_space<vmem>>, %arg10: memref<64x128xbf16, #tpu.memory_space<vmem>>, %arg11: memref<1x128xf32, #tpu.memory_space<vmem>>, %arg12: memref<128x64xbf16, #tpu.memory_space<vmem>>, %arg13: memref<1x64xf32, #tpu.memory_space<vmem>>, %arg14: memref<128x64xbf16, #tpu.memory_space<vmem>>, %arg15: memref<128x64xbf16, #tpu.memory_space<vmem>>, %arg16: memref<128x1xf32, #tpu.memory_space<vmem>>, %arg17: memref<2x128x64xf32, #tpu.memory_space<vmem>>) attributes {dimension_semantics = [#tpu.dimension_semantics<parallel>], iteration_bounds = array<i64: 1>, scalar_prefetch = 0 : i64, scratch_operands = 0 : i64, tpu.core_type = #tpu.core_type<tc>, window_params = [{transform_indices = @transform_0, window_bounds = array<i64: 2, 128, 64>}, {pipeline_mode = #tpu.pipeline_mode<synchronous>, transform_indices = @transform_1, window_bounds = array<i64: 128, 128>}, {pipeline_mode = #tpu.pipeline_mode<synchronous>, transform_indices = @transform_2, window_bounds = array<i64: 1, 128>}, {pipeline_mode = #tpu.pipeline_mode<synchronous>, transform_indices = @transform_3, window_bounds = array<i64: 64, 128>}, {pipeline_mode = #tpu.pipeline_mode<synchronous>, transform_indices = @transform_4, window_bounds = array<i64: 1, 128>}, {pipeline_mode = #tpu.pipeline_mode<synchronous>, transform_indices = @transform_5, window_bounds = array<i64: 9, 128, 64>}, {pipeline_mode = #tpu.pipeline_mode<synchronous>, transform_indices = @transform_6, window_bounds = array<i64: 1, 64>}, {pipeline_mode = #tpu.pipeline_mode<synchronous>, transform_indices = @transform_7, window_bounds = array<i64: 64, 64>}, {pipeline_mode = #tpu.pipeline_mode<synchronous>, transform_indices = @transform_8, window_bounds = array<i64: 1, 64>}, {pipeline_mode = #tpu.pipeline_mode<synchronous>, transform_indices = @transform_9, window_bounds = array<i64: 64, 128>}, {pipeline_mode = #tpu.pipeline_mode<synchronous>, transform_indices = @transform_10, window_bounds = array<i64: 1, 128>}, {pipeline_mode = #tpu.pipeline_mode<synchronous>, transform_indices = @transform_11, window_bounds = array<i64: 128, 64>}, {pipeline_mode = #tpu.pipeline_mode<synchronous>, transform_indices = @transform_12, window_bounds = array<i64: 1, 64>}, {pipeline_mode = #tpu.pipeline_mode<synchronous>, transform_indices = @transform_13, window_bounds = array<i64: 128, 64>}, {pipeline_mode = #tpu.pipeline_mode<synchronous>, transform_indices = @transform_14, window_bounds = array<i64: 128, 64>}, {pipeline_mode = #tpu.pipeline_mode<synchronous>, transform_indices = @transform_15, window_bounds = array<i64: 128, 1>}, {transform_indices = @transform_16, window_bounds = array<i64: 2, 128, 64>}]} {
    %c0 = arith.constant 0 : index
    %c0_0 = arith.constant 0 : index
    %c0_1 = arith.constant 0 : index
    %0 = vector.load %arg1[%c0, %c0_0, %c0_1] : memref<2x128x64xf32, #tpu.memory_space<vmem>>, vector<2x128x64xf32>
    %1 = arith.truncf %0 : vector<2x128x64xf32> to vector<2x128x64xbf16>
    %c0_2 = arith.constant 0 : index
    %c0_3 = arith.constant 0 : index
    %2 = vector.load %arg2[%c0_2, %c0_3] : memref<128x128xbf16, #tpu.memory_space<vmem>>, vector<128x128xbf16>
    %3 = vector.extract_strided_slice %1 {offsets = [0, 0, 0], sizes = [1, 128, 64], strides = [1, 1, 1]} : vector<2x128x64xbf16> to vector<1x128x64xbf16>
    %4 = vector.shape_cast %3 : vector<1x128x64xbf16> to vector<128x64xbf16>
    %cst = arith.constant dense<0.000000e+00> : vector<64x128xf32>
    %5 = tpu.matmul %4, %2, %cst {dimension_numbers = #tpu.dot_dimension_numbers<[0], [0], [1], [1], [0, 1, 1, 1], [], []>} : vector<128x64xbf16>, vector<128x128xbf16>, vector<64x128xf32> -> vector<64x128xf32>
    %6 = vector.extract_strided_slice %1 {offsets = [1, 0, 0], sizes = [1, 128, 64], strides = [1, 1, 1]} : vector<2x128x64xbf16> to vector<1x128x64xbf16>
    %7 = vector.shape_cast %6 : vector<1x128x64xbf16> to vector<128x64xbf16>
    %cst_4 = arith.constant dense<0.000000e+00> : vector<64x128xf32>
    %8 = tpu.matmul %7, %2, %cst_4 {dimension_numbers = #tpu.dot_dimension_numbers<[0], [0], [1], [1], [0, 1, 1, 1], [], []>} : vector<128x64xbf16>, vector<128x128xbf16>, vector<64x128xf32> -> vector<64x128xf32>
    %9 = tpu.concatenate %5, %8 in 0 : vector<64x128xf32>, vector<64x128xf32> -> vector<128x128xf32>
    %c0_5 = arith.constant 0 : index
    %c0_6 = arith.constant 0 : index
    %10 = vector.load %arg3[%c0_5, %c0_6] : memref<1x128xf32, #tpu.memory_space<vmem>>, vector<1x128xf32>
    %11 = vector.broadcast %10 : vector<1x128xf32> to vector<128x128xf32>
    %12 = arith.addf %9, %11 : vector<128x128xf32>
    %13 = arith.negf %12 : vector<128x128xf32>
    %14 = math.exp %13 : vector<128x128xf32>
    %cst_7 = arith.constant 1.000000e+00 : f32
    %15 = vector.broadcast %cst_7 : f32 to vector<128x128xf32>
    %16 = arith.addf %15, %14 : vector<128x128xf32>
    %17 = arith.divf %15, %16 : vector<128x128xf32>
    %18 = arith.mulf %12, %17 : vector<128x128xf32>
    %19 = vector.extract_strided_slice %18 {offsets = [0, 0], sizes = [128, 64], strides = [1, 1]} : vector<128x128xf32> to vector<128x64xf32>
    %20 = arith.truncf %19 : vector<128x64xf32> to vector<128x64xbf16>
    %21 = vector.extract_strided_slice %18 {offsets = [0, 64], sizes = [128, 64], strides = [1, 1]} : vector<128x128xf32> to vector<128x64xf32>
    %22 = arith.truncf %21 : vector<128x64xf32> to vector<128x64xbf16>
    %c0_8 = arith.constant 0 : index
    %c0_9 = arith.constant 0 : index
    %23 = vector.load %arg4[%c0_8, %c0_9] : memref<64x128xbf16, #tpu.memory_space<vmem>>, vector<64x128xbf16>
    %cst_10 = arith.constant dense<0.000000e+00> : vector<128x128xf32>
    %24 = tpu.matmul %22, %23, %cst_10 {dimension_numbers = #tpu.dot_dimension_numbers<[1], [0], [0], [1], [0, 0, 1, 1], [], []>} : vector<128x64xbf16>, vector<64x128xbf16>, vector<128x128xf32> -> vector<128x128xf32>
    %c0_11 = arith.constant 0 : index
    %c0_12 = arith.constant 0 : index
    %25 = vector.load %arg5[%c0_11, %c0_12] : memref<1x128xf32, #tpu.memory_space<vmem>>, vector<1x128xf32>
    %26 = vector.broadcast %25 : vector<1x128xf32> to vector<128x128xf32>
    %27 = arith.addf %24, %26 : vector<128x128xf32>
    %28 = vector.extract_strided_slice %27 {offsets = [0, 64], sizes = [128, 64], strides = [1, 1]} : vector<128x128xf32> to vector<128x64xf32>
    %29 = arith.truncf %27 : vector<128x128xf32> to vector<128x128xbf16>
    %30 = vector.extract_strided_slice %29 {offsets = [0, 0], sizes = [128, 32], strides = [1, 1]} : vector<128x128xbf16> to vector<128x32xbf16>
    %31 = vector.extract_strided_slice %29 {offsets = [0, 32], sizes = [128, 32], strides = [1, 1]} : vector<128x128xbf16> to vector<128x32xbf16>
    %32 = vector.extract_strided_slice %29 {offsets = [0, 64], sizes = [128, 64], strides = [1, 1]} : vector<128x128xbf16> to vector<128x64xbf16>
    %33 = vector.extract_strided_slice %30 {offsets = [0, 0], sizes = [64, 32], strides = [1, 1]} : vector<128x32xbf16> to vector<64x32xbf16>
    %34 = vector.extract_strided_slice %31 {offsets = [0, 0], sizes = [64, 32], strides = [1, 1]} : vector<128x32xbf16> to vector<64x32xbf16>
    %35 = vector.extract_strided_slice %32 {offsets = [0, 0], sizes = [64, 64], strides = [1, 1]} : vector<128x64xbf16> to vector<64x64xbf16>
    %cst_13 = arith.constant dense<0.000000e+00> : vector<64x64xf32>
    %36 = tpu.matmul %33, %34, %cst_13 {dimension_numbers = #tpu.dot_dimension_numbers<[1], [1], [0], [0], [0, 0, 1, 0], [], []>} : vector<64x32xbf16>, vector<64x32xbf16>, vector<64x64xf32> -> vector<64x64xf32>
    %cst_14 = arith.constant dense<0xFF800000> : vector<64xf32>
    %37 = vector.multi_reduction <maximumf>, %36, %cst_14 [1] : vector<64x64xf32> to vector<64xf32>
    %38 = vector.shape_cast %37 : vector<64xf32> to vector<64x1xf32>
    %39 = vector.broadcast %38 : vector<64x1xf32> to vector<64x64xf32>
    %40 = arith.subf %36, %39 : vector<64x64xf32>
    %41 = math.exp %40 : vector<64x64xf32>
    %cst_15 = arith.constant dense<0.000000e+00> : vector<64xf32>
    %42 = vector.multi_reduction <add>, %41, %cst_15 [1] : vector<64x64xf32> to vector<64xf32>
    %43 = vector.shape_cast %42 : vector<64xf32> to vector<64x1xf32>
    %44 = arith.truncf %41 : vector<64x64xf32> to vector<64x64xbf16>
    %cst_16 = arith.constant dense<0.000000e+00> : vector<64x64xf32>
    %45 = tpu.matmul %44, %35, %cst_16 {dimension_numbers = #tpu.dot_dimension_numbers<[1], [0], [0], [1], [0, 0, 1, 1], [], []>} : vector<64x64xbf16>, vector<64x64xbf16>, vector<64x64xf32> -> vector<64x64xf32>
    %46 = tpu.reciprocal %43 {approx = true} : vector<64x1xf32> -> vector<64x1xf32>
    %47 = vector.broadcast %46 : vector<64x1xf32> to vector<64x64xf32>
    %48 = arith.mulf %45, %47 : vector<64x64xf32>
    %49 = vector.extract_strided_slice %30 {offsets = [64, 0], sizes = [64, 32], strides = [1, 1]} : vector<128x32xbf16> to vector<64x32xbf16>
    %50 = vector.extract_strided_slice %31 {offsets = [64, 0], sizes = [64, 32], strides = [1, 1]} : vector<128x32xbf16> to vector<64x32xbf16>
    %51 = vector.extract_strided_slice %32 {offsets = [64, 0], sizes = [64, 64], strides = [1, 1]} : vector<128x64xbf16> to vector<64x64xbf16>
    %cst_17 = arith.constant dense<0.000000e+00> : vector<64x64xf32>
    %52 = tpu.matmul %49, %50, %cst_17 {dimension_numbers = #tpu.dot_dimension_numbers<[1], [1], [0], [0], [0, 0, 1, 0], [], []>} : vector<64x32xbf16>, vector<64x32xbf16>, vector<64x64xf32> -> vector<64x64xf32>
    %cst_18 = arith.constant dense<0xFF800000> : vector<64xf32>
    %53 = vector.multi_reduction <maximumf>, %52, %cst_18 [1] : vector<64x64xf32> to vector<64xf32>
    %54 = vector.shape_cast %53 : vector<64xf32> to vector<64x1xf32>
    %55 = vector.broadcast %54 : vector<64x1xf32> to vector<64x64xf32>
    %56 = arith.subf %52, %55 : vector<64x64xf32>
    %57 = math.exp %56 : vector<64x64xf32>
    %cst_19 = arith.constant dense<0.000000e+00> : vector<64xf32>
    %58 = vector.multi_reduction <add>, %57, %cst_19 [1] : vector<64x64xf32> to vector<64xf32>
    %59 = vector.shape_cast %58 : vector<64xf32> to vector<64x1xf32>
    %60 = arith.truncf %57 : vector<64x64xf32> to vector<64x64xbf16>
    %cst_20 = arith.constant dense<0.000000e+00> : vector<64x64xf32>
    %61 = tpu.matmul %60, %51, %cst_20 {dimension_numbers = #tpu.dot_dimension_numbers<[1], [0], [0], [1], [0, 0, 1, 1], [], []>} : vector<64x64xbf16>, vector<64x64xbf16>, vector<64x64xf32> -> vector<64x64xf32>
    %62 = tpu.reciprocal %59 {approx = true} : vector<64x1xf32> -> vector<64x1xf32>
    %63 = vector.broadcast %62 : vector<64x1xf32> to vector<64x64xf32>
    %64 = arith.mulf %61, %63 : vector<64x64xf32>
    %65 = tpu.concatenate %48, %64 in 0 : vector<64x64xf32>, vector<64x64xf32> -> vector<128x64xf32>
    %c9_i32 = arith.constant 9 : i32
    %66 = tpu.dynamic_rotate %28 by %c9_i32 dim 0 : vector<128x64xf32>, i32 -> vector<128x64xf32>
    %c0_21 = arith.constant 0 : index
    %c0_22 = arith.constant 0 : index
    %c0_23 = arith.constant 0 : index
    %67 = vector.load %arg6[%c0_21, %c0_22, %c0_23] : memref<9x128x64xf32, #tpu.memory_space<vmem>>, vector<1x128x64xf32>
    %68 = vector.shape_cast %67 : vector<1x128x64xf32> to vector<128x64xf32>
    %69 = arith.mulf %66, %68 : vector<128x64xf32>
    %70 = arith.addf %65, %69 : vector<128x64xf32>
    %c8_i32 = arith.constant 8 : i32
    %71 = tpu.dynamic_rotate %28 by %c8_i32 dim 0 : vector<128x64xf32>, i32 -> vector<128x64xf32>
    %c1 = arith.constant 1 : index
    %c0_24 = arith.constant 0 : index
    %c0_25 = arith.constant 0 : index
    %72 = vector.load %arg6[%c1, %c0_24, %c0_25] : memref<9x128x64xf32, #tpu.memory_space<vmem>>, vector<1x128x64xf32>
    %73 = vector.shape_cast %72 : vector<1x128x64xf32> to vector<128x64xf32>
    %74 = arith.mulf %71, %73 : vector<128x64xf32>
    %75 = arith.addf %70, %74 : vector<128x64xf32>
    %c7_i32 = arith.constant 7 : i32
    %76 = tpu.dynamic_rotate %28 by %c7_i32 dim 0 : vector<128x64xf32>, i32 -> vector<128x64xf32>
    %c2 = arith.constant 2 : index
    %c0_26 = arith.constant 0 : index
    %c0_27 = arith.constant 0 : index
    %77 = vector.load %arg6[%c2, %c0_26, %c0_27] : memref<9x128x64xf32, #tpu.memory_space<vmem>>, vector<1x128x64xf32>
    %78 = vector.shape_cast %77 : vector<1x128x64xf32> to vector<128x64xf32>
    %79 = arith.mulf %76, %78 : vector<128x64xf32>
    %80 = arith.addf %75, %79 : vector<128x64xf32>
    %c1_i32 = arith.constant 1 : i32
    %81 = tpu.dynamic_rotate %28 by %c1_i32 dim 0 : vector<128x64xf32>, i32 -> vector<128x64xf32>
    %c3 = arith.constant 3 : index
    %c0_28 = arith.constant 0 : index
    %c0_29 = arith.constant 0 : index
    %82 = vector.load %arg6[%c3, %c0_28, %c0_29] : memref<9x128x64xf32, #tpu.memory_space<vmem>>, vector<1x128x64xf32>
    %83 = vector.shape_cast %82 : vector<1x128x64xf32> to vector<128x64xf32>
    %84 = arith.mulf %81, %83 : vector<128x64xf32>
    %85 = arith.addf %80, %84 : vector<128x64xf32>
    %c4 = arith.constant 4 : index
    %c0_30 = arith.constant 0 : index
    %c0_31 = arith.constant 0 : index
    %86 = vector.load %arg6[%c4, %c0_30, %c0_31] : memref<9x128x64xf32, #tpu.memory_space<vmem>>, vector<1x128x64xf32>
    %87 = vector.shape_cast %86 : vector<1x128x64xf32> to vector<128x64xf32>
    %88 = arith.mulf %28, %87 : vector<128x64xf32>
    %89 = arith.addf %85, %88 : vector<128x64xf32>
    %c127_i32 = arith.constant 127 : i32
    %90 = tpu.dynamic_rotate %28 by %c127_i32 dim 0 : vector<128x64xf32>, i32 -> vector<128x64xf32>
    %c5 = arith.constant 5 : index
    %c0_32 = arith.constant 0 : index
    %c0_33 = arith.constant 0 : index
    %91 = vector.load %arg6[%c5, %c0_32, %c0_33] : memref<9x128x64xf32, #tpu.memory_space<vmem>>, vector<1x128x64xf32>
    %92 = vector.shape_cast %91 : vector<1x128x64xf32> to vector<128x64xf32>
    %93 = arith.mulf %90, %92 : vector<128x64xf32>
    %94 = arith.addf %89, %93 : vector<128x64xf32>
    %c121_i32 = arith.constant 121 : i32
    %95 = tpu.dynamic_rotate %28 by %c121_i32 dim 0 : vector<128x64xf32>, i32 -> vector<128x64xf32>
    %c6 = arith.constant 6 : index
    %c0_34 = arith.constant 0 : index
    %c0_35 = arith.constant 0 : index
    %96 = vector.load %arg6[%c6, %c0_34, %c0_35] : memref<9x128x64xf32, #tpu.memory_space<vmem>>, vector<1x128x64xf32>
    %97 = vector.shape_cast %96 : vector<1x128x64xf32> to vector<128x64xf32>
    %98 = arith.mulf %95, %97 : vector<128x64xf32>
    %99 = arith.addf %94, %98 : vector<128x64xf32>
    %c120_i32 = arith.constant 120 : i32
    %100 = tpu.dynamic_rotate %28 by %c120_i32 dim 0 : vector<128x64xf32>, i32 -> vector<128x64xf32>
    %c7 = arith.constant 7 : index
    %c0_36 = arith.constant 0 : index
    %c0_37 = arith.constant 0 : index
    %101 = vector.load %arg6[%c7, %c0_36, %c0_37] : memref<9x128x64xf32, #tpu.memory_space<vmem>>, vector<1x128x64xf32>
    %102 = vector.shape_cast %101 : vector<1x128x64xf32> to vector<128x64xf32>
    %103 = arith.mulf %100, %102 : vector<128x64xf32>
    %104 = arith.addf %99, %103 : vector<128x64xf32>
    %c119_i32 = arith.constant 119 : i32
    %105 = tpu.dynamic_rotate %28 by %c119_i32 dim 0 : vector<128x64xf32>, i32 -> vector<128x64xf32>
    %c8 = arith.constant 8 : index
    %c0_38 = arith.constant 0 : index
    %c0_39 = arith.constant 0 : index
    %106 = vector.load %arg6[%c8, %c0_38, %c0_39] : memref<9x128x64xf32, #tpu.memory_space<vmem>>, vector<1x128x64xf32>
    %107 = vector.shape_cast %106 : vector<1x128x64xf32> to vector<128x64xf32>
    %108 = arith.mulf %105, %107 : vector<128x64xf32>
    %109 = arith.addf %104, %108 : vector<128x64xf32>
    %c0_40 = arith.constant 0 : index
    %c0_41 = arith.constant 0 : index
    %110 = vector.load %arg7[%c0_40, %c0_41] : memref<1x64xf32, #tpu.memory_space<vmem>>, vector<1x64xf32>
    %111 = vector.broadcast %110 : vector<1x64xf32> to vector<128x64xf32>
    %112 = arith.addf %109, %111 : vector<128x64xf32>
    %113 = arith.truncf %112 : vector<128x64xf32> to vector<128x64xbf16>
    %c0_42 = arith.constant 0 : index
    %c0_43 = arith.constant 0 : index
    %114 = vector.load %arg8[%c0_42, %c0_43] : memref<64x64xbf16, #tpu.memory_space<vmem>>, vector<64x64xbf16>
    %cst_44 = arith.constant dense<0.000000e+00> : vector<128x64xf32>
    %115 = tpu.matmul %113, %114, %cst_44 {dimension_numbers = #tpu.dot_dimension_numbers<[1], [0], [0], [1], [0, 0, 1, 1], [], []>} : vector<128x64xbf16>, vector<64x64xbf16>, vector<128x64xf32> -> vector<128x64xf32>
    %c0_45 = arith.constant 0 : index
    %c0_46 = arith.constant 0 : index
    %116 = vector.load %arg9[%c0_45, %c0_46] : memref<1x64xf32, #tpu.memory_space<vmem>>, vector<1x64xf32>
    %117 = vector.broadcast %116 : vector<1x64xf32> to vector<128x64xf32>
    %118 = arith.addf %115, %117 : vector<128x64xf32>
    %119 = arith.addf %21, %118 : vector<128x64xf32>
    %120 = arith.truncf %119 : vector<128x64xf32> to vector<128x64xbf16>
    %c0_47 = arith.constant 0 : index
    %c0_48 = arith.constant 0 : index
    %121 = vector.load %arg10[%c0_47, %c0_48] : memref<64x128xbf16, #tpu.memory_space<vmem>>, vector<64x128xbf16>
    %cst_49 = arith.constant dense<0.000000e+00> : vector<128x128xf32>
    %122 = tpu.matmul %120, %121, %cst_49 {dimension_numbers = #tpu.dot_dimension_numbers<[1], [0], [0], [1], [0, 0, 1, 1], [], []>} : vector<128x64xbf16>, vector<64x128xbf16>, vector<128x128xf32> -> vector<128x128xf32>
    %c0_50 = arith.constant 0 : index
    %c0_51 = arith.constant 0 : index
    %123 = vector.load %arg11[%c0_50, %c0_51] : memref<1x128xf32, #tpu.memory_space<vmem>>, vector<1x128xf32>
    %124 = vector.broadcast %123 : vector<1x128xf32> to vector<128x128xf32>
    %125 = arith.addf %122, %124 : vector<128x128xf32>
    %126 = arith.negf %125 : vector<128x128xf32>
    %127 = math.exp %126 : vector<128x128xf32>
    %cst_52 = arith.constant 1.000000e+00 : f32
    %128 = vector.broadcast %cst_52 : f32 to vector<128x128xf32>
    %129 = arith.addf %128, %127 : vector<128x128xf32>
    %130 = arith.divf %128, %129 : vector<128x128xf32>
    %131 = arith.mulf %125, %130 : vector<128x128xf32>
    %132 = arith.truncf %131 : vector<128x128xf32> to vector<128x128xbf16>
    %c0_53 = arith.constant 0 : index
    %c0_54 = arith.constant 0 : index
    %133 = vector.load %arg12[%c0_53, %c0_54] : memref<128x64xbf16, #tpu.memory_space<vmem>>, vector<128x64xbf16>
    %cst_55 = arith.constant dense<0.000000e+00> : vector<128x64xf32>
    %134 = tpu.matmul %132, %133, %cst_55 {dimension_numbers = #tpu.dot_dimension_numbers<[1], [0], [0], [1], [0, 0, 1, 1], [], []>} : vector<128x128xbf16>, vector<128x64xbf16>, vector<128x64xf32> -> vector<128x64xf32>
    %c0_56 = arith.constant 0 : index
    %c0_57 = arith.constant 0 : index
    %135 = vector.load %arg13[%c0_56, %c0_57] : memref<1x64xf32, #tpu.memory_space<vmem>>, vector<1x64xf32>
    %136 = vector.broadcast %135 : vector<1x64xf32> to vector<128x64xf32>
    %137 = arith.addf %134, %136 : vector<128x64xf32>
    %138 = arith.addf %119, %137 : vector<128x64xf32>
    %139 = arith.truncf %138 : vector<128x64xf32> to vector<128x64xbf16>
    %c0_58 = arith.constant 0 : index
    %c0_59 = arith.constant 0 : index
    %140 = vector.load %arg14[%c0_58, %c0_59] : memref<128x64xbf16, #tpu.memory_space<vmem>>, vector<128x64xbf16>
    %c0_60 = arith.constant 0 : index
    %c0_61 = arith.constant 0 : index
    %141 = vector.load %arg15[%c0_60, %c0_61] : memref<128x64xbf16, #tpu.memory_space<vmem>>, vector<128x64xbf16>
    %c0_62 = arith.constant 0 : index
    %c0_63 = arith.constant 0 : index
    %142 = vector.load %arg16[%c0_62, %c0_63] : memref<128x1xf32, #tpu.memory_space<vmem>>, vector<128x1xf32>
    %143 = vector.extract_strided_slice %20 {offsets = [0, 0], sizes = [64, 64], strides = [1, 1]} : vector<128x64xbf16> to vector<64x64xbf16>
    %144 = vector.extract_strided_slice %139 {offsets = [0, 0], sizes = [64, 64], strides = [1, 1]} : vector<128x64xbf16> to vector<64x64xbf16>
    %cst_64 = arith.constant dense<0.000000e+00> : vector<128x64xf32>
    %145 = tpu.matmul %140, %143, %cst_64 {dimension_numbers = #tpu.dot_dimension_numbers<[1], [1], [0], [0], [0, 0, 1, 0], [], []>} : vector<128x64xbf16>, vector<64x64xbf16>, vector<128x64xf32> -> vector<128x64xf32>
    %cst_65 = arith.constant dense<0.000000e+00> : vector<128x64xf32>
    %146 = tpu.matmul %141, %144, %cst_65 {dimension_numbers = #tpu.dot_dimension_numbers<[1], [1], [0], [0], [0, 0, 1, 0], [], []>} : vector<128x64xbf16>, vector<64x64xbf16>, vector<128x64xf32> -> vector<128x64xf32>
    %147 = arith.addf %145, %146 : vector<128x64xf32>
    %148 = vector.broadcast %142 : vector<128x1xf32> to vector<128x64xf32>
    %149 = arith.addf %147, %148 : vector<128x64xf32>
    %150 = arith.negf %149 : vector<128x64xf32>
    %151 = math.exp %150 : vector<128x64xf32>
    %cst_66 = arith.constant 1.000000e+00 : f32
    %152 = vector.broadcast %cst_66 : f32 to vector<128x64xf32>
    %153 = arith.addf %152, %151 : vector<128x64xf32>
    %154 = arith.divf %152, %153 : vector<128x64xf32>
    %155 = arith.mulf %149, %154 : vector<128x64xf32>
    %c0_67 = arith.constant 0 : index
    %c0_68 = arith.constant 0 : index
    %c0_69 = arith.constant 0 : index
    %156 = vector.load %arg17[%c0_67, %c0_68, %c0_69] : memref<2x128x64xf32, #tpu.memory_space<vmem>>, vector<1x128x64xf32>
    %157 = vector.shape_cast %156 : vector<1x128x64xf32> to vector<128x64xf32>
    %158 = vector.shape_cast %155 : vector<128x64xf32> to vector<1x128x64xf32>
    tpu.vector_store %arg17[%c0_67, %c0_68, %c0_69], %158 {strides = array<i32>} : memref<2x128x64xf32, #tpu.memory_space<vmem>>, vector<1x128x64xf32>,
    %159 = vector.extract_strided_slice %20 {offsets = [64, 0], sizes = [64, 64], strides = [1, 1]} : vector<128x64xbf16> to vector<64x64xbf16>
    %160 = vector.extract_strided_slice %139 {offsets = [64, 0], sizes = [64, 64], strides = [1, 1]} : vector<128x64xbf16> to vector<64x64xbf16>
    %cst_70 = arith.constant dense<0.000000e+00> : vector<128x64xf32>
    %161 = tpu.matmul %140, %159, %cst_70 {dimension_numbers = #tpu.dot_dimension_numbers<[1], [1], [0], [0], [0, 0, 1, 0], [], []>} : vector<128x64xbf16>, vector<64x64xbf16>, vector<128x64xf32> -> vector<128x64xf32>
    %cst_71 = arith.constant dense<0.000000e+00> : vector<128x64xf32>
    %162 = tpu.matmul %141, %160, %cst_71 {dimension_numbers = #tpu.dot_dimension_numbers<[1], [1], [0], [0], [0, 0, 1, 0], [], []>} : vector<128x64xbf16>, vector<64x64xbf16>, vector<128x64xf32> -> vector<128x64xf32>
    %163 = arith.addf %161, %162 : vector<128x64xf32>
    %164 = vector.broadcast %142 : vector<128x1xf32> to vector<128x64xf32>
    %165 = arith.addf %163, %164 : vector<128x64xf32>
    %166 = arith.negf %165 : vector<128x64xf32>
    %167 = math.exp %166 : vector<128x64xf32>
    %cst_72 = arith.constant 1.000000e+00 : f32
    %168 = vector.broadcast %cst_72 : f32 to vector<128x64xf32>
    %169 = arith.addf %168, %167 : vector<128x64xf32>
    %170 = arith.divf %168, %169 : vector<128x64xf32>
    %171 = arith.mulf %165, %170 : vector<128x64xf32>
    %c1_73 = arith.constant 1 : index
    %c0_74 = arith.constant 0 : index
    %c0_75 = arith.constant 0 : index
    %172 = vector.load %arg17[%c1_73, %c0_74, %c0_75] : memref<2x128x64xf32, #tpu.memory_space<vmem>>, vector<1x128x64xf32>
    %173 = vector.shape_cast %172 : vector<1x128x64xf32> to vector<128x64xf32>
    %174 = vector.shape_cast %171 : vector<128x64xf32> to vector<1x128x64xf32>
    tpu.vector_store %arg17[%c1_73, %c0_74, %c0_75], %174 {strides = array<i32>} : memref<2x128x64xf32, #tpu.memory_space<vmem>>, vector<1x128x64xf32>,
    return
  }
  func.func @transform_0(%arg0: i32) -> (i32, i32, i32) {
    %c0_i32 = arith.constant 0 : i32
    %c0_i32_0 = arith.constant 0 : i32
    %c0_i32_1 = arith.constant 0 : i32
    return %arg0, %c0_i32, %c0_i32_0 : i32, i32, i32
  }
  func.func @transform_1(%arg0: i32) -> (i32, i32) {
    %c0_i32 = arith.constant 0 : i32
    %c0_i32_0 = arith.constant 0 : i32
    %c0_i32_1 = arith.constant 0 : i32
    return %c0_i32, %c0_i32_0 : i32, i32
  }
  func.func @transform_2(%arg0: i32) -> (i32, i32) {
    %c0_i32 = arith.constant 0 : i32
    %c0_i32_0 = arith.constant 0 : i32
    %c0_i32_1 = arith.constant 0 : i32
    return %c0_i32, %c0_i32_0 : i32, i32
  }
  func.func @transform_3(%arg0: i32) -> (i32, i32) {
    %c0_i32 = arith.constant 0 : i32
    %c0_i32_0 = arith.constant 0 : i32
    %c0_i32_1 = arith.constant 0 : i32
    return %c0_i32, %c0_i32_0 : i32, i32
  }
  func.func @transform_4(%arg0: i32) -> (i32, i32) {
    %c0_i32 = arith.constant 0 : i32
    %c0_i32_0 = arith.constant 0 : i32
    %c0_i32_1 = arith.constant 0 : i32
    return %c0_i32, %c0_i32_0 : i32, i32
  }
  func.func @transform_5(%arg0: i32) -> (i32, i32, i32) {
    %c0_i32 = arith.constant 0 : i32
    %c0_i32_0 = arith.constant 0 : i32
    %c0_i32_1 = arith.constant 0 : i32
    %c0_i32_2 = arith.constant 0 : i32
    return %c0_i32, %c0_i32_0, %c0_i32_1 : i32, i32, i32
  }
  func.func @transform_6(%arg0: i32) -> (i32, i32) {
    %c0_i32 = arith.constant 0 : i32
    %c0_i32_0 = arith.constant 0 : i32
    %c0_i32_1 = arith.constant 0 : i32
    return %c0_i32, %c0_i32_0 : i32, i32
  }
  func.func @transform_7(%arg0: i32) -> (i32, i32) {
    %c0_i32 = arith.constant 0 : i32
    %c0_i32_0 = arith.constant 0 : i32
    %c0_i32_1 = arith.constant 0 : i32
    return %c0_i32, %c0_i32_0 : i32, i32
  }
  func.func @transform_8(%arg0: i32) -> (i32, i32) {
    %c0_i32 = arith.constant 0 : i32
    %c0_i32_0 = arith.constant 0 : i32
    %c0_i32_1 = arith.constant 0 : i32
    return %c0_i32, %c0_i32_0 : i32, i32
  }
  func.func @transform_9(%arg0: i32) -> (i32, i32) {
    %c0_i32 = arith.constant 0 : i32
    %c0_i32_0 = arith.constant 0 : i32
    %c0_i32_1 = arith.constant 0 : i32
    return %c0_i32, %c0_i32_0 : i32, i32
  }
  func.func @transform_10(%arg0: i32) -> (i32, i32) {
    %c0_i32 = arith.constant 0 : i32
    %c0_i32_0 = arith.constant 0 : i32
    %c0_i32_1 = arith.constant 0 : i32
    return %c0_i32, %c0_i32_0 : i32, i32
  }
  func.func @transform_11(%arg0: i32) -> (i32, i32) {
    %c0_i32 = arith.constant 0 : i32
    %c0_i32_0 = arith.constant 0 : i32
    %c0_i32_1 = arith.constant 0 : i32
    return %c0_i32, %c0_i32_0 : i32, i32
  }
  func.func @transform_12(%arg0: i32) -> (i32, i32) {
    %c0_i32 = arith.constant 0 : i32
    %c0_i32_0 = arith.constant 0 : i32
    %c0_i32_1 = arith.constant 0 : i32
    return %c0_i32, %c0_i32_0 : i32, i32
  }
  func.func @transform_13(%arg0: i32) -> (i32, i32) {
    %c0_i32 = arith.constant 0 : i32
    %c0_i32_0 = arith.constant 0 : i32
    %c0_i32_1 = arith.constant 0 : i32
    return %c0_i32, %c0_i32_0 : i32, i32
  }
  func.func @transform_14(%arg0: i32) -> (i32, i32) {
    %c0_i32 = arith.constant 0 : i32
    %c0_i32_0 = arith.constant 0 : i32
    %c0_i32_1 = arith.constant 0 : i32
    return %c0_i32, %c0_i32_0 : i32, i32
  }
  func.func @transform_15(%arg0: i32) -> (i32, i32) {
    %c0_i32 = arith.constant 0 : i32
    %c0_i32_0 = arith.constant 0 : i32
    %c0_i32_1 = arith.constant 0 : i32
    return %c0_i32, %c0_i32_0 : i32, i32
  }
  func.func @transform_16(%arg0: i32) -> (i32, i32, i32) {
    %c0_i32 = arith.constant 0 : i32
    %c0_i32_0 = arith.constant 0 : i32
    %c0_i32_1 = arith.constant 0 : i32
    return %arg0, %c0_i32, %c0_i32_0 : i32, i32, i32
  }
}

</mosaic_0001>

<llo_original>
// kernel: _lambda_.1
$region0: #{_lambda_.1}
  #allocation0 [shape = 'u32[]', space=smem, size = 0x4, offset = 0x4, fixed_abs, tag = 'smem constant byte address 0x4 - core index']
  #allocation1 [shape = 'u32[144,128]{1,0:T(1,128)}', space=vmem, size = 0x12000, scoped, tag = 'internal scratch']
  %s0 = inlined_call_operand.vmem [shape: f32[2,128,64], index: 0, kind: input, shape index: {}]
  %s1 = inlined_call_operand.vmem [shape: bf16[128,128], index: 1, kind: input, shape index: {}]
  %s2 = inlined_call_operand.hbm [shape: f32[1,128], index: 2, kind: input, shape index: {}]
  %s3 = inlined_call_operand.hbm [shape: bf16[64,128], index: 3, kind: input, shape index: {}]
  %s4 = inlined_call_operand.hbm [shape: f32[1,128], index: 4, kind: input, shape index: {}]
  %s5 = inlined_call_operand.hbm [shape: f32[9,128,64], index: 5, kind: input, shape index: {}]
  %s6 = inlined_call_operand.vmem [shape: f32[1,64], index: 6, kind: input, shape index: {}]
  %s7 = inlined_call_operand.vmem [shape: bf16[64,64], index: 7, kind: input, shape index: {}]
  %s8 = inlined_call_operand.vmem [shape: f32[1,64], index: 8, kind: input, shape index: {}]
  %s9 = inlined_call_operand.vmem [shape: bf16[64,128], index: 9, kind: input, shape index: {}]
  %s10 = inlined_call_operand.vmem [shape: f32[1,128], index: 10, kind: input, shape index: {}]
  %s11 = inlined_call_operand.vmem [shape: bf16[128,64], index: 11, kind: input, shape index: {}]
  %s12 = inlined_call_operand.vmem [shape: f32[1,64], index: 12, kind: input, shape index: {}]
  %s13 = inlined_call_operand.vmem [shape: bf16[128,64], index: 13, kind: input, shape index: {}]
  %s14 = inlined_call_operand.vmem [shape: bf16[128,64], index: 14, kind: input, shape index: {}]
  %s15 = inlined_call_operand.vmem [shape: f32[128,1], index: 15, kind: input, shape index: {}]
  %s16 = inlined_call_operand.vmem [shape: f32[2,128,64], index: 16, kind: output, shape index: {}]
  %s17 = sld [smem:[#allocation0]]
  $region90: #{_lambda_.1} parent=0
    _
  %s19 = ssub.s32 1, %s17
  %s20 = scalar_select 0, %s19, %s17
  $region1: #{_lambda_.1} parent=0
    #allocation2 [shape = 'u8[512]{0}', space=vmem, size = 0x400, scoped, tag = 'input window, operand 2, single buffered']
    #allocation3 [shape = 's32[1]{0}', space=sflag, size = 0x4, scoped, tag = 'scoped memory for _lambda_.1']
    #allocation4 [shape = 'u8[16384]{0}', space=vmem, size = 0x4000, scoped, tag = 'input window, operand 3, single buffered']
    #allocation5 [shape = 's32[1]{0}', space=sflag, size = 0x4, scoped, tag = 'scoped memory for _lambda_.1']
    #allocation6 [shape = 'u8[512]{0}', space=vmem, size = 0x400, scoped, tag = 'input window, operand 4, single buffered']
    #allocation7 [shape = 'u8[589824]{0}', space=vmem, size = 0x90000, scoped, tag = 'input window, operand 5, single buffered']
    #allocation8 [shape = 's32[1]{0}', space=sflag, size = 0x4, scoped, tag = 'scoped memory for _lambda_.1']
    %21 = vsyncpa [#allocation3], 0
    %22 = vsyncpa [#allocation5], 0
    %23 = vsyncpa [#allocation8], 0
    // Predicated region
    $region2: #{_lambda_.1} parent=1 // pred_check
      _
    $region3: #{_lambda_.1} parent=1 // pred_check_branch
      %25 = sbr.rel (0) target = $region5
    $region4: #{_lambda_.1} parent=1 // pred_region
      _
    $region5: #{_lambda_.1} parent=1 // pred_fallthru
      _
    // Predicated region
    $region6: #{_lambda_.1} parent=1 // pred_check
      _
    $region7: #{_lambda_.1} parent=1 // pred_check_branch
      %27 = sbr.rel (0) target = $region9
    $region8: #{_lambda_.1} parent=1 // pred_region
      _
    $region9: #{_lambda_.1} parent=1 // pred_fallthru
      _
    // Predicated region
    $region10: #{_lambda_.1} parent=1 // pred_check
      _
    $region11: #{_lambda_.1} parent=1 // pred_check_branch
      %29 = sbr.rel (0) target = $region13
    $region12: #{_lambda_.1} parent=1 // pred_region
      %s31 = ssub.s32 16, 16
      %32 = vsyncadd [#allocation3], %s31
      %s34 = sshll.u32 [#allocation2], 4
      %s35 = int_to_ptr.vmem [resolvable:$true] %s34
      %37 = dma.hbm_to_vmem [thread:$0]  %s2, 16, %s35, [#allocation3]
    $region13: #{_lambda_.1} parent=1 // pred_fallthru
      _
    // Predicated region
    $region14: #{_lambda_.1} parent=1 // pred_check
      _
    $region15: #{_lambda_.1} parent=1 // pred_check_branch
      %39 = sbr.rel (0) target = $region17
    $region16: #{_lambda_.1} parent=1 // pred_region
      %s41 = ssub.s32 512, 512
      %42 = vsyncadd [#allocation5], %s41
      %s43 = sshll.u32 [#allocation4], 4
      %s44 = int_to_ptr.vmem [resolvable:$true] %s43
      %49 = dma.hbm_to_vmem [thread:$0]  %s3, 512, %s44, [#allocation5], 64, 64, 4
    $region17: #{_lambda_.1} parent=1 // pred_fallthru
      _
    // Predicated region
    $region18: #{_lambda_.1} parent=1 // pred_check
      _
    $region19: #{_lambda_.1} parent=1 // pred_check_branch
      %51 = sbr.rel (0) target = $region21
    $region20: #{_lambda_.1} parent=1 // pred_region
      %s53 = ssub.s32 16, 16
      %54 = vsyncadd [#allocation5], %s53
      %s56 = sshll.u32 [#allocation6], 4
      %s57 = int_to_ptr.vmem [resolvable:$true] %s56
      %59 = dma.hbm_to_vmem [thread:$0]  %s4, 16, %s57, [#allocation5]
    $region21: #{_lambda_.1} parent=1 // pred_fallthru
      _
    // Predicated region
    $region22: #{_lambda_.1} parent=1 // pred_check
      _
    $region23: #{_lambda_.1} parent=1 // pred_check_branch
      %61 = sbr.rel (0) target = $region25
    $region24: #{_lambda_.1} parent=1 // pred_region
      %s63 = ssub.s32 18432, 18432
      %64 = vsyncadd [#allocation8], %s63
      %s65 = sshll.u32 [#allocation7], 4
      %s66 = int_to_ptr.vmem [resolvable:$true] %s65
      %71 = dma.hbm_to_vmem [thread:$0]  %s5, 18432, %s66, [#allocation8], 128, 128, 8
    $region25: #{_lambda_.1} parent=1 // pred_fallthru
      _
    // Predicated region
    $region26: #{_lambda_.1} parent=1 // pred_check
      _
    $region27: #{_lambda_.1} parent=1 // pred_check_branch
      %73 = sbr.rel (0) target = $region29
    $region28: #{_lambda_.1} parent=1 // pred_region
      _
    $region29: #{_lambda_.1} parent=1 // pred_fallthru
      _
    // Predicated region
    $region30: #{_lambda_.1} parent=1 // pred_check
      _
    $region31: #{_lambda_.1} parent=1 // pred_check_branch
      %75 = sbr.rel (0) target = $region33
    $region32: #{_lambda_.1} parent=1 // pred_region
      _
    $region33: #{_lambda_.1} parent=1 // pred_fallthru
      _
    // Predicated region
    $region34: #{_lambda_.1} parent=1 // pred_check
      _
    $region35: #{_lambda_.1} parent=1 // pred_check_branch
      %77 = sbr.rel (0) target = $region37
    $region36: #{_lambda_.1} parent=1 // pred_region
      _
    $region37: #{_lambda_.1} parent=1 // pred_fallthru
      _
    // Predicated region
    $region38: #{_lambda_.1} parent=1 // pred_check
      _
    $region39: #{_lambda_.1} parent=1 // pred_check_branch
      %79 = sbr.rel (0) target = $region41
    $region40: #{_lambda_.1} parent=1 // pred_region
      _
    $region41: #{_lambda_.1} parent=1 // pred_fallthru
      _
    // Predicated region
    $region42: #{_lambda_.1} parent=1 // pred_check
      _
    $region43: #{_lambda_.1} parent=1 // pred_check_branch
      %81 = sbr.rel (0) target = $region45
    $region44: #{_lambda_.1} parent=1 // pred_region
      _
    $region45: #{_lambda_.1} parent=1 // pred_fallthru
      _
    // Predicated region
    $region46: #{_lambda_.1} parent=1 // pred_check
      _
    $region47: #{_lambda_.1} parent=1 // pred_check_branch
      %83 = sbr.rel (0) target = $region49
    $region48: #{_lambda_.1} parent=1 // pred_region
      _
    $region49: #{_lambda_.1} parent=1 // pred_fallthru
      _
    // Predicated region
    $region50: #{_lambda_.1} parent=1 // pred_check
      _
    $region51: #{_lambda_.1} parent=1 // pred_check_branch
      %85 = sbr.rel (0) target = $region53
    $region52: #{_lambda_.1} parent=1 // pred_region
      _
    $region53: #{_lambda_.1} parent=1 // pred_fallthru
      _
    // Predicated region
    $region54: #{_lambda_.1} parent=1 // pred_check
      _
    $region55: #{_lambda_.1} parent=1 // pred_check_branch
      %87 = sbr.rel (0) target = $region57
    $region56: #{_lambda_.1} parent=1 // pred_region
      _
    $region57: #{_lambda_.1} parent=1 // pred_fallthru
      _
    // Predicated region
    $region58: #{_lambda_.1} parent=1 // pred_check
      _
    $region59: #{_lambda_.1} parent=1 // pred_check_branch
      %89 = sbr.rel (0) target = $region61
    $region60: #{_lambda_.1} parent=1 // pred_region
      _
    $region61: #{_lambda_.1} parent=1 // pred_fallthru
      _
    // Predicated region
    $region62: #{_lambda_.1} parent=1 // pred_check
      _
    $region63: #{_lambda_.1} parent=1 // pred_check_branch
      %91 = sbr.rel (0) target = $region65
    $region64: #{_lambda_.1} parent=1 // pred_region
      _
    $region65: #{_lambda_.1} parent=1 // pred_fallthru
      _
    // Predicated region
    $region66: #{_lambda_.1} parent=1 // pred_check
      _
    $region67: #{_lambda_.1} parent=1 // pred_check_branch
      %93 = sbr.rel (0) target = $region69
    $region68: #{_lambda_.1} parent=1 // pred_region
      %94 = dma.done [#allocation3], 16
    $region69: #{_lambda_.1} parent=1 // pred_fallthru
      _
    // Predicated region
    $region70: #{_lambda_.1} parent=1 // pred_check
      _
    $region71: #{_lambda_.1} parent=1 // pred_check_branch
      %96 = sbr.rel (0) target = $region73
    $region72: #{_lambda_.1} parent=1 // pred_region
      %97 = dma.done [#allocation5], 512
    $region73: #{_lambda_.1} parent=1 // pred_fallthru
      _
    // Predicated region
    $region74: #{_lambda_.1} parent=1 // pred_check
      _
    $region75: #{_lambda_.1} parent=1 // pred_check_branch
      %99 = sbr.rel (0) target = $region77
    $region76: #{_lambda_.1} parent=1 // pred_region
      %100 = dma.done [#allocation5], 16
    $region77: #{_lambda_.1} parent=1 // pred_fallthru
      _
    // Predicated region
    $region78: #{_lambda_.1} parent=1 // pred_check
      _
    $region79: #{_lambda_.1} parent=1 // pred_check_branch
      %102 = sbr.rel (0) target = $region81
    $region80: #{_lambda_.1} parent=1 // pred_region
      %103 = dma.done [#allocation8], 18432
    $region81: #{_lambda_.1} parent=1 // pred_fallthru
      _
    %v105 = vld [vmem:[%s0] sm:$0xff]
    %v106 = vld [vmem:[%s0 + $0x8] sm:$0xff]
    %v107 = vld [vmem:[%s0 + $0x10] sm:$0xff]
    %v108 = vld [vmem:[%s0 + $0x18] sm:$0xff]
    %v109 = vld [vmem:[%s0 + $0x20] sm:$0xff]
    %v110 = vld [vmem:[%s0 + $0x28] sm:$0xff]
    %v111 = vld [vmem:[%s0 + $0x30] sm:$0xff]
    %v112 = vld [vmem:[%s0 + $0x38] sm:$0xff]
    %v113 = vld [vmem:[%s0 + $0x40] sm:$0xff]
    %v114 = vld [vmem:[%s0 + $0x48] sm:$0xff]
    %v115 = vld [vmem:[%s0 + $0x50] sm:$0xff]
    %v116 = vld [vmem:[%s0 + $0x58] sm:$0xff]
    %v117 = vld [vmem:[%s0 + $0x60] sm:$0xff]
    %v118 = vld [vmem:[%s0 + $0x68] sm:$0xff]
    %v119 = vld [vmem:[%s0 + $0x70] sm:$0xff]
    %v120 = vld [vmem:[%s0 + $0x78] sm:$0xff]
    %v121 = vld [vmem:[%s0 + $0x80] sm:$0xff]
    %v122 = vld [vmem:[%s0 + $0x88] sm:$0xff]
    %v123 = vld [vmem:[%s0 + $0x90] sm:$0xff]
    %v124 = vld [vmem:[%s0 + $0x98] sm:$0xff]
    %v125 = vld [vmem:[%s0 + $0xa0] sm:$0xff]
    %v126 = vld [vmem:[%s0 + $0xa8] sm:$0xff]
    %v127 = vld [vmem:[%s0 + $0xb0] sm:$0xff]
    %v128 = vld [vmem:[%s0 + $0xb8] sm:$0xff]
    %v129 = vld [vmem:[%s0 + $0xc0] sm:$0xff]
    %v130 = vld [vmem:[%s0 + $0xc8] sm:$0xff]
    %v131 = vld [vmem:[%s0 + $0xd0] sm:$0xff]
    %v132 = vld [vmem:[%s0 + $0xd8] sm:$0xff]
    %v133 = vld [vmem:[%s0 + $0xe0] sm:$0xff]
    %v134 = vld [vmem:[%s0 + $0xe8] sm:$0xff]
    %v135 = vld [vmem:[%s0 + $0xf0] sm:$0xff]
    %v136 = vld [vmem:[%s0 + $0xf8] sm:$0xff]
    %v137 = vpack.c.bf16 %v106, %v105
    %v138 = vpack.c.bf16 %v108, %v107
    %v139 = vpack.c.bf16 %v110, %v109
    %v140 = vpack.c.bf16 %v112, %v111
    %v141 = vpack.c.bf16 %v114, %v113
    %v142 = vpack.c.bf16 %v116, %v115
    %v143 = vpack.c.bf16 %v118, %v117
    %v144 = vpack.c.bf16 %v120, %v119
    %v145 = vpack.c.bf16 %v122, %v121
    %v146 = vpack.c.bf16 %v124, %v123
    %v147 = vpack.c.bf16 %v126, %v125
    %v148 = vpack.c.bf16 %v128, %v127
    %v149 = vpack.c.bf16 %v130, %v129
    %v150 = vpack.c.bf16 %v132, %v131
    %v151 = vpack.c.bf16 %v134, %v133
    %v152 = vpack.c.bf16 %v136, %v135
    %v153 = vld [vmem:[%s1] sm:$0xf]
    %v154 = vld [vmem:[%s1 + $0x4] sm:$0xf]
    %v155 = vld [vmem:[%s1 + $0x8] sm:$0xf]
    %v156 = vld [vmem:[%s1 + $0xc] sm:$0xf]
    %v157 = vld [vmem:[%s1 + $0x10] sm:$0xf]
    %v158 = vld [vmem:[%s1 + $0x14] sm:$0xf]
    %v159 = vld [vmem:[%s1 + $0x18] sm:$0xf]
    %v160 = vld [vmem:[%s1 + $0x1c] sm:$0xf]
    %v161 = vld [vmem:[%s1 + $0x20] sm:$0xf]
    %v162 = vld [vmem:[%s1 + $0x24] sm:$0xf]
    %v163 = vld [vmem:[%s1 + $0x28] sm:$0xf]
    %v164 = vld [vmem:[%s1 + $0x2c] sm:$0xf]
    %v165 = vld [vmem:[%s1 + $0x30] sm:$0xf]
    %v166 = vld [vmem:[%s1 + $0x34] sm:$0xf]
    %v167 = vld [vmem:[%s1 + $0x38] sm:$0xf]
    %v168 = vld [vmem:[%s1 + $0x3c] sm:$0xf]
    %169 = vxpose.xlu0.c.b16.start [1/8] %v137, 128
    %170 = vxpose.xlu0.c.b16.cont [2/8] %v138, 128
    %171 = vxpose.xlu0.c.b16.cont [3/8] %v139, 128
    %172 = vxpose.xlu0.c.b16.cont [4/8] %v140, 128
    %173 = vxpose.xlu0.c.b16.cont [5/8] %v141, 128
    %174 = vxpose.xlu0.c.b16.cont [6/8] %v142, 128
    %175 = vxpose.xlu0.c.b16.cont [7/8] %v143, 128
    %176 = vxpose.xlu0.c.b16.end [8/8] %v144, 128
    %v177 = vpop.trf.xlu0
    %v178 = vpop.trf.xlu0
    %v179 = vpop.trf.xlu0
    %v180 = vpop.trf.xlu0
    %v181 = vpop.trf.xlu0
    %v182 = vpop.trf.xlu0
    %v183 = vpop.trf.xlu0
    %v184 = vpop.trf.xlu0
    %v201 = vunpack.c.l.b16 %v153
    %v202 = vunpack.c.l.b16 %v154
    %v203 = vunpack.c.l.b16 %v155
    %v204 = vunpack.c.l.b16 %v156
    %v205 = vunpack.c.l.b16 %v157
    %v206 = vunpack.c.l.b16 %v158
    %v207 = vunpack.c.l.b16 %v159
    %v208 = vunpack.c.l.b16 %v160
    %v209 = vunpack.c.l.b16 %v161
    %v210 = vunpack.c.l.b16 %v162
    %v211 = vunpack.c.l.b16 %v163
    %v212 = vunpack.c.l.b16 %v164
    %v213 = vunpack.c.l.b16 %v165
    %v214 = vunpack.c.l.b16 %v166
    %v215 = vunpack.c.l.b16 %v167
    %v216 = vunpack.c.l.b16 %v168
    %v217 = vpack.c.b16 %v202, %v201
    %v218 = vpack.c.b16 %v204, %v203
    %v219 = vpack.c.b16 %v206, %v205
    %v220 = vpack.c.b16 %v208, %v207
    %v221 = vpack.c.b16 %v210, %v209
    %v222 = vpack.c.b16 %v212, %v211
    %v223 = vpack.c.b16 %v214, %v213
    %v224 = vpack.c.b16 %v216, %v215
    %233 = vmatprep.subr.bf16.mxu0 0
    %234 = vmatpush1.bf16.msra.mxu0 %v217
    %235 = vmatprep.subr.bf16.mxu0 0
    %236 = vmatpush1.bf16.msra.mxu0 %v218
    %237 = vmatprep.subr.bf16.mxu0 0
    %238 = vmatpush1.bf16.msra.mxu0 %v219
    %239 = vmatprep.subr.bf16.mxu0 0
    %240 = vmatpush1.bf16.msra.mxu0 %v220
    %241 = vmatprep.subr.bf16.mxu0 0
    %242 = vmatpush1.bf16.msra.mxu0 %v221
    %243 = vmatprep.subr.bf16.mxu0 0
    %244 = vmatpush1.bf16.msra.mxu0 %v222
    %245 = vmatprep.subr.bf16.mxu0 0
    %246 = vmatpush1.bf16.msra.mxu0 %v223
    %247 = vmatprep.subr.bf16.mxu0 0
    %248 = vmatpush1.bf16.msra.mxu0 %v224
    %249 = vmatprep.subr.bf16.mxu0 0
    %250 = vmatpush1.bf16.msra.mxu0 0
    %251 = vmatprep.subr.bf16.mxu0 0
    %252 = vmatpush1.bf16.msra.mxu0 0
    %253 = vmatprep.subr.bf16.mxu0 0
    %254 = vmatpush1.bf16.msra.mxu0 0
    %255 = vmatprep.subr.bf16.mxu0 0
    %256 = vmatpush1.bf16.msra.mxu0 0
    %257 = vmatprep.subr.bf16.mxu0 0
    %258 = vmatpush1.bf16.msra.mxu0 0
    %259 = vmatprep.subr.bf16.mxu0 0
    %260 = vmatpush1.bf16.msra.mxu0 0
    %261 = vmatprep.subr.bf16.mxu0 0
    %262 = vmatpush1.bf16.msra.mxu0 0
    %263 = vmatprep.subr.bf16.mxu0 0
    %264 = vmatpush1.bf16.msra.mxu0 0
    %265 = vmatprep.mubr.bf16.mxu0 0
    %266 = vmatmul.mubr.bf16.gmra.mrb[0].mxu0 %v177
    %v267 = vpop.f32.mrb[0].mxu0
    %v268 = vadd.f32 0.0, %v267
    %v269 = vpop.f32.mrb[0].mxu0
    %v270 = vpop.f32.mrb[0].mxu0
    %v271 = vadd.f32 0.0, %v270
    %v272 = vpop.f32.mrb[0].mxu0
    %273 = vmatprep.mubr.bf16.mxu0 0
    %274 = vmatmul.mubr.bf16.gmra.mrb[0].mxu0 %v178
    %v275 = vpop.f32.mrb[0].mxu0
    %v276 = vadd.f32 0.0, %v275
    %v277 = vpop.f32.mrb[0].mxu0
    %v278 = vpop.f32.mrb[0].mxu0
    %v279 = vadd.f32 0.0, %v278
    %v280 = vpop.f32.mrb[0].mxu0
    %281 = vmatprep.mubr.bf16.mxu0 0
    %282 = vmatmul.mubr.bf16.gmra.mrb[0].mxu0 %v179
    %v283 = vpop.f32.mrb[0].mxu0
    %v284 = vadd.f32 0.0, %v283
    %v285 = vpop.f32.mrb[0].mxu0
    %v286 = vpop.f32.mrb[0].mxu0
    %v287 = vadd.f32 0.0, %v286
    %v288 = vpop.f32.mrb[0].mxu0
    %289 = vmatprep.mubr.bf16.mxu0 0
    %290 = vmatmul.mubr.bf16.gmra.mrb[0].mxu0 %v180
    %v291 = vpop.f32.mrb[0].mxu0
    %v292 = vadd.f32 0.0, %v291
    %v293 = vpop.f32.mrb[0].mxu0
    %v294 = vpop.f32.mrb[0].mxu0
    %v295 = vadd.f32 0.0, %v294
    %v296 = vpop.f32.mrb[0].mxu0
    %297 = vdwg.mxu0
    %298 = vxpose.xlu0.c.b16.start [1/8] %v145, 128
    %299 = vxpose.xlu0.c.b16.cont [2/8] %v146, 128
    %300 = vxpose.xlu0.c.b16.cont [3/8] %v147, 128
    %301 = vxpose.xlu0.c.b16.cont [4/8] %v148, 128
    %302 = vxpose.xlu0.c.b16.cont [5/8] %v149, 128
    %303 = vxpose.xlu0.c.b16.cont [6/8] %v150, 128
    %304 = vxpose.xlu0.c.b16.cont [7/8] %v151, 128
    %305 = vxpose.xlu0.c.b16.end [8/8] %v152, 128
    %v306 = vpop.trf.xlu0
    %v307 = vpop.trf.xlu0
    %v308 = vpop.trf.xlu0
    %v309 = vpop.trf.xlu0
    %v310 = vpop.trf.xlu0
    %v311 = vpop.trf.xlu0
    %v312 = vpop.trf.xlu0
    %v313 = vpop.trf.xlu0
    %314 = vmatprep.subr.bf16.mxu0 0
    %315 = vmatpush1.bf16.msra.mxu0 %v217
    %316 = vmatprep.subr.bf16.mxu0 0
    %317 = vmatpush1.bf16.msra.mxu0 %v218
    %318 = vmatprep.subr.bf16.mxu0 0
    %319 = vmatpush1.bf16.msra.mxu0 %v219
    %320 = vmatprep.subr.bf16.mxu0 0
    %321 = vmatpush1.bf16.msra.mxu0 %v220
    %322 = vmatprep.subr.bf16.mxu0 0
    %323 = vmatpush1.bf16.msra.mxu0 %v221
    %324 = vmatprep.subr.bf16.mxu0 0
    %325 = vmatpush1.bf16.msra.mxu0 %v222
    %326 = vmatprep.subr.bf16.mxu0 0
    %327 = vmatpush1.bf16.msra.mxu0 %v223
    %328 = vmatprep.subr.bf16.mxu0 0
    %329 = vmatpush1.bf16.msra.mxu0 %v224
    %330 = vmatprep.subr.bf16.mxu0 0
    %331 = vmatpush1.bf16.msra.mxu0 0
    %332 = vmatprep.subr.bf16.mxu0 0
    %333 = vmatpush1.bf16.msra.mxu0 0
    %334 = vmatprep.subr.bf16.mxu0 0
    %335 = vmatpush1.bf16.msra.mxu0 0
    %336 = vmatprep.subr.bf16.mxu0 0
    %337 = vmatpush1.bf16.msra.mxu0 0
    %338 = vmatprep.subr.bf16.mxu0 0
    %339 = vmatpush1.bf16.msra.mxu0 0
    %340 = vmatprep.subr.bf16.mxu0 0
    %341 = vmatpush1.bf16.msra.mxu0 0
    %342 = vmatprep.subr.bf16.mxu0 0
    %343 = vmatpush1.bf16.msra.mxu0 0
    %344 = vmatprep.subr.bf16.mxu0 0
    %345 = vmatpush1.bf16.msra.mxu0 0
    %346 = vmatprep.mubr.bf16.mxu0 0
    %347 = vmatmul.mubr.bf16.gmra.mrb[0].mxu0 %v306
    %v348 = vpop.f32.mrb[0].mxu0
    %v349 = vadd.f32 0.0, %v348
    %v350 = vpop.f32.mrb[0].mxu0
    %v351 = vpop.f32.mrb[0].mxu0
    %v352 = vadd.f32 0.0, %v351
    %v353 = vpop.f32.mrb[0].mxu0
    %354 = vmatprep.mubr.bf16.mxu0 0
    %355 = vmatmul.mubr.bf16.gmra.mrb[0].mxu0 %v307
    %v356 = vpop.f32.mrb[0].mxu0
    %v357 = vadd.f32 0.0, %v356
    %v358 = vpop.f32.mrb[0].mxu0
    %v359 = vpop.f32.mrb[0].mxu0
    %v360 = vadd.f32 0.0, %v359
    %v361 = vpop.f32.mrb[0].mxu0
    %362 = vmatprep.mubr.bf16.mxu0 0
    %363 = vmatmul.mubr.bf16.gmra.mrb[0].mxu0 %v308
    %v364 = vpop.f32.mrb[0].mxu0
    %v365 = vadd.f32 0.0, %v364
    %v366 = vpop.f32.mrb[0].mxu0
    %v367 = vpop.f32.mrb[0].mxu0
    %v368 = vadd.f32 0.0, %v367
    %v369 = vpop.f32.mrb[0].mxu0
    %370 = vmatprep.mubr.bf16.mxu0 0
    %371 = vmatmul.mubr.bf16.gmra.mrb[0].mxu0 %v309
    %v372 = vpop.f32.mrb[0].mxu0
    %v373 = vadd.f32 0.0, %v372
    %v374 = vpop.f32.mrb[0].mxu0
    %v375 = vpop.f32.mrb[0].mxu0
    %v376 = vadd.f32 0.0, %v375
    %v377 = vpop.f32.mrb[0].mxu0
    %378 = vdwg.mxu0
    %v379 = vld [vmem:[#allocation2] sm:$0x1]
    %v381 = vlaneseq
    %v382 = vshrl.u32 %v381, 7
    %v383 = vsub.s32 0, %v382
    %v384 = vrot.slane %v379, %v383
    %v386 = vadd.f32 %v268, %v384
    %v387 = vadd.f32 %v271, %v384
    %v388 = vadd.f32 %v276, %v384
    %v389 = vadd.f32 %v279, %v384
    %v390 = vadd.f32 %v284, %v384
    %v391 = vadd.f32 %v287, %v384
    %v392 = vadd.f32 %v292, %v384
    %v393 = vadd.f32 %v295, %v384
    %v394 = vadd.f32 %v349, %v384
    %v395 = vadd.f32 %v352, %v384
    %v396 = vadd.f32 %v357, %v384
    %v397 = vadd.f32 %v360, %v384
    %v398 = vadd.f32 %v365, %v384
    %v399 = vadd.f32 %v368, %v384
    %v400 = vadd.f32 %v373, %v384
    %v401 = vadd.f32 %v376, %v384
    %v402 = vxor.u32 %v386, 2147483648
    %v403 = vxor.u32 %v387, 2147483648
    %v404 = vxor.u32 %v388, 2147483648
    %v405 = vxor.u32 %v389, 2147483648
    %v406 = vxor.u32 %v390, 2147483648
    %v407 = vxor.u32 %v391, 2147483648
    %v408 = vxor.u32 %v392, 2147483648
    %v409 = vxor.u32 %v393, 2147483648
    %v410 = vxor.u32 %v394, 2147483648
    %v411 = vxor.u32 %v395, 2147483648
    %v412 = vxor.u32 %v396, 2147483648
    %v413 = vxor.u32 %v397, 2147483648
    %v414 = vxor.u32 %v398, 2147483648
    %v415 = vxor.u32 %v399, 2147483648
    %v416 = vxor.u32 %v400, 2147483648
    %v417 = vxor.u32 %v401, 2147483648
    %v418 = vmul.f32 %v402, 1.442695
    %v419 = vpow.pop %v418
    %v420 = vmul.f32 %v403, 1.442695
    %v421 = vpow.pop %v420
    %v422 = vmul.f32 %v404, 1.442695
    %v423 = vpow.pop %v422
    %v424 = vmul.f32 %v405, 1.442695
    %v425 = vpow.pop %v424
    %v426 = vmul.f32 %v406, 1.442695
    %v427 = vpow.pop %v426
    %v428 = vmul.f32 %v407, 1.442695
    %v429 = vpow.pop %v428
    %v430 = vmul.f32 %v408, 1.442695
    %v431 = vpow.pop %v430
    %v432 = vmul.f32 %v409, 1.442695
    %v433 = vpow.pop %v432
    %v434 = vmul.f32 %v410, 1.442695
    %v435 = vpow.pop %v434
    %v436 = vmul.f32 %v411, 1.442695
    %v437 = vpow.pop %v436
    %v438 = vmul.f32 %v412, 1.442695
    %v439 = vpow.pop %v438
    %v440 = vmul.f32 %v413, 1.442695
    %v441 = vpow.pop %v440
    %v442 = vmul.f32 %v414, 1.442695
    %v443 = vpow.pop %v442
    %v444 = vmul.f32 %v415, 1.442695
    %v445 = vpow.pop %v444
    %v446 = vmul.f32 %v416, 1.442695
    %v447 = vpow.pop %v446
    %v448 = vmul.f32 %v417, 1.442695
    %v449 = vpow.pop %v448
    %v450 = vadd.f32 %v419, 1.0
    %v451 = vadd.f32 %v421, 1.0
    %v452 = vadd.f32 %v423, 1.0
    %v453 = vadd.f32 %v425, 1.0
    %v454 = vadd.f32 %v427, 1.0
    %v455 = vadd.f32 %v429, 1.0
    %v456 = vadd.f32 %v431, 1.0
    %v457 = vadd.f32 %v433, 1.0
    %v458 = vadd.f32 %v435, 1.0
    %v459 = vadd.f32 %v437, 1.0
    %v460 = vadd.f32 %v439, 1.0
    %v461 = vadd.f32 %v441, 1.0
    %v462 = vadd.f32 %v443, 1.0
    %v463 = vadd.f32 %v445, 1.0
    %v464 = vadd.f32 %v447, 1.0
    %v465 = vadd.f32 %v449, 1.0
    %v466 = vrcp.pop %v450
    %v467 = vmul.f32 1.0, %v466
    %v468 = vrcp.pop %v451
    %v469 = vmul.f32 1.0, %v468
    %v470 = vrcp.pop %v452
    %v471 = vmul.f32 1.0, %v470
    %v472 = vrcp.pop %v453
    %v473 = vmul.f32 1.0, %v472
    %v474 = vrcp.pop %v454
    %v475 = vmul.f32 1.0, %v474
    %v476 = vrcp.pop %v455
    %v477 = vmul.f32 1.0, %v476
    %v478 = vrcp.pop %v456
    %v479 = vmul.f32 1.0, %v478
    %v480 = vrcp.pop %v457
    %v481 = vmul.f32 1.0, %v480
    %v482 = vrcp.pop %v458
    %v483 = vmul.f32 1.0, %v482
    %v484 = vrcp.pop %v459
    %v485 = vmul.f32 1.0, %v484
    %v486 = vrcp.pop %v460
    %v487 = vmul.f32 1.0, %v486
    %v488 = vrcp.pop %v461
    %v489 = vmul.f32 1.0, %v488
    %v490 = vrcp.pop %v462
    %v491 = vmul.f32 1.0, %v490
    %v492 = vrcp.pop %v463
    %v493 = vmul.f32 1.0, %v492
    %v494 = vrcp.pop %v464
    %v495 = vmul.f32 1.0, %v494
    %v496 = vrcp.pop %v465
    %v497 = vmul.f32 1.0, %v496
    %v498 = vmul.f32 %v386, %v467
    %v499 = vmul.f32 %v387, %v469
    %v500 = vmul.f32 %v388, %v471
    %v501 = vmul.f32 %v389, %v473
    %v502 = vmul.f32 %v390, %v475
    %v503 = vmul.f32 %v391, %v477
    %v504 = vmul.f32 %v392, %v479
    %v505 = vmul.f32 %v393, %v481
    %v506 = vmul.f32 %v394, %v483
    %v507 = vmul.f32 %v395, %v485
    %v508 = vmul.f32 %v396, %v487
    %v509 = vmul.f32 %v397, %v489
    %v510 = vmul.f32 %v398, %v491
    %v511 = vmul.f32 %v399, %v493
    %v512 = vmul.f32 %v400, %v495
    %v513 = vmul.f32 %v401, %v497
    %v514 = vpack.c.bf16 %v499, %v498
    %v515 = vpack.c.bf16 %v501, %v500
    %v516 = vpack.c.bf16 %v503, %v502
    %v517 = vpack.c.bf16 %v505, %v504
    %v518 = vpack.c.bf16 %v507, %v506
    %v519 = vpack.c.bf16 %v509, %v508
    %v520 = vpack.c.bf16 %v511, %v510
    %v521 = vpack.c.bf16 %v513, %v512
    %v522 = vld [vmem:[#allocation4] sm:$0xf]
    %v523 = vld [vmem:[#allocation4 + $0x4] sm:$0xf]
    %v524 = vld [vmem:[#allocation4 + $0x8] sm:$0xf]
    %v525 = vld [vmem:[#allocation4 + $0xc] sm:$0xf]
    %v526 = vld [vmem:[#allocation4 + $0x10] sm:$0xf]
    %v527 = vld [vmem:[#allocation4 + $0x14] sm:$0xf]
    %v528 = vld [vmem:[#allocation4 + $0x18] sm:$0xf]
    %v529 = vld [vmem:[#allocation4 + $0x1c] sm:$0xf]
    %v530 = vld [vmem:[#allocation6] sm:$0x1]
    %v532 = vlaneseq
    %v533 = vshrl.u32 %v532, 7
    %v534 = vsub.s32 0, %v533
    %v535 = vrot.slane %v530, %v534
    %545 = vrot.lane.b32.xlu0 %v514, 64
    %v546 = vpop.permute.xlu0 %545
    %547 = vrot.lane.b32.xlu0 %v515, 64
    %v548 = vpop.permute.xlu0 %547
    %549 = vrot.lane.b32.xlu0 %v516, 64
    %v550 = vpop.permute.xlu0 %549
    %551 = vrot.lane.b32.xlu0 %v517, 64
    %v552 = vpop.permute.xlu0 %551
    %553 = vrot.lane.b32.xlu0 %v518, 64
    %v554 = vpop.permute.xlu0 %553
    %555 = vrot.lane.b32.xlu0 %v519, 64
    %v556 = vpop.permute.xlu0 %555
    %557 = vrot.lane.b32.xlu0 %v520, 64
    %v558 = vpop.permute.xlu0 %557
    %559 = vrot.lane.b32.xlu0 %v521, 64
    %v560 = vpop.permute.xlu0 %559
    %v569 = vunpack.c.l.b16 %v522
    %v570 = vunpack.c.l.b16 %v523
    %v571 = vunpack.c.l.b16 %v524
    %v572 = vunpack.c.l.b16 %v525
    %v573 = vunpack.c.l.b16 %v526
    %v574 = vunpack.c.l.b16 %v527
    %v575 = vunpack.c.l.b16 %v528
    %v576 = vunpack.c.l.b16 %v529
    %v577 = vpack.c.b16 %v570, %v569
    %v578 = vpack.c.b16 %v572, %v571
    %v579 = vpack.c.b16 %v574, %v573
    %v580 = vpack.c.b16 %v576, %v575
    %vm585 = vcmask 523264
    %v587 = vsel %vm585, %v546, 0
    %v590 = vsel %vm585, %v548, 0
    %v593 = vsel %vm585, %v550, 0
    %v596 = vsel %vm585, %v552, 0
    %v599 = vsel %vm585, %v554, 0
    %v602 = vsel %vm585, %v556, 0
    %v605 = vsel %vm585, %v558, 0
    %v608 = vsel %vm585, %v560, 0
    %610 = vmatprep.subr.bf16.mxu0 0
    %611 = vmatpush1.bf16.msra.mxu0 %v577
    %612 = vmatprep.subr.bf16.mxu0 0
    %613 = vmatpush1.bf16.msra.mxu0 %v578
    %614 = vmatprep.subr.bf16.mxu0 0
    %615 = vmatpush1.bf16.msra.mxu0 %v579
    %616 = vmatprep.subr.bf16.mxu0 0
    %617 = vmatpush1.bf16.msra.mxu0 %v580
    %618 = vmatprep.subr.bf16.mxu0 0
    %619 = vmatpush1.bf16.msra.mxu0 0
    %620 = vmatprep.subr.bf16.mxu0 0
    %621 = vmatpush1.bf16.msra.mxu0 0
    %622 = vmatprep.subr.bf16.mxu0 0
    %623 = vmatpush1.bf16.msra.mxu0 0
    %624 = vmatprep.subr.bf16.mxu0 0
    %625 = vmatpush1.bf16.msra.mxu0 0
    %626 = vmatprep.subr.bf16.mxu0 0
    %627 = vmatpush1.bf16.msra.mxu0 0
    %628 = vmatprep.subr.bf16.mxu0 0
    %629 = vmatpush1.bf16.msra.mxu0 0
    %630 = vmatprep.subr.bf16.mxu0 0
    %631 = vmatpush1.bf16.msra.mxu0 0
    %632 = vmatprep.subr.bf16.mxu0 0
    %633 = vmatpush1.bf16.msra.mxu0 0
    %634 = vmatprep.subr.bf16.mxu0 0
    %635 = vmatpush1.bf16.msra.mxu0 0
    %636 = vmatprep.subr.bf16.mxu0 0
    %637 = vmatpush1.bf16.msra.mxu0 0
    %638 = vmatprep.subr.bf16.mxu0 0
    %639 = vmatpush1.bf16.msra.mxu0 0
    %640 = vmatprep.subr.bf16.mxu0 0
    %641 = vmatpush1.bf16.msra.mxu0 0
    %642 = vmatprep.mubr.bf16.mxu0 0
    %643 = vmatmul.mubr.bf16.gmra.mrb[0].mxu0 %v587
    %v644 = vpop.f32.mrb[0].mxu0
    %v645 = vadd.f32 %v535, %v644
    %v646 = vpop.f32.mrb[0].mxu0
    %v647 = vpop.f32.mrb[0].mxu0
    %v648 = vadd.f32 %v535, %v647
    %v649 = vpop.f32.mrb[0].mxu0
    %650 = vmatprep.mubr.bf16.mxu0 0
    %651 = vmatmul.mubr.bf16.gmra.mrb[0].mxu0 %v590
    %v652 = vpop.f32.mrb[0].mxu0
    %v653 = vadd.f32 %v535, %v652
    %v654 = vpop.f32.mrb[0].mxu0
    %v655 = vpop.f32.mrb[0].mxu0
    %v656 = vadd.f32 %v535, %v655
    %v657 = vpop.f32.mrb[0].mxu0
    %658 = vmatprep.mubr.bf16.mxu0 0
    %659 = vmatmul.mubr.bf16.gmra.mrb[0].mxu0 %v593
    %v660 = vpop.f32.mrb[0].mxu0
    %v661 = vadd.f32 %v535, %v660
    %v662 = vpop.f32.mrb[0].mxu0
    %v663 = vpop.f32.mrb[0].mxu0
    %v664 = vadd.f32 %v535, %v663
    %v665 = vpop.f32.mrb[0].mxu0
    %666 = vmatprep.mubr.bf16.mxu0 0
    %667 = vmatmul.mubr.bf16.gmra.mrb[0].mxu0 %v596
    %v668 = vpop.f32.mrb[0].mxu0
    %v669 = vadd.f32 %v535, %v668
    %v670 = vpop.f32.mrb[0].mxu0
    %v671 = vpop.f32.mrb[0].mxu0
    %v672 = vadd.f32 %v535, %v671
    %v673 = vpop.f32.mrb[0].mxu0
    %674 = vmatprep.mubr.bf16.mxu0 0
    %675 = vmatmul.mubr.bf16.gmra.mrb[0].mxu0 %v599
    %v676 = vpop.f32.mrb[0].mxu0
    %v677 = vadd.f32 %v535, %v676
    %v678 = vpop.f32.mrb[0].mxu0
    %v679 = vpop.f32.mrb[0].mxu0
    %v680 = vadd.f32 %v535, %v679
    %v681 = vpop.f32.mrb[0].mxu0
    %682 = vmatprep.mubr.bf16.mxu0 0
    %683 = vmatmul.mubr.bf16.gmra.mrb[0].mxu0 %v602
    %v684 = vpop.f32.mrb[0].mxu0
    %v685 = vadd.f32 %v535, %v684
    %v686 = vpop.f32.mrb[0].mxu0
    %v687 = vpop.f32.mrb[0].mxu0
    %v688 = vadd.f32 %v535, %v687
    %v689 = vpop.f32.mrb[0].mxu0
    %690 = vmatprep.mubr.bf16.mxu0 0
    %691 = vmatmul.mubr.bf16.gmra.mrb[0].mxu0 %v605
    %v692 = vpop.f32.mrb[0].mxu0
    %v693 = vadd.f32 %v535, %v692
    %v694 = vpop.f32.mrb[0].mxu0
    %v695 = vpop.f32.mrb[0].mxu0
    %v696 = vadd.f32 %v535, %v695
    %v697 = vpop.f32.mrb[0].mxu0
    %698 = vmatprep.mubr.bf16.mxu0 0
    %699 = vmatmul.mubr.bf16.gmra.mrb[0].mxu0 %v608
    %v700 = vpop.f32.mrb[0].mxu0
    %v701 = vadd.f32 %v535, %v700
    %v702 = vpop.f32.mrb[0].mxu0
    %v703 = vpop.f32.mrb[0].mxu0
    %v704 = vadd.f32 %v535, %v703
    %v705 = vpop.f32.mrb[0].mxu0
    %706 = vdwg.mxu0
    %v707 = vpack.c.bf16 %v648, %v645
    %v708 = vpack.c.bf16 %v656, %v653
    %v709 = vpack.c.bf16 %v664, %v661
    %v710 = vpack.c.bf16 %v672, %v669
    %v711 = vpack.c.bf16 %v680, %v677
    %v712 = vpack.c.bf16 %v688, %v685
    %v713 = vpack.c.bf16 %v696, %v693
    %v714 = vpack.c.bf16 %v704, %v701
    %719 = vrot.lane.b32.xlu0 %v707, 96
    %v720 = vpop.permute.xlu0 %719
    %721 = vrot.lane.b32.xlu0 %v708, 96
    %v722 = vpop.permute.xlu0 %721
    %723 = vrot.lane.b32.xlu0 %v709, 96
    %v724 = vpop.permute.xlu0 %723
    %725 = vrot.lane.b32.xlu0 %v710, 96
    %v726 = vpop.permute.xlu0 %725
    %vm727 = vcmask 261120
    %v729 = vsel %vm727, %v707, 0
    %v732 = vsel %vm727, %v708, 0
    %v735 = vsel %vm727, %v709, 0
    %v738 = vsel %vm727, %v710, 0
    %v741 = vsel %vm727, %v720, 0
    %v744 = vsel %vm727, %v722, 0
    %v747 = vsel %vm727, %v724, 0
    %v750 = vsel %vm727, %v726, 0
    %752 = vmatprep.subr.bf16.mxu0 0
    %753 = vmatpush1.bf16.xpose.msra.mxu0 %v741
    %754 = vmatprep.subr.bf16.mxu0 0
    %755 = vmatpush1.bf16.xpose.msra.mxu0 %v744
    %756 = vmatprep.subr.bf16.mxu0 0
    %757 = vmatpush1.bf16.xpose.msra.mxu0 %v747
    %758 = vmatprep.subr.bf16.mxu0 0
    %759 = vmatpush1.bf16.xpose.msra.mxu0 %v750
    %760 = vmatprep.subr.bf16.mxu0 0
    %761 = vmatpush1.bf16.xpose.msra.mxu0 0
    %762 = vmatprep.subr.bf16.mxu0 0
    %763 = vmatpush1.bf16.xpose.msra.mxu0 0
    %764 = vmatprep.subr.bf16.mxu0 0
    %765 = vmatpush1.bf16.xpose.msra.mxu0 0
    %766 = vmatprep.subr.bf16.mxu0 0
    %767 = vmatpush1.bf16.xpose.msra.mxu0 0
    %768 = vmatprep.subr.bf16.mxu0 0
    %769 = vmatpush1.bf16.xpose.msra.mxu0 0
    %770 = vmatprep.subr.bf16.mxu0 0
    %771 = vmatpush1.bf16.xpose.msra.mxu0 0
    %772 = vmatprep.subr.bf16.mxu0 0
    %773 = vmatpush1.bf16.xpose.msra.mxu0 0
    %774 = vmatprep.subr.bf16.mxu0 0
    %775 = vmatpush1.bf16.xpose.msra.mxu0 0
    %776 = vmatprep.subr.bf16.mxu0 0
    %777 = vmatpush1.bf16.xpose.msra.mxu0 0
    %778 = vmatprep.subr.bf16.mxu0 0
    %779 = vmatpush1.bf16.xpose.msra.mxu0 0
    %780 = vmatprep.subr.bf16.mxu0 0
    %781 = vmatpush1.bf16.xpose.msra.mxu0 0
    %782 = vmatprep.subr.bf16.mxu0 0
    %783 = vmatpush1.bf16.xpose.msra.mxu0 0
    %784 = vmatprep.mubr.bf16.mxu0 0
    %785 = vmatmul.mubr.bf16.gmra.mrb[0].mxu0 %v729
    %v786 = vpop.f32.mrb[0].mxu0
    %v787 = vadd.f32 0.0, %v786
    %v788 = vpop.f32.mrb[0].mxu0
    %v789 = vpop.f32.mrb[0].mxu0
    %v790 = vadd.f32 0.0, %v789
    %v791 = vpop.f32.mrb[0].mxu0
    %792 = vmatprep.mubr.bf16.mxu0 0
    %793 = vmatmul.mubr.bf16.gmra.mrb[0].mxu0 %v732
    %v794 = vpop.f32.mrb[0].mxu0
    %v795 = vadd.f32 0.0, %v794
    %v796 = vpop.f32.mrb[0].mxu0
    %v797 = vpop.f32.mrb[0].mxu0
    %v798 = vadd.f32 0.0, %v797
    %v799 = vpop.f32.mrb[0].mxu0
    %800 = vmatprep.mubr.bf16.mxu0 0
    %801 = vmatmul.mubr.bf16.gmra.mrb[0].mxu0 %v735
    %v802 = vpop.f32.mrb[0].mxu0
    %v803 = vadd.f32 0.0, %v802
    %v804 = vpop.f32.mrb[0].mxu0
    %v805 = vpop.f32.mrb[0].mxu0
    %v806 = vadd.f32 0.0, %v805
    %v807 = vpop.f32.mrb[0].mxu0
    %808 = vmatprep.mubr.bf16.mxu0 0
    %809 = vmatmul.mubr.bf16.gmra.mrb[0].mxu0 %v738
    %v810 = vpop.f32.mrb[0].mxu0
    %v811 = vadd.f32 0.0, %v810
    %v812 = vpop.f32.mrb[0].mxu0
    %v813 = vpop.f32.mrb[0].mxu0
    %v814 = vadd.f32 0.0, %v813
    %v815 = vpop.f32.mrb[0].mxu0
    %816 = vdwg.mxu0
    %v817 = vsel %vm585, %v787, -inf
    %818 = vmax.xlane.f32.xlu0 %v817
    %v819 = vpop.xlane.xlu0 %818
    %v820 = vsel %vm585, %v790, -inf
    %821 = vmax.xlane.f32.xlu0 %v820
    %v822 = vpop.xlane.xlu0 %821
    %v823 = vsel %vm585, %v795, -inf
    %824 = vmax.xlane.f32.xlu0 %v823
    %v825 = vpop.xlane.xlu0 %824
    %v826 = vsel %vm585, %v798, -inf
    %827 = vmax.xlane.f32.xlu0 %v826
    %v828 = vpop.xlane.xlu0 %827
    %v829 = vsel %vm585, %v803, -inf
    %830 = vmax.xlane.f32.xlu0 %v829
    %v831 = vpop.xlane.xlu0 %830
    %v832 = vsel %vm585, %v806, -inf
    %833 = vmax.xlane.f32.xlu0 %v832
    %v834 = vpop.xlane.xlu0 %833
    %v835 = vsel %vm585, %v811, -inf
    %836 = vmax.xlane.f32.xlu0 %v835
    %v837 = vpop.xlane.xlu0 %836
    %v838 = vsel %vm585, %v814, -inf
    %839 = vmax.xlane.f32.xlu0 %v838
    %v840 = vpop.xlane.xlu0 %839
    %v841 = vsub.f32 %v787, %v819
    %v842 = vsub.f32 %v790, %v822
    %v843 = vsub.f32 %v795, %v825
    %v844 = vsub.f32 %v798, %v828
    %v845 = vsub.f32 %v803, %v831
    %v846 = vsub.f32 %v806, %v834
    %v847 = vsub.f32 %v811, %v837
    %v848 = vsub.f32 %v814, %v840
    %v849 = vmul.f32 %v841, 1.442695
    %v850 = vpow.pop %v849
    %v851 = vmul.f32 %v842, 1.442695
    %v852 = vpow.pop %v851
    %v853 = vmul.f32 %v843, 1.442695
    %v854 = vpow.pop %v853
    %v855 = vmul.f32 %v844, 1.442695
    %v856 = vpow.pop %v855
    %v857 = vmul.f32 %v845, 1.442695
    %v858 = vpow.pop %v857
    %v859 = vmul.f32 %v846, 1.442695
    %v860 = vpow.pop %v859
    %v861 = vmul.f32 %v847, 1.442695
    %v862 = vpow.pop %v861
    %v863 = vmul.f32 %v848, 1.442695
    %v864 = vpow.pop %v863
    %v865 = vsel %vm585, %v850, 0.0
    %866 = vadd.xlane.f32.xlu0 %v865
    %v867 = vpop.xlane.xlu0 %866
    %v868 = vsel %vm585, %v852, 0.0
    %869 = vadd.xlane.f32.xlu0 %v868
    %v870 = vpop.xlane.xlu0 %869
    %v871 = vsel %vm585, %v854, 0.0
    %872 = vadd.xlane.f32.xlu0 %v871
    %v873 = vpop.xlane.xlu0 %872
    %v874 = vsel %vm585, %v856, 0.0
    %875 = vadd.xlane.f32.xlu0 %v874
    %v876 = vpop.xlane.xlu0 %875
    %v877 = vsel %vm585, %v858, 0.0
    %878 = vadd.xlane.f32.xlu0 %v877
    %v879 = vpop.xlane.xlu0 %878
    %v880 = vsel %vm585, %v860, 0.0
    %881 = vadd.xlane.f32.xlu0 %v880
    %v882 = vpop.xlane.xlu0 %881
    %v883 = vsel %vm585, %v862, 0.0
    %884 = vadd.xlane.f32.xlu0 %v883
    %v885 = vpop.xlane.xlu0 %884
    %v886 = vsel %vm585, %v864, 0.0
    %887 = vadd.xlane.f32.xlu0 %v886
    %v888 = vpop.xlane.xlu0 %887
    %v889 = vpack.c.bf16 %v852, %v850
    %v890 = vpack.c.bf16 %v856, %v854
    %v891 = vpack.c.bf16 %v860, %v858
    %v892 = vpack.c.bf16 %v864, %v862
    %893 = vrot.lane.b32.xlu0 %v707, 64
    %v894 = vpop.permute.xlu0 %893
    %895 = vrot.lane.b32.xlu0 %v708, 64
    %v896 = vpop.permute.xlu0 %895
    %897 = vrot.lane.b32.xlu0 %v709, 64
    %v898 = vpop.permute.xlu0 %897
    %899 = vrot.lane.b32.xlu0 %v710, 64
    %v900 = vpop.permute.xlu0 %899
    %v906 = vsel %vm585, %v889, 0
    %v909 = vsel %vm585, %v890, 0
    %v912 = vsel %vm585, %v891, 0
    %v915 = vsel %vm585, %v892, 0
    %917 = vmatprep.subr.bf16.mxu0 0
    %918 = vmatpush1.bf16.msra.mxu0 %v894
    %919 = vmatprep.subr.bf16.mxu0 0
    %920 = vmatpush1.bf16.msra.mxu0 %v896
    %921 = vmatprep.subr.bf16.mxu0 0
    %922 = vmatpush1.bf16.msra.mxu0 %v898
    %923 = vmatprep.subr.bf16.mxu0 0
    %924 = vmatpush1.bf16.msra.mxu0 %v900
    %925 = vmatprep.subr.bf16.mxu0 0
    %926 = vmatpush1.bf16.msra.mxu0 0
    %927 = vmatprep.subr.bf16.mxu0 0
    %928 = vmatpush1.bf16.msra.mxu0 0
    %929 = vmatprep.subr.bf16.mxu0 0
    %930 = vmatpush1.bf16.msra.mxu0 0
    %931 = vmatprep.subr.bf16.mxu0 0
    %932 = vmatpush1.bf16.msra.mxu0 0
    %933 = vmatprep.subr.bf16.mxu0 0
    %934 = vmatpush1.bf16.msra.mxu0 0
    %935 = vmatprep.subr.bf16.mxu0 0
    %936 = vmatpush1.bf16.msra.mxu0 0
    %937 = vmatprep.subr.bf16.mxu0 0
    %938 = vmatpush1.bf16.msra.mxu0 0
    %939 = vmatprep.subr.bf16.mxu0 0
    %940 = vmatpush1.bf16.msra.mxu0 0
    %941 = vmatprep.subr.bf16.mxu0 0
    %942 = vmatpush1.bf16.msra.mxu0 0
    %943 = vmatprep.subr.bf16.mxu0 0
    %944 = vmatpush1.bf16.msra.mxu0 0
    %945 = vmatprep.subr.bf16.mxu0 0
    %946 = vmatpush1.bf16.msra.mxu0 0
    %947 = vmatprep.subr.bf16.mxu0 0
    %948 = vmatpush1.bf16.msra.mxu0 0
    %949 = vmatprep.mubr.bf16.mxu0 0
    %950 = vmatmul.mubr.bf16.gmra.mrb[0].mxu0 %v906
    %v951 = vpop.f32.mrb[0].mxu0
    %v952 = vadd.f32 0.0, %v951
    %v953 = vpop.f32.mrb[0].mxu0
    %v954 = vpop.f32.mrb[0].mxu0
    %v955 = vadd.f32 0.0, %v954
    %v956 = vpop.f32.mrb[0].mxu0
    %957 = vmatprep.mubr.bf16.mxu0 0
    %958 = vmatmul.mubr.bf16.gmra.mrb[0].mxu0 %v909
    %v959 = vpop.f32.mrb[0].mxu0
    %v960 = vadd.f32 0.0, %v959
    %v961 = vpop.f32.mrb[0].mxu0
    %v962 = vpop.f32.mrb[0].mxu0
    %v963 = vadd.f32 0.0, %v962
    %v964 = vpop.f32.mrb[0].mxu0
    %965 = vmatprep.mubr.bf16.mxu0 0
    %966 = vmatmul.mubr.bf16.gmra.mrb[0].mxu0 %v912
    %v967 = vpop.f32.mrb[0].mxu0
    %v968 = vadd.f32 0.0, %v967
    %v969 = vpop.f32.mrb[0].mxu0
    %v970 = vpop.f32.mrb[0].mxu0
    %v971 = vadd.f32 0.0, %v970
    %v972 = vpop.f32.mrb[0].mxu0
    %973 = vmatprep.mubr.bf16.mxu0 0
    %974 = vmatmul.mubr.bf16.gmra.mrb[0].mxu0 %v915
    %v975 = vpop.f32.mrb[0].mxu0
    %v976 = vadd.f32 0.0, %v975
    %v977 = vpop.f32.mrb[0].mxu0
    %v978 = vpop.f32.mrb[0].mxu0
    %v979 = vadd.f32 0.0, %v978
    %v980 = vpop.f32.mrb[0].mxu0
    %981 = vdwg.mxu0
    %v982 = vrcp.pop %v867
    %v983 = vrcp.pop %v870
    %v984 = vrcp.pop %v873
    %v985 = vrcp.pop %v876
    %v986 = vrcp.pop %v879
    %v987 = vrcp.pop %v882
    %v988 = vrcp.pop %v885
    %v989 = vrcp.pop %v888
    %v990 = vmul.f32 %v952, %v982
    %v991 = vmul.f32 %v955, %v983
    %v992 = vmul.f32 %v960, %v984
    %v993 = vmul.f32 %v963, %v985
    %v994 = vmul.f32 %v968, %v986
    %v995 = vmul.f32 %v971, %v987
    %v996 = vmul.f32 %v976, %v988
    %v997 = vmul.f32 %v979, %v989
    %1002 = vrot.lane.b32.xlu0 %v711, 96
    %v1003 = vpop.permute.xlu0 %1002
    %1004 = vrot.lane.b32.xlu0 %v712, 96
    %v1005 = vpop.permute.xlu0 %1004
    %1006 = vrot.lane.b32.xlu0 %v713, 96
    %v1007 = vpop.permute.xlu0 %1006
    %1008 = vrot.lane.b32.xlu0 %v714, 96
    %v1009 = vpop.permute.xlu0 %1008
    %v1011 = vsel %vm727, %v711, 0
    %v1014 = vsel %vm727, %v712, 0
    %v1017 = vsel %vm727, %v713, 0
    %v1020 = vsel %vm727, %v714, 0
    %v1023 = vsel %vm727, %v1003, 0
    %v1026 = vsel %vm727, %v1005, 0
    %v1029 = vsel %vm727, %v1007, 0
    %v1032 = vsel %vm727, %v1009, 0
    %1034 = vmatprep.subr.bf16.mxu0 0
    %1035 = vmatpush1.bf16.xpose.msra.mxu0 %v1023
    %1036 = vmatprep.subr.bf16.mxu0 0
    %1037 = vmatpush1.bf16.xpose.msra.mxu0 %v1026
    %1038 = vmatprep.subr.bf16.mxu0 0
    %1039 = vmatpush1.bf16.xpose.msra.mxu0 %v1029
    %1040 = vmatprep.subr.bf16.mxu0 0
    %1041 = vmatpush1.bf16.xpose.msra.mxu0 %v1032
    %1042 = vmatprep.subr.bf16.mxu0 0
    %1043 = vmatpush1.bf16.xpose.msra.mxu0 0
    %1044 = vmatprep.subr.bf16.mxu0 0
    %1045 = vmatpush1.bf16.xpose.msra.mxu0 0
    %1046 = vmatprep.subr.bf16.mxu0 0
    %1047 = vmatpush1.bf16.xpose.msra.mxu0 0
    %1048 = vmatprep.subr.bf16.mxu0 0
    %1049 = vmatpush1.bf16.xpose.msra.mxu0 0
    %1050 = vmatprep.subr.bf16.mxu0 0
    %1051 = vmatpush1.bf16.xpose.msra.mxu0 0
    %1052 = vmatprep.subr.bf16.mxu0 0
    %1053 = vmatpush1.bf16.xpose.msra.mxu0 0
    %1054 = vmatprep.subr.bf16.mxu0 0
    %1055 = vmatpush1.bf16.xpose.msra.mxu0 0
    %1056 = vmatprep.subr.bf16.mxu0 0
    %1057 = vmatpush1.bf16.xpose.msra.mxu0 0
    %1058 = vmatprep.subr.bf16.mxu0 0
    %1059 = vmatpush1.bf16.xpose.msra.mxu0 0
    %1060 = vmatprep.subr.bf16.mxu0 0
    %1061 = vmatpush1.bf16.xpose.msra.mxu0 0
    %1062 = vmatprep.subr.bf16.mxu0 0
    %1063 = vmatpush1.bf16.xpose.msra.mxu0 0
    %1064 = vmatprep.subr.bf16.mxu0 0
    %1065 = vmatpush1.bf16.xpose.msra.mxu0 0
    %1066 = vmatprep.mubr.bf16.mxu0 0
    %1067 = vmatmul.mubr.bf16.gmra.mrb[0].mxu0 %v1011
    %v1068 = vpop.f32.mrb[0].mxu0
    %v1069 = vadd.f32 0.0, %v1068
    %v1070 = vpop.f32.mrb[0].mxu0
    %v1071 = vpop.f32.mrb[0].mxu0
    %v1072 = vadd.f32 0.0, %v1071
    %v1073 = vpop.f32.mrb[0].mxu0
    %1074 = vmatprep.mubr.bf16.mxu0 0
    %1075 = vmatmul.mubr.bf16.gmra.mrb[0].mxu0 %v1014
    %v1076 = vpop.f32.mrb[0].mxu0
    %v1077 = vadd.f32 0.0, %v1076
    %v1078 = vpop.f32.mrb[0].mxu0
    %v1079 = vpop.f32.mrb[0].mxu0
    %v1080 = vadd.f32 0.0, %v1079
    %v1081 = vpop.f32.mrb[0].mxu0
    %1082 = vmatprep.mubr.bf16.mxu0 0
    %1083 = vmatmul.mubr.bf16.gmra.mrb[0].mxu0 %v1017
    %v1084 = vpop.f32.mrb[0].mxu0
    %v1085 = vadd.f32 0.0, %v1084
    %v1086 = vpop.f32.mrb[0].mxu0
    %v1087 = vpop.f32.mrb[0].mxu0
    %v1088 = vadd.f32 0.0, %v1087
    %v1089 = vpop.f32.mrb[0].mxu0
    %1090 = vmatprep.mubr.bf16.mxu0 0
    %1091 = vmatmul.mubr.bf16.gmra.mrb[0].mxu0 %v1020
    %v1092 = vpop.f32.mrb[0].mxu0
    %v1093 = vadd.f32 0.0, %v1092
    %v1094 = vpop.f32.mrb[0].mxu0
    %v1095 = vpop.f32.mrb[0].mxu0
    %v1096 = vadd.f32 0.0, %v1095
    %v1097 = vpop.f32.mrb[0].mxu0
    %1098 = vdwg.mxu0
    %v1099 = vsel %vm585, %v1069, -inf
    %1100 = vmax.xlane.f32.xlu0 %v1099
    %v1101 = vpop.xlane.xlu0 %1100
    %v1102 = vsel %vm585, %v1072, -inf
    %1103 = vmax.xlane.f32.xlu0 %v1102
    %v1104 = vpop.xlane.xlu0 %1103
    %v1105 = vsel %vm585, %v1077, -inf
    %1106 = vmax.xlane.f32.xlu0 %v1105
    %v1107 = vpop.xlane.xlu0 %1106
    %v1108 = vsel %vm585, %v1080, -inf
    %1109 = vmax.xlane.f32.xlu0 %v1108
    %v1110 = vpop.xlane.xlu0 %1109
    %v1111 = vsel %vm585, %v1085, -inf
    %1112 = vmax.xlane.f32.xlu0 %v1111
    %v1113 = vpop.xlane.xlu0 %1112
    %v1114 = vsel %vm585, %v1088, -inf
    %1115 = vmax.xlane.f32.xlu0 %v1114
    %v1116 = vpop.xlane.xlu0 %1115
    %v1117 = vsel %vm585, %v1093, -inf
    %1118 = vmax.xlane.f32.xlu0 %v1117
    %v1119 = vpop.xlane.xlu0 %1118
    %v1120 = vsel %vm585, %v1096, -inf
    %1121 = vmax.xlane.f32.xlu0 %v1120
    %v1122 = vpop.xlane.xlu0 %1121
    %v1123 = vsub.f32 %v1069, %v1101
    %v1124 = vsub.f32 %v1072, %v1104
    %v1125 = vsub.f32 %v1077, %v1107
    %v1126 = vsub.f32 %v1080, %v1110
    %v1127 = vsub.f32 %v1085, %v1113
    %v1128 = vsub.f32 %v1088, %v1116
    %v1129 = vsub.f32 %v1093, %v1119
    %v1130 = vsub.f32 %v1096, %v1122
    %v1131 = vmul.f32 %v1123, 1.442695
    %v1132 = vpow.pop %v1131
    %v1133 = vmul.f32 %v1124, 1.442695
    %v1134 = vpow.pop %v1133
    %v1135 = vmul.f32 %v1125, 1.442695
    %v1136 = vpow.pop %v1135
    %v1137 = vmul.f32 %v1126, 1.442695
    %v1138 = vpow.pop %v1137
    %v1139 = vmul.f32 %v1127, 1.442695
    %v1140 = vpow.pop %v1139
    %v1141 = vmul.f32 %v1128, 1.442695
    %v1142 = vpow.pop %v1141
    %v1143 = vmul.f32 %v1129, 1.442695
    %v1144 = vpow.pop %v1143
    %v1145 = vmul.f32 %v1130, 1.442695
    %v1146 = vpow.pop %v1145
    %v1147 = vsel %vm585, %v1132, 0.0
    %1148 = vadd.xlane.f32.xlu0 %v1147
    %v1149 = vpop.xlane.xlu0 %1148
    %v1150 = vsel %vm585, %v1134, 0.0
    %1151 = vadd.xlane.f32.xlu0 %v1150
    %v1152 = vpop.xlane.xlu0 %1151
    %v1153 = vsel %vm585, %v1136, 0.0
    %1154 = vadd.xlane.f32.xlu0 %v1153
    %v1155 = vpop.xlane.xlu0 %1154
    %v1156 = vsel %vm585, %v1138, 0.0
    %1157 = vadd.xlane.f32.xlu0 %v1156
    %v1158 = vpop.xlane.xlu0 %1157
    %v1159 = vsel %vm585, %v1140, 0.0
    %1160 = vadd.xlane.f32.xlu0 %v1159
    %v1161 = vpop.xlane.xlu0 %1160
    %v1162 = vsel %vm585, %v1142, 0.0
    %1163 = vadd.xlane.f32.xlu0 %v1162
    %v1164 = vpop.xlane.xlu0 %1163
    %v1165 = vsel %vm585, %v1144, 0.0
    %1166 = vadd.xlane.f32.xlu0 %v1165
    %v1167 = vpop.xlane.xlu0 %1166
    %v1168 = vsel %vm585, %v1146, 0.0
    %1169 = vadd.xlane.f32.xlu0 %v1168
    %v1170 = vpop.xlane.xlu0 %1169
    %v1171 = vpack.c.bf16 %v1134, %v1132
    %v1172 = vpack.c.bf16 %v1138, %v1136
    %v1173 = vpack.c.bf16 %v1142, %v1140
    %v1174 = vpack.c.bf16 %v1146, %v1144
    %1175 = vrot.lane.b32.xlu0 %v711, 64
    %v1176 = vpop.permute.xlu0 %1175
    %1177 = vrot.lane.b32.xlu0 %v712, 64
    %v1178 = vpop.permute.xlu0 %1177
    %1179 = vrot.lane.b32.xlu0 %v713, 64
    %v1180 = vpop.permute.xlu0 %1179
    %1181 = vrot.lane.b32.xlu0 %v714, 64
    %v1182 = vpop.permute.xlu0 %1181
    %v1188 = vsel %vm585, %v1171, 0
    %v1191 = vsel %vm585, %v1172, 0
    %v1194 = vsel %vm585, %v1173, 0
    %v1197 = vsel %vm585, %v1174, 0
    %1199 = vmatprep.subr.bf16.mxu0 0
    %1200 = vmatpush1.bf16.msra.mxu0 %v1176
    %1201 = vmatprep.subr.bf16.mxu0 0
    %1202 = vmatpush1.bf16.msra.mxu0 %v1178
    %1203 = vmatprep.subr.bf16.mxu0 0
    %1204 = vmatpush1.bf16.msra.mxu0 %v1180
    %1205 = vmatprep.subr.bf16.mxu0 0
    %1206 = vmatpush1.bf16.msra.mxu0 %v1182
    %1207 = vmatprep.subr.bf16.mxu0 0
    %1208 = vmatpush1.bf16.msra.mxu0 0
    %1209 = vmatprep.subr.bf16.mxu0 0
    %1210 = vmatpush1.bf16.msra.mxu0 0
    %1211 = vmatprep.subr.bf16.mxu0 0
    %1212 = vmatpush1.bf16.msra.mxu0 0
    %1213 = vmatprep.subr.bf16.mxu0 0
    %1214 = vmatpush1.bf16.msra.mxu0 0
    %1215 = vmatprep.subr.bf16.mxu0 0
    %1216 = vmatpush1.bf16.msra.mxu0 0
    %1217 = vmatprep.subr.bf16.mxu0 0
    %1218 = vmatpush1.bf16.msra.mxu0 0
    %1219 = vmatprep.subr.bf16.mxu0 0
    %1220 = vmatpush1.bf16.msra.mxu0 0
    %1221 = vmatprep.subr.bf16.mxu0 0
    %1222 = vmatpush1.bf16.msra.mxu0 0
    %1223 = vmatprep.subr.bf16.mxu0 0
    %1224 = vmatpush1.bf16.msra.mxu0 0
    %1225 = vmatprep.subr.bf16.mxu0 0
    %1226 = vmatpush1.bf16.msra.mxu0 0
    %1227 = vmatprep.subr.bf16.mxu0 0
    %1228 = vmatpush1.bf16.msra.mxu0 0
    %1229 = vmatprep.subr.bf16.mxu0 0
    %1230 = vmatpush1.bf16.msra.mxu0 0
    %1231 = vmatprep.mubr.bf16.mxu0 0
    %1232 = vmatmul.mubr.bf16.gmra.mrb[0].mxu0 %v1188
    %v1233 = vpop.f32.mrb[0].mxu0
    %v1234 = vadd.f32 0.0, %v1233
    %v1235 = vpop.f32.mrb[0].mxu0
    %v1236 = vpop.f32.mrb[0].mxu0
    %v1237 = vadd.f32 0.0, %v1236
    %v1238 = vpop.f32.mrb[0].mxu0
    %1239 = vmatprep.mubr.bf16.mxu0 0
    %1240 = vmatmul.mubr.bf16.gmra.mrb[0].mxu0 %v1191
    %v1241 = vpop.f32.mrb[0].mxu0
    %v1242 = vadd.f32 0.0, %v1241
    %v1243 = vpop.f32.mrb[0].mxu0
    %v1244 = vpop.f32.mrb[0].mxu0
    %v1245 = vadd.f32 0.0, %v1244
    %v1246 = vpop.f32.mrb[0].mxu0
    %1247 = vmatprep.mubr.bf16.mxu0 0
    %1248 = vmatmul.mubr.bf16.gmra.mrb[0].mxu0 %v1194
    %v1249 = vpop.f32.mrb[0].mxu0
    %v1250 = vadd.f32 0.0, %v1249
    %v1251 = vpop.f32.mrb[0].mxu0
    %v1252 = vpop.f32.mrb[0].mxu0
    %v1253 = vadd.f32 0.0, %v1252
    %v1254 = vpop.f32.mrb[0].mxu0
    %1255 = vmatprep.mubr.bf16.mxu0 0
    %1256 = vmatmul.mubr.bf16.gmra.mrb[0].mxu0 %v1197
    %v1257 = vpop.f32.mrb[0].mxu0
    %v1258 = vadd.f32 0.0, %v1257
    %v1259 = vpop.f32.mrb[0].mxu0
    %v1260 = vpop.f32.mrb[0].mxu0
    %v1261 = vadd.f32 0.0, %v1260
    %v1262 = vpop.f32.mrb[0].mxu0
    %1263 = vdwg.mxu0
    %v1264 = vrcp.pop %v1149
    %v1265 = vrcp.pop %v1152
    %v1266 = vrcp.pop %v1155
    %v1267 = vrcp.pop %v1158
    %v1268 = vrcp.pop %v1161
    %v1269 = vrcp.pop %v1164
    %v1270 = vrcp.pop %v1167
    %v1271 = vrcp.pop %v1170
    %v1272 = vmul.f32 %v1234, %v1264
    %v1273 = vmul.f32 %v1237, %v1265
    %v1274 = vmul.f32 %v1242, %v1266
    %v1275 = vmul.f32 %v1245, %v1267
    %v1276 = vmul.f32 %v1250, %v1268
    %v1277 = vmul.f32 %v1253, %v1269
    %v1278 = vmul.f32 %v1258, %v1270
    %v1279 = vmul.f32 %v1261, %v1271
    %1296 = vrot.lane.b32.xlu0 %v645, 64
    %v1297 = vpop.permute.xlu0 %1296
    %1298 = vrot.lane.b32.xlu0 %v648, 64
    %v1299 = vpop.permute.xlu0 %1298
    %1300 = vrot.lane.b32.xlu0 %v653, 64
    %v1301 = vpop.permute.xlu0 %1300
    %1302 = vrot.lane.b32.xlu0 %v656, 64
    %v1303 = vpop.permute.xlu0 %1302
    %1304 = vrot.lane.b32.xlu0 %v661, 64
    %v1305 = vpop.permute.xlu0 %1304
    %1306 = vrot.lane.b32.xlu0 %v664, 64
    %v1307 = vpop.permute.xlu0 %1306
    %1308 = vrot.lane.b32.xlu0 %v669, 64
    %v1309 = vpop.permute.xlu0 %1308
    %1310 = vrot.lane.b32.xlu0 %v672, 64
    %v1311 = vpop.permute.xlu0 %1310
    %1312 = vrot.lane.b32.xlu0 %v677, 64
    %v1313 = vpop.permute.xlu0 %1312
    %1314 = vrot.lane.b32.xlu0 %v680, 64
    %v1315 = vpop.permute.xlu0 %1314
    %1316 = vrot.lane.b32.xlu0 %v685, 64
    %v1317 = vpop.permute.xlu0 %1316
    %1318 = vrot.lane.b32.xlu0 %v688, 64
    %v1319 = vpop.permute.xlu0 %1318
    %1320 = vrot.lane.b32.xlu0 %v693, 64
    %v1321 = vpop.permute.xlu0 %1320
    %1322 = vrot.lane.b32.xlu0 %v696, 64
    %v1323 = vpop.permute.xlu0 %1322
    %1324 = vrot.lane.b32.xlu0 %v701, 64
    %v1325 = vpop.permute.xlu0 %1324
    %1326 = vrot.lane.b32.xlu0 %v704, 64
    %v1327 = vpop.permute.xlu0 %1326
    %v1344 = vrot.slane %v1297, 7
    %v1345 = vrot.slane %v1299, 7
    %v1346 = vrot.slane %v1301, 7
    %v1347 = vrot.slane %v1303, 7
    %v1348 = vrot.slane %v1305, 7
    %v1349 = vrot.slane %v1307, 7
    %v1350 = vrot.slane %v1309, 7
    %v1351 = vrot.slane %v1311, 7
    %v1352 = vrot.slane %v1313, 7
    %v1353 = vrot.slane %v1315, 7
    %v1354 = vrot.slane %v1317, 7
    %v1355 = vrot.slane %v1319, 7
    %v1356 = vrot.slane %v1321, 7
    %v1357 = vrot.slane %v1323, 7
    %v1358 = vrot.slane %v1325, 7
    %v1359 = vrot.slane %v1327, 7
    %v1360 = vlaneseq
    %v1361 = vshrl.u32 %v1360, 7
    %vm1362 = vcmp.lt.s32.totalorder %v1361, 1
    %v1363 = vsel %vm1362, %v1358, %v1359
    %v1364 = vsel %vm1362, %v1357, %v1358
    %v1365 = vsel %vm1362, %v1356, %v1357
    %v1366 = vsel %vm1362, %v1355, %v1356
    %v1367 = vsel %vm1362, %v1354, %v1355
    %v1368 = vsel %vm1362, %v1353, %v1354
    %v1369 = vsel %vm1362, %v1352, %v1353
    %v1370 = vsel %vm1362, %v1351, %v1352
    %v1371 = vsel %vm1362, %v1350, %v1351
    %v1372 = vsel %vm1362, %v1349, %v1350
    %v1373 = vsel %vm1362, %v1348, %v1349
    %v1374 = vsel %vm1362, %v1347, %v1348
    %v1375 = vsel %vm1362, %v1346, %v1347
    %v1376 = vsel %vm1362, %v1345, %v1346
    %v1377 = vsel %vm1362, %v1344, %v1345
    %v1378 = vsel %vm1362, %v1359, %v1344
    %v1379 = vld [vmem:[#allocation7] sm:$0xff]
    %v1380 = vld [vmem:[#allocation7 + $0x8] sm:$0xff]
    %v1381 = vld [vmem:[#allocation7 + $0x10] sm:$0xff]
    %v1382 = vld [vmem:[#allocation7 + $0x18] sm:$0xff]
    %v1383 = vld [vmem:[#allocation7 + $0x20] sm:$0xff]
    %v1384 = vld [vmem:[#allocation7 + $0x28] sm:$0xff]
    %v1385 = vld [vmem:[#allocation7 + $0x30] sm:$0xff]
    %v1386 = vld [vmem:[#allocation7 + $0x38] sm:$0xff]
    %v1387 = vld [vmem:[#allocation7 + $0x40] sm:$0xff]
    %v1388 = vld [vmem:[#allocation7 + $0x48] sm:$0xff]
    %v1389 = vld [vmem:[#allocation7 + $0x50] sm:$0xff]
    %v1390 = vld [vmem:[#allocation7 + $0x58] sm:$0xff]
    %v1391 = vld [vmem:[#allocation7 + $0x60] sm:$0xff]
    %v1392 = vld [vmem:[#allocation7 + $0x68] sm:$0xff]
    %v1393 = vld [vmem:[#allocation7 + $0x70] sm:$0xff]
    %v1394 = vld [vmem:[#allocation7 + $0x78] sm:$0xff]
    %v1395 = vmul.f32 %v1363, %v1379
    %v1396 = vmul.f32 %v1378, %v1380
    %v1397 = vmul.f32 %v1377, %v1381
    %v1398 = vmul.f32 %v1376, %v1382
    %v1399 = vmul.f32 %v1375, %v1383
    %v1400 = vmul.f32 %v1374, %v1384
    %v1401 = vmul.f32 %v1373, %v1385
    %v1402 = vmul.f32 %v1372, %v1386
    %v1403 = vmul.f32 %v1371, %v1387
    %v1404 = vmul.f32 %v1370, %v1388
    %v1405 = vmul.f32 %v1369, %v1389
    %v1406 = vmul.f32 %v1368, %v1390
    %v1407 = vmul.f32 %v1367, %v1391
    %v1408 = vmul.f32 %v1366, %v1392
    %v1409 = vmul.f32 %v1365, %v1393
    %v1410 = vmul.f32 %v1364, %v1394
    %v1411 = vadd.f32 %v990, %v1395
    %v1412 = vadd.f32 %v991, %v1396
    %v1413 = vadd.f32 %v992, %v1397
    %v1414 = vadd.f32 %v993, %v1398
    %v1415 = vadd.f32 %v994, %v1399
    %v1416 = vadd.f32 %v995, %v1400
    %v1417 = vadd.f32 %v996, %v1401
    %v1418 = vadd.f32 %v997, %v1402
    %v1419 = vadd.f32 %v1272, %v1403
    %v1420 = vadd.f32 %v1273, %v1404
    %v1421 = vadd.f32 %v1274, %v1405
    %v1422 = vadd.f32 %v1275, %v1406
    %v1423 = vadd.f32 %v1276, %v1407
    %v1424 = vadd.f32 %v1277, %v1408
    %v1425 = vadd.f32 %v1278, %v1409
    %v1426 = vadd.f32 %v1279, %v1410
    %s1427 = scalar_lea.vmem [#allocation7], 128
    %v1428 = vld [vmem:[%s1427] sm:$0xff]
    %v1429 = vld [vmem:[%s1427 + $0x8] sm:$0xff]
    %v1430 = vld [vmem:[%s1427 + $0x10] sm:$0xff]
    %v1431 = vld [vmem:[%s1427 + $0x18] sm:$0xff]
    %v1432 = vld [vmem:[%s1427 + $0x20] sm:$0xff]
    %v1433 = vld [vmem:[%s1427 + $0x28] sm:$0xff]
    %v1434 = vld [vmem:[%s1427 + $0x30] sm:$0xff]
    %v1435 = vld [vmem:[%s1427 + $0x38] sm:$0xff]
    %v1436 = vld [vmem:[%s1427 + $0x40] sm:$0xff]
    %v1437 = vld [vmem:[%s1427 + $0x48] sm:$0xff]
    %v1438 = vld [vmem:[%s1427 + $0x50] sm:$0xff]
    %v1439 = vld [vmem:[%s1427 + $0x58] sm:$0xff]
    %v1440 = vld [vmem:[%s1427 + $0x60] sm:$0xff]
    %v1441 = vld [vmem:[%s1427 + $0x68] sm:$0xff]
    %v1442 = vld [vmem:[%s1427 + $0x70] sm:$0xff]
    %v1443 = vld [vmem:[%s1427 + $0x78] sm:$0xff]
    %v1444 = vmul.f32 %v1327, %v1428
    %v1445 = vmul.f32 %v1297, %v1429
    %v1446 = vmul.f32 %v1299, %v1430
    %v1447 = vmul.f32 %v1301, %v1431
    %v1448 = vmul.f32 %v1303, %v1432
    %v1449 = vmul.f32 %v1305, %v1433
    %v1450 = vmul.f32 %v1307, %v1434
    %v1451 = vmul.f32 %v1309, %v1435
    %v1452 = vmul.f32 %v1311, %v1436
    %v1453 = vmul.f32 %v1313, %v1437
    %v1454 = vmul.f32 %v1315, %v1438
    %v1455 = vmul.f32 %v1317, %v1439
    %v1456 = vmul.f32 %v1319, %v1440
    %v1457 = vmul.f32 %v1321, %v1441
    %v1458 = vmul.f32 %v1323, %v1442
    %v1459 = vmul.f32 %v1325, %v1443
    %v1460 = vadd.f32 %v1411, %v1444
    %v1461 = vadd.f32 %v1412, %v1445
    %v1462 = vadd.f32 %v1413, %v1446
    %v1463 = vadd.f32 %v1414, %v1447
    %v1464 = vadd.f32 %v1415, %v1448
    %v1465 = vadd.f32 %v1416, %v1449
    %v1466 = vadd.f32 %v1417, %v1450
    %v1467 = vadd.f32 %v1418, %v1451
    %v1468 = vadd.f32 %v1419, %v1452
    %v1469 = vadd.f32 %v1420, %v1453
    %v1470 = vadd.f32 %v1421, %v1454
    %v1471 = vadd.f32 %v1422, %v1455
    %v1472 = vadd.f32 %v1423, %v1456
    %v1473 = vadd.f32 %v1424, %v1457
    %v1474 = vadd.f32 %v1425, %v1458
    %v1475 = vadd.f32 %v1426, %v1459
    %v1476 = vrot.slane %v1297, 1
    %v1477 = vrot.slane %v1299, 1
    %v1478 = vrot.slane %v1301, 1
    %v1479 = vrot.slane %v1303, 1
    %v1480 = vrot.slane %v1305, 1
    %v1481 = vrot.slane %v1307, 1
    %v1482 = vrot.slane %v1309, 1
    %v1483 = vrot.slane %v1311, 1
    %v1484 = vrot.slane %v1313, 1
    %v1485 = vrot.slane %v1315, 1
    %v1486 = vrot.slane %v1317, 1
    %v1487 = vrot.slane %v1319, 1
    %v1488 = vrot.slane %v1321, 1
    %v1489 = vrot.slane %v1323, 1
    %v1490 = vrot.slane %v1325, 1
    %v1491 = vrot.slane %v1327, 1
    %vm1492 = vcmp.lt.s32.totalorder %v1361, 7
    %v1493 = vsel %vm1492, %v1490, %v1491
    %v1494 = vsel %vm1492, %v1489, %v1490
    %v1495 = vsel %vm1492, %v1488, %v1489
    %v1496 = vsel %vm1492, %v1487, %v1488
    %v1497 = vsel %vm1492, %v1486, %v1487
    %v1498 = vsel %vm1492, %v1485, %v1486
    %v1499 = vsel %vm1492, %v1484, %v1485
    %v1500 = vsel %vm1492, %v1483, %v1484
    %v1501 = vsel %vm1492, %v1482, %v1483
    %v1502 = vsel %vm1492, %v1481, %v1482
    %v1503 = vsel %vm1492, %v1480, %v1481
    %v1504 = vsel %vm1492, %v1479, %v1480
    %v1505 = vsel %vm1492, %v1478, %v1479
    %v1506 = vsel %vm1492, %v1477, %v1478
    %v1507 = vsel %vm1492, %v1476, %v1477
    %v1508 = vsel %vm1492, %v1491, %v1476
    %s1509 = scalar_lea.vmem [#allocation7], 256
    %v1510 = vld [vmem:[%s1509] sm:$0xff]
    %v1511 = vld [vmem:[%s1509 + $0x8] sm:$0xff]
    %v1512 = vld [vmem:[%s1509 + $0x10] sm:$0xff]
    %v1513 = vld [vmem:[%s1509 + $0x18] sm:$0xff]
    %v1514 = vld [vmem:[%s1509 + $0x20] sm:$0xff]
    %v1515 = vld [vmem:[%s1509 + $0x28] sm:$0xff]
    %v1516 = vld [vmem:[%s1509 + $0x30] sm:$0xff]
    %v1517 = vld [vmem:[%s1509 + $0x38] sm:$0xff]
    %v1518 = vld [vmem:[%s1509 + $0x40] sm:$0xff]
    %v1519 = vld [vmem:[%s1509 + $0x48] sm:$0xff]
    %v1520 = vld [vmem:[%s1509 + $0x50] sm:$0xff]
    %v1521 = vld [vmem:[%s1509 + $0x58] sm:$0xff]
    %v1522 = vld [vmem:[%s1509 + $0x60] sm:$0xff]
    %v1523 = vld [vmem:[%s1509 + $0x68] sm:$0xff]
    %v1524 = vld [vmem:[%s1509 + $0x70] sm:$0xff]
    %v1525 = vld [vmem:[%s1509 + $0x78] sm:$0xff]
    %v1526 = vmul.f32 %v1508, %v1510
    %v1527 = vmul.f32 %v1507, %v1511
    %v1528 = vmul.f32 %v1506, %v1512
    %v1529 = vmul.f32 %v1505, %v1513
    %v1530 = vmul.f32 %v1504, %v1514
    %v1531 = vmul.f32 %v1503, %v1515
    %v1532 = vmul.f32 %v1502, %v1516
    %v1533 = vmul.f32 %v1501, %v1517
    %v1534 = vmul.f32 %v1500, %v1518
    %v1535 = vmul.f32 %v1499, %v1519
    %v1536 = vmul.f32 %v1498, %v1520
    %v1537 = vmul.f32 %v1497, %v1521
    %v1538 = vmul.f32 %v1496, %v1522
    %v1539 = vmul.f32 %v1495, %v1523
    %v1540 = vmul.f32 %v1494, %v1524
    %v1541 = vmul.f32 %v1493, %v1525
    %v1542 = vadd.f32 %v1460, %v1526
    %v1543 = vadd.f32 %v1461, %v1527
    %v1544 = vadd.f32 %v1462, %v1528
    %v1545 = vadd.f32 %v1463, %v1529
    %v1546 = vadd.f32 %v1464, %v1530
    %v1547 = vadd.f32 %v1465, %v1531
    %v1548 = vadd.f32 %v1466, %v1532
    %v1549 = vadd.f32 %v1467, %v1533
    %v1550 = vadd.f32 %v1468, %v1534
    %v1551 = vadd.f32 %v1469, %v1535
    %v1552 = vadd.f32 %v1470, %v1536
    %v1553 = vadd.f32 %v1471, %v1537
    %v1554 = vadd.f32 %v1472, %v1538
    %v1555 = vadd.f32 %v1473, %v1539
    %v1556 = vadd.f32 %v1474, %v1540
    %v1557 = vadd.f32 %v1475, %v1541
    %s1558 = scalar_lea.vmem [#allocation7], 384
    %v1559 = vld [vmem:[%s1558] sm:$0xff]
    %v1560 = vld [vmem:[%s1558 + $0x8] sm:$0xff]
    %v1561 = vld [vmem:[%s1558 + $0x10] sm:$0xff]
    %v1562 = vld [vmem:[%s1558 + $0x18] sm:$0xff]
    %v1563 = vld [vmem:[%s1558 + $0x20] sm:$0xff]
    %v1564 = vld [vmem:[%s1558 + $0x28] sm:$0xff]
    %v1565 = vld [vmem:[%s1558 + $0x30] sm:$0xff]
    %v1566 = vld [vmem:[%s1558 + $0x38] sm:$0xff]
    %v1567 = vld [vmem:[%s1558 + $0x40] sm:$0xff]
    %v1568 = vld [vmem:[%s1558 + $0x48] sm:$0xff]
    %v1569 = vld [vmem:[%s1558 + $0x50] sm:$0xff]
    %v1570 = vld [vmem:[%s1558 + $0x58] sm:$0xff]
    %v1571 = vld [vmem:[%s1558 + $0x60] sm:$0xff]
    %v1572 = vld [vmem:[%s1558 + $0x68] sm:$0xff]
    %v1573 = vld [vmem:[%s1558 + $0x70] sm:$0xff]
    %v1574 = vld [vmem:[%s1558 + $0x78] sm:$0xff]
    %v1575 = vmul.f32 %v1378, %v1559
    %v1576 = vmul.f32 %v1377, %v1560
    %v1577 = vmul.f32 %v1376, %v1561
    %v1578 = vmul.f32 %v1375, %v1562
    %v1579 = vmul.f32 %v1374, %v1563
    %v1580 = vmul.f32 %v1373, %v1564
    %v1581 = vmul.f32 %v1372, %v1565
    %v1582 = vmul.f32 %v1371, %v1566
    %v1583 = vmul.f32 %v1370, %v1567
    %v1584 = vmul.f32 %v1369, %v1568
    %v1585 = vmul.f32 %v1368, %v1569
    %v1586 = vmul.f32 %v1367, %v1570
    %v1587 = vmul.f32 %v1366, %v1571
    %v1588 = vmul.f32 %v1365, %v1572
    %v1589 = vmul.f32 %v1364, %v1573
    %v1590 = vmul.f32 %v1363, %v1574
    %v1591 = vadd.f32 %v1542, %v1575
    %v1592 = vadd.f32 %v1543, %v1576
    %v1593 = vadd.f32 %v1544, %v1577
    %v1594 = vadd.f32 %v1545, %v1578
    %v1595 = vadd.f32 %v1546, %v1579
    %v1596 = vadd.f32 %v1547, %v1580
    %v1597 = vadd.f32 %v1548, %v1581
    %v1598 = vadd.f32 %v1549, %v1582
    %v1599 = vadd.f32 %v1550, %v1583
    %v1600 = vadd.f32 %v1551, %v1584
    %v1601 = vadd.f32 %v1552, %v1585
    %v1602 = vadd.f32 %v1553, %v1586
    %v1603 = vadd.f32 %v1554, %v1587
    %v1604 = vadd.f32 %v1555, %v1588
    %v1605 = vadd.f32 %v1556, %v1589
    %v1606 = vadd.f32 %v1557, %v1590
    %s1607 = scalar_lea.vmem [#allocation7], 512
    %v1608 = vld [vmem:[%s1607] sm:$0xff]
    %v1609 = vld [vmem:[%s1607 + $0x8] sm:$0xff]
    %v1610 = vld [vmem:[%s1607 + $0x10] sm:$0xff]
    %v1611 = vld [vmem:[%s1607 + $0x18] sm:$0xff]
    %v1612 = vld [vmem:[%s1607 + $0x20] sm:$0xff]
    %v1613 = vld [vmem:[%s1607 + $0x28] sm:$0xff]
    %v1614 = vld [vmem:[%s1607 + $0x30] sm:$0xff]
    %v1615 = vld [vmem:[%s1607 + $0x38] sm:$0xff]
    %v1616 = vld [vmem:[%s1607 + $0x40] sm:$0xff]
    %v1617 = vld [vmem:[%s1607 + $0x48] sm:$0xff]
    %v1618 = vld [vmem:[%s1607 + $0x50] sm:$0xff]
    %v1619 = vld [vmem:[%s1607 + $0x58] sm:$0xff]
    %v1620 = vld [vmem:[%s1607 + $0x60] sm:$0xff]
    %v1621 = vld [vmem:[%s1607 + $0x68] sm:$0xff]
    %v1622 = vld [vmem:[%s1607 + $0x70] sm:$0xff]
    %v1623 = vld [vmem:[%s1607 + $0x78] sm:$0xff]
    %1640 = vrot.lane.b32.xlu0 %v1608, 64
    %v1641 = vpop.permute.xlu0 %1640
    %1642 = vrot.lane.b32.xlu0 %v1609, 64
    %v1643 = vpop.permute.xlu0 %1642
    %1644 = vrot.lane.b32.xlu0 %v1610, 64
    %v1645 = vpop.permute.xlu0 %1644
    %1646 = vrot.lane.b32.xlu0 %v1611, 64
    %v1647 = vpop.permute.xlu0 %1646
    %1648 = vrot.lane.b32.xlu0 %v1612, 64
    %v1649 = vpop.permute.xlu0 %1648
    %1650 = vrot.lane.b32.xlu0 %v1613, 64
    %v1651 = vpop.permute.xlu0 %1650
    %1652 = vrot.lane.b32.xlu0 %v1614, 64
    %v1653 = vpop.permute.xlu0 %1652
    %1654 = vrot.lane.b32.xlu0 %v1615, 64
    %v1655 = vpop.permute.xlu0 %1654
    %1656 = vrot.lane.b32.xlu0 %v1616, 64
    %v1657 = vpop.permute.xlu0 %1656
    %1658 = vrot.lane.b32.xlu0 %v1617, 64
    %v1659 = vpop.permute.xlu0 %1658
    %1660 = vrot.lane.b32.xlu0 %v1618, 64
    %v1661 = vpop.permute.xlu0 %1660
    %1662 = vrot.lane.b32.xlu0 %v1619, 64
    %v1663 = vpop.permute.xlu0 %1662
    %1664 = vrot.lane.b32.xlu0 %v1620, 64
    %v1665 = vpop.permute.xlu0 %1664
    %1666 = vrot.lane.b32.xlu0 %v1621, 64
    %v1667 = vpop.permute.xlu0 %1666
    %1668 = vrot.lane.b32.xlu0 %v1622, 64
    %v1669 = vpop.permute.xlu0 %1668
    %1670 = vrot.lane.b32.xlu0 %v1623, 64
    %v1671 = vpop.permute.xlu0 %1670
    %v1688 = vmul.f32 %v645, %v1641
    %v1689 = vmul.f32 %v648, %v1643
    %v1690 = vmul.f32 %v653, %v1645
    %v1691 = vmul.f32 %v656, %v1647
    %v1692 = vmul.f32 %v661, %v1649
    %v1693 = vmul.f32 %v664, %v1651
    %v1694 = vmul.f32 %v669, %v1653
    %v1695 = vmul.f32 %v672, %v1655
    %v1696 = vmul.f32 %v677, %v1657
    %v1697 = vmul.f32 %v680, %v1659
    %v1698 = vmul.f32 %v685, %v1661
    %v1699 = vmul.f32 %v688, %v1663
    %v1700 = vmul.f32 %v693, %v1665
    %v1701 = vmul.f32 %v696, %v1667
    %v1702 = vmul.f32 %v701, %v1669
    %v1703 = vmul.f32 %v704, %v1671
    %1720 = vrot.lane.b32.xlu0 %v1688, 64
    %v1721 = vpop.permute.xlu0 %1720
    %1722 = vrot.lane.b32.xlu0 %v1689, 64
    %v1723 = vpop.permute.xlu0 %1722
    %1724 = vrot.lane.b32.xlu0 %v1690, 64
    %v1725 = vpop.permute.xlu0 %1724
    %1726 = vrot.lane.b32.xlu0 %v1691, 64
    %v1727 = vpop.permute.xlu0 %1726
    %1728 = vrot.lane.b32.xlu0 %v1692, 64
    %v1729 = vpop.permute.xlu0 %1728
    %1730 = vrot.lane.b32.xlu0 %v1693, 64
    %v1731 = vpop.permute.xlu0 %1730
    %1732 = vrot.lane.b32.xlu0 %v1694, 64
    %v1733 = vpop.permute.xlu0 %1732
    %1734 = vrot.lane.b32.xlu0 %v1695, 64
    %v1735 = vpop.permute.xlu0 %1734
    %1736 = vrot.lane.b32.xlu0 %v1696, 64
    %v1737 = vpop.permute.xlu0 %1736
    %1738 = vrot.lane.b32.xlu0 %v1697, 64
    %v1739 = vpop.permute.xlu0 %1738
    %1740 = vrot.lane.b32.xlu0 %v1698, 64
    %v1741 = vpop.permute.xlu0 %1740
    %1742 = vrot.lane.b32.xlu0 %v1699, 64
    %v1743 = vpop.permute.xlu0 %1742
    %1744 = vrot.lane.b32.xlu0 %v1700, 64
    %v1745 = vpop.permute.xlu0 %1744
    %1746 = vrot.lane.b32.xlu0 %v1701, 64
    %v1747 = vpop.permute.xlu0 %1746
    %1748 = vrot.lane.b32.xlu0 %v1702, 64
    %v1749 = vpop.permute.xlu0 %1748
    %1750 = vrot.lane.b32.xlu0 %v1703, 64
    %v1751 = vpop.permute.xlu0 %1750
    %v1768 = vadd.f32 %v1591, %v1721
    %v1769 = vadd.f32 %v1592, %v1723
    %v1770 = vadd.f32 %v1593, %v1725
    %v1771 = vadd.f32 %v1594, %v1727
    %v1772 = vadd.f32 %v1595, %v1729
    %v1773 = vadd.f32 %v1596, %v1731
    %v1774 = vadd.f32 %v1597, %v1733
    %v1775 = vadd.f32 %v1598, %v1735
    %v1776 = vadd.f32 %v1599, %v1737
    %v1777 = vadd.f32 %v1600, %v1739
    %v1778 = vadd.f32 %v1601, %v1741
    %v1779 = vadd.f32 %v1602, %v1743
    %v1780 = vadd.f32 %v1603, %v1745
    %v1781 = vadd.f32 %v1604, %v1747
    %v1782 = vadd.f32 %v1605, %v1749
    %v1783 = vadd.f32 %v1606, %v1751
    %s1784 = scalar_lea.vmem [#allocation7], 640
    %v1785 = vld [vmem:[%s1784] sm:$0xff]
    %v1786 = vld [vmem:[%s1784 + $0x8] sm:$0xff]
    %v1787 = vld [vmem:[%s1784 + $0x10] sm:$0xff]
    %v1788 = vld [vmem:[%s1784 + $0x18] sm:$0xff]
    %v1789 = vld [vmem:[%s1784 + $0x20] sm:$0xff]
    %v1790 = vld [vmem:[%s1784 + $0x28] sm:$0xff]
    %v1791 = vld [vmem:[%s1784 + $0x30] sm:$0xff]
    %v1792 = vld [vmem:[%s1784 + $0x38] sm:$0xff]
    %v1793 = vld [vmem:[%s1784 + $0x40] sm:$0xff]
    %v1794 = vld [vmem:[%s1784 + $0x48] sm:$0xff]
    %v1795 = vld [vmem:[%s1784 + $0x50] sm:$0xff]
    %v1796 = vld [vmem:[%s1784 + $0x58] sm:$0xff]
    %v1797 = vld [vmem:[%s1784 + $0x60] sm:$0xff]
    %v1798 = vld [vmem:[%s1784 + $0x68] sm:$0xff]
    %v1799 = vld [vmem:[%s1784 + $0x70] sm:$0xff]
    %v1800 = vld [vmem:[%s1784 + $0x78] sm:$0xff]
    %v1801 = vmul.f32 %v1507, %v1785
    %v1802 = vmul.f32 %v1506, %v1786
    %v1803 = vmul.f32 %v1505, %v1787
    %v1804 = vmul.f32 %v1504, %v1788
    %v1805 = vmul.f32 %v1503, %v1789
    %v1806 = vmul.f32 %v1502, %v1790
    %v1807 = vmul.f32 %v1501, %v1791
    %v1808 = vmul.f32 %v1500, %v1792
    %v1809 = vmul.f32 %v1499, %v1793
    %v1810 = vmul.f32 %v1498, %v1794
    %v1811 = vmul.f32 %v1497, %v1795
    %v1812 = vmul.f32 %v1496, %v1796
    %v1813 = vmul.f32 %v1495, %v1797
    %v1814 = vmul.f32 %v1494, %v1798
    %v1815 = vmul.f32 %v1493, %v1799
    %v1816 = vmul.f32 %v1508, %v1800
    %v1817 = vadd.f32 %v1768, %v1801
    %v1818 = vadd.f32 %v1769, %v1802
    %v1819 = vadd.f32 %v1770, %v1803
    %v1820 = vadd.f32 %v1771, %v1804
    %v1821 = vadd.f32 %v1772, %v1805
    %v1822 = vadd.f32 %v1773, %v1806
    %v1823 = vadd.f32 %v1774, %v1807
    %v1824 = vadd.f32 %v1775, %v1808
    %v1825 = vadd.f32 %v1776, %v1809
    %v1826 = vadd.f32 %v1777, %v1810
    %v1827 = vadd.f32 %v1778, %v1811
    %v1828 = vadd.f32 %v1779, %v1812
    %v1829 = vadd.f32 %v1780, %v1813
    %v1830 = vadd.f32 %v1781, %v1814
    %v1831 = vadd.f32 %v1782, %v1815
    %v1832 = vadd.f32 %v1783, %v1816
    %s1833 = scalar_lea.vmem [#allocation7], 768
    %v1834 = vld [vmem:[%s1833] sm:$0xff]
    %v1835 = vld [vmem:[%s1833 + $0x8] sm:$0xff]
    %v1836 = vld [vmem:[%s1833 + $0x10] sm:$0xff]
    %v1837 = vld [vmem:[%s1833 + $0x18] sm:$0xff]
    %v1838 = vld [vmem:[%s1833 + $0x20] sm:$0xff]
    %v1839 = vld [vmem:[%s1833 + $0x28] sm:$0xff]
    %v1840 = vld [vmem:[%s1833 + $0x30] sm:$0xff]
    %v1841 = vld [vmem:[%s1833 + $0x38] sm:$0xff]
    %v1842 = vld [vmem:[%s1833 + $0x40] sm:$0xff]
    %v1843 = vld [vmem:[%s1833 + $0x48] sm:$0xff]
    %v1844 = vld [vmem:[%s1833 + $0x50] sm:$0xff]
    %v1845 = vld [vmem:[%s1833 + $0x58] sm:$0xff]
    %v1846 = vld [vmem:[%s1833 + $0x60] sm:$0xff]
    %v1847 = vld [vmem:[%s1833 + $0x68] sm:$0xff]
    %v1848 = vld [vmem:[%s1833 + $0x70] sm:$0xff]
    %v1849 = vld [vmem:[%s1833 + $0x78] sm:$0xff]
    %v1850 = vmul.f32 %v1377, %v1834
    %v1851 = vmul.f32 %v1376, %v1835
    %v1852 = vmul.f32 %v1375, %v1836
    %v1853 = vmul.f32 %v1374, %v1837
    %v1854 = vmul.f32 %v1373, %v1838
    %v1855 = vmul.f32 %v1372, %v1839
    %v1856 = vmul.f32 %v1371, %v1840
    %v1857 = vmul.f32 %v1370, %v1841
    %v1858 = vmul.f32 %v1369, %v1842
    %v1859 = vmul.f32 %v1368, %v1843
    %v1860 = vmul.f32 %v1367, %v1844
    %v1861 = vmul.f32 %v1366, %v1845
    %v1862 = vmul.f32 %v1365, %v1846
    %v1863 = vmul.f32 %v1364, %v1847
    %v1864 = vmul.f32 %v1363, %v1848
    %v1865 = vmul.f32 %v1378, %v1849
    %v1866 = vadd.f32 %v1817, %v1850
    %v1867 = vadd.f32 %v1818, %v1851
    %v1868 = vadd.f32 %v1819, %v1852
    %v1869 = vadd.f32 %v1820, %v1853
    %v1870 = vadd.f32 %v1821, %v1854
    %v1871 = vadd.f32 %v1822, %v1855
    %v1872 = vadd.f32 %v1823, %v1856
    %v1873 = vadd.f32 %v1824, %v1857
    %v1874 = vadd.f32 %v1825, %v1858
    %v1875 = vadd.f32 %v1826, %v1859
    %v1876 = vadd.f32 %v1827, %v1860
    %v1877 = vadd.f32 %v1828, %v1861
    %v1878 = vadd.f32 %v1829, %v1862
    %v1879 = vadd.f32 %v1830, %v1863
    %v1880 = vadd.f32 %v1831, %v1864
    %v1881 = vadd.f32 %v1832, %v1865
    %s1882 = scalar_lea.vmem [#allocation7], 896
    %v1883 = vld [vmem:[%s1882] sm:$0xff]
    %v1884 = vld [vmem:[%s1882 + $0x8] sm:$0xff]
    %v1885 = vld [vmem:[%s1882 + $0x10] sm:$0xff]
    %v1886 = vld [vmem:[%s1882 + $0x18] sm:$0xff]
    %v1887 = vld [vmem:[%s1882 + $0x20] sm:$0xff]
    %v1888 = vld [vmem:[%s1882 + $0x28] sm:$0xff]
    %v1889 = vld [vmem:[%s1882 + $0x30] sm:$0xff]
    %v1890 = vld [vmem:[%s1882 + $0x38] sm:$0xff]
    %v1891 = vld [vmem:[%s1882 + $0x40] sm:$0xff]
    %v1892 = vld [vmem:[%s1882 + $0x48] sm:$0xff]
    %v1893 = vld [vmem:[%s1882 + $0x50] sm:$0xff]
    %v1894 = vld [vmem:[%s1882 + $0x58] sm:$0xff]
    %v1895 = vld [vmem:[%s1882 + $0x60] sm:$0xff]
    %v1896 = vld [vmem:[%s1882 + $0x68] sm:$0xff]
    %v1897 = vld [vmem:[%s1882 + $0x70] sm:$0xff]
    %v1898 = vld [vmem:[%s1882 + $0x78] sm:$0xff]
    %v1899 = vmul.f32 %v1299, %v1883
    %v1900 = vmul.f32 %v1301, %v1884
    %v1901 = vmul.f32 %v1303, %v1885
    %v1902 = vmul.f32 %v1305, %v1886
    %v1903 = vmul.f32 %v1307, %v1887
    %v1904 = vmul.f32 %v1309, %v1888
    %v1905 = vmul.f32 %v1311, %v1889
    %v1906 = vmul.f32 %v1313, %v1890
    %v1907 = vmul.f32 %v1315, %v1891
    %v1908 = vmul.f32 %v1317, %v1892
    %v1909 = vmul.f32 %v1319, %v1893
    %v1910 = vmul.f32 %v1321, %v1894
    %v1911 = vmul.f32 %v1323, %v1895
    %v1912 = vmul.f32 %v1325, %v1896
    %v1913 = vmul.f32 %v1327, %v1897
    %v1914 = vmul.f32 %v1297, %v1898
    %v1915 = vadd.f32 %v1866, %v1899
    %v1916 = vadd.f32 %v1867, %v1900
    %v1917 = vadd.f32 %v1868, %v1901
    %v1918 = vadd.f32 %v1869, %v1902
    %v1919 = vadd.f32 %v1870, %v1903
    %v1920 = vadd.f32 %v1871, %v1904
    %v1921 = vadd.f32 %v1872, %v1905
    %v1922 = vadd.f32 %v1873, %v1906
    %v1923 = vadd.f32 %v1874, %v1907
    %v1924 = vadd.f32 %v1875, %v1908
    %v1925 = vadd.f32 %v1876, %v1909
    %v1926 = vadd.f32 %v1877, %v1910
    %v1927 = vadd.f32 %v1878, %v1911
    %v1928 = vadd.f32 %v1879, %v1912
    %v1929 = vadd.f32 %v1880, %v1913
    %v1930 = vadd.f32 %v1881, %v1914
    %s1931 = scalar_lea.vmem [#allocation7], 1024
    %v1932 = vld [vmem:[%s1931] sm:$0xff]
    %v1933 = vld [vmem:[%s1931 + $0x8] sm:$0xff]
    %v1934 = vld [vmem:[%s1931 + $0x10] sm:$0xff]
    %v1935 = vld [vmem:[%s1931 + $0x18] sm:$0xff]
    %v1936 = vld [vmem:[%s1931 + $0x20] sm:$0xff]
    %v1937 = vld [vmem:[%s1931 + $0x28] sm:$0xff]
    %v1938 = vld [vmem:[%s1931 + $0x30] sm:$0xff]
    %v1939 = vld [vmem:[%s1931 + $0x38] sm:$0xff]
    %v1940 = vld [vmem:[%s1931 + $0x40] sm:$0xff]
    %v1941 = vld [vmem:[%s1931 + $0x48] sm:$0xff]
    %v1942 = vld [vmem:[%s1931 + $0x50] sm:$0xff]
    %v1943 = vld [vmem:[%s1931 + $0x58] sm:$0xff]
    %v1944 = vld [vmem:[%s1931 + $0x60] sm:$0xff]
    %v1945 = vld [vmem:[%s1931 + $0x68] sm:$0xff]
    %v1946 = vld [vmem:[%s1931 + $0x70] sm:$0xff]
    %v1947 = vld [vmem:[%s1931 + $0x78] sm:$0xff]
    %v1948 = vmul.f32 %v1506, %v1932
    %v1949 = vmul.f32 %v1505, %v1933
    %v1950 = vmul.f32 %v1504, %v1934
    %v1951 = vmul.f32 %v1503, %v1935
    %v1952 = vmul.f32 %v1502, %v1936
    %v1953 = vmul.f32 %v1501, %v1937
    %v1954 = vmul.f32 %v1500, %v1938
    %v1955 = vmul.f32 %v1499, %v1939
    %v1956 = vmul.f32 %v1498, %v1940
    %v1957 = vmul.f32 %v1497, %v1941
    %v1958 = vmul.f32 %v1496, %v1942
    %v1959 = vmul.f32 %v1495, %v1943
    %v1960 = vmul.f32 %v1494, %v1944
    %v1961 = vmul.f32 %v1493, %v1945
    %v1962 = vmul.f32 %v1508, %v1946
    %v1963 = vmul.f32 %v1507, %v1947
    %v1964 = vadd.f32 %v1915, %v1948
    %v1965 = vadd.f32 %v1916, %v1949
    %v1966 = vadd.f32 %v1917, %v1950
    %v1967 = vadd.f32 %v1918, %v1951
    %v1968 = vadd.f32 %v1919, %v1952
    %v1969 = vadd.f32 %v1920, %v1953
    %v1970 = vadd.f32 %v1921, %v1954
    %v1971 = vadd.f32 %v1922, %v1955
    %v1972 = vadd.f32 %v1923, %v1956
    %v1973 = vadd.f32 %v1924, %v1957
    %v1974 = vadd.f32 %v1925, %v1958
    %v1975 = vadd.f32 %v1926, %v1959
    %v1976 = vadd.f32 %v1927, %v1960
    %v1977 = vadd.f32 %v1928, %v1961
    %v1978 = vadd.f32 %v1929, %v1962
    %v1979 = vadd.f32 %v1930, %v1963
    %v1980 = vld [vmem:[%s6] sm:$0x1]
    %v1982 = vlaneseq
    %v1983 = vshrl.u32 %v1982, 7
    %v1984 = vsub.s32 0, %v1983
    %v1985 = vrot.slane %v1980, %v1984
    %v1987 = vadd.f32 %v1964, %v1985
    %v1988 = vadd.f32 %v1965, %v1985
    %v1989 = vadd.f32 %v1966, %v1985
    %v1990 = vadd.f32 %v1967, %v1985
    %v1991 = vadd.f32 %v1968, %v1985
    %v1992 = vadd.f32 %v1969, %v1985
    %v1993 = vadd.f32 %v1970, %v1985
    %v1994 = vadd.f32 %v1971, %v1985
    %v1995 = vadd.f32 %v1972, %v1985
    %v1996 = vadd.f32 %v1973, %v1985
    %v1997 = vadd.f32 %v1974, %v1985
    %v1998 = vadd.f32 %v1975, %v1985
    %v1999 = vadd.f32 %v1976, %v1985
    %v2000 = vadd.f32 %v1977, %v1985
    %v2001 = vadd.f32 %v1978, %v1985
    %v2002 = vadd.f32 %v1979, %v1985
    %v2003 = vpack.c.bf16 %v1988, %v1987
    %v2004 = vpack.c.bf16 %v1990, %v1989
    %v2005 = vpack.c.bf16 %v1992, %v1991
    %v2006 = vpack.c.bf16 %v1994, %v1993
    %v2007 = vpack.c.bf16 %v1996, %v1995
    %v2008 = vpack.c.bf16 %v1998, %v1997
    %v2009 = vpack.c.bf16 %v2000, %v1999
    %v2010 = vpack.c.bf16 %v2002, %v2001
    %v2011 = vld [vmem:[%s7] sm:$0xf]
    %v2012 = vld [vmem:[%s7 + $0x4] sm:$0xf]
    %v2013 = vld [vmem:[%s7 + $0x8] sm:$0xf]
    %v2014 = vld [vmem:[%s7 + $0xc] sm:$0xf]
    %v2015 = vld [vmem:[%s7 + $0x10] sm:$0xf]
    %v2016 = vld [vmem:[%s7 + $0x14] sm:$0xf]
    %v2017 = vld [vmem:[%s7 + $0x18] sm:$0xf]
    %v2018 = vld [vmem:[%s7 + $0x1c] sm:$0xf]
    %v2019 = vld [vmem:[%s8] sm:$0x1]
    %v2021 = vlaneseq
    %v2022 = vshrl.u32 %v2021, 7
    %v2023 = vsub.s32 0, %v2022
    %v2024 = vrot.slane %v2019, %v2023
    %v2034 = vunpack.c.l.b16 %v2011
    %v2035 = vunpack.c.l.b16 %v2012
    %v2036 = vunpack.c.l.b16 %v2013
    %v2037 = vunpack.c.l.b16 %v2014
    %v2038 = vunpack.c.l.b16 %v2015
    %v2039 = vunpack.c.l.b16 %v2016
    %v2040 = vunpack.c.l.b16 %v2017
    %v2041 = vunpack.c.l.b16 %v2018
    %v2042 = vpack.c.b16 %v2035, %v2034
    %v2043 = vpack.c.b16 %v2037, %v2036
    %v2044 = vpack.c.b16 %v2039, %v2038
    %v2045 = vpack.c.b16 %v2041, %v2040
    %v2051 = vsel %vm585, %v2003, 0
    %v2054 = vsel %vm585, %v2004, 0
    %v2057 = vsel %vm585, %v2005, 0
    %v2060 = vsel %vm585, %v2006, 0
    %v2063 = vsel %vm585, %v2007, 0
    %v2066 = vsel %vm585, %v2008, 0
    %v2069 = vsel %vm585, %v2009, 0
    %v2072 = vsel %vm585, %v2010, 0
    %2074 = vmatprep.subr.bf16.mxu0 0
    %2075 = vmatpush1.bf16.msra.mxu0 %v2042
    %2076 = vmatprep.subr.bf16.mxu0 0
    %2077 = vmatpush1.bf16.msra.mxu0 %v2043
    %2078 = vmatprep.subr.bf16.mxu0 0
    %2079 = vmatpush1.bf16.msra.mxu0 %v2044
    %2080 = vmatprep.subr.bf16.mxu0 0
    %2081 = vmatpush1.bf16.msra.mxu0 %v2045
    %2082 = vmatprep.subr.bf16.mxu0 0
    %2083 = vmatpush1.bf16.msra.mxu0 0
    %2084 = vmatprep.subr.bf16.mxu0 0
    %2085 = vmatpush1.bf16.msra.mxu0 0
    %2086 = vmatprep.subr.bf16.mxu0 0
    %2087 = vmatpush1.bf16.msra.mxu0 0
    %2088 = vmatprep.subr.bf16.mxu0 0
    %2089 = vmatpush1.bf16.msra.mxu0 0
    %2090 = vmatprep.subr.bf16.mxu0 0
    %2091 = vmatpush1.bf16.msra.mxu0 0
    %2092 = vmatprep.subr.bf16.mxu0 0
    %2093 = vmatpush1.bf16.msra.mxu0 0
    %2094 = vmatprep.subr.bf16.mxu0 0
    %2095 = vmatpush1.bf16.msra.mxu0 0
    %2096 = vmatprep.subr.bf16.mxu0 0
    %2097 = vmatpush1.bf16.msra.mxu0 0
    %2098 = vmatprep.subr.bf16.mxu0 0
    %2099 = vmatpush1.bf16.msra.mxu0 0
    %2100 = vmatprep.subr.bf16.mxu0 0
    %2101 = vmatpush1.bf16.msra.mxu0 0
    %2102 = vmatprep.subr.bf16.mxu0 0
    %2103 = vmatpush1.bf16.msra.mxu0 0
    %2104 = vmatprep.subr.bf16.mxu0 0
    %2105 = vmatpush1.bf16.msra.mxu0 0
    %2106 = vmatprep.mubr.bf16.mxu0 0
    %2107 = vmatmul.mubr.bf16.gmra.mrb[0].mxu0 %v2051
    %v2108 = vpop.f32.mrb[0].mxu0
    %v2109 = vadd.f32 %v2024, %v2108
    %v2110 = vpop.f32.mrb[0].mxu0
    %v2111 = vpop.f32.mrb[0].mxu0
    %v2112 = vadd.f32 %v2024, %v2111
    %v2113 = vpop.f32.mrb[0].mxu0
    %2114 = vmatprep.mubr.bf16.mxu0 0
    %2115 = vmatmul.mubr.bf16.gmra.mrb[0].mxu0 %v2054
    %v2116 = vpop.f32.mrb[0].mxu0
    %v2117 = vadd.f32 %v2024, %v2116
    %v2118 = vpop.f32.mrb[0].mxu0
    %v2119 = vpop.f32.mrb[0].mxu0
    %v2120 = vadd.f32 %v2024, %v2119
    %v2121 = vpop.f32.mrb[0].mxu0
    %2122 = vmatprep.mubr.bf16.mxu0 0
    %2123 = vmatmul.mubr.bf16.gmra.mrb[0].mxu0 %v2057
    %v2124 = vpop.f32.mrb[0].mxu0
    %v2125 = vadd.f32 %v2024, %v2124
    %v2126 = vpop.f32.mrb[0].mxu0
    %v2127 = vpop.f32.mrb[0].mxu0
    %v2128 = vadd.f32 %v2024, %v2127
    %v2129 = vpop.f32.mrb[0].mxu0
    %2130 = vmatprep.mubr.bf16.mxu0 0
    %2131 = vmatmul.mubr.bf16.gmra.mrb[0].mxu0 %v2060
    %v2132 = vpop.f32.mrb[0].mxu0
    %v2133 = vadd.f32 %v2024, %v2132
    %v2134 = vpop.f32.mrb[0].mxu0
    %v2135 = vpop.f32.mrb[0].mxu0
    %v2136 = vadd.f32 %v2024, %v2135
    %v2137 = vpop.f32.mrb[0].mxu0
    %2138 = vmatprep.mubr.bf16.mxu0 0
    %2139 = vmatmul.mubr.bf16.gmra.mrb[0].mxu0 %v2063
    %v2140 = vpop.f32.mrb[0].mxu0
    %v2141 = vadd.f32 %v2024, %v2140
    %v2142 = vpop.f32.mrb[0].mxu0
    %v2143 = vpop.f32.mrb[0].mxu0
    %v2144 = vadd.f32 %v2024, %v2143
    %v2145 = vpop.f32.mrb[0].mxu0
    %2146 = vmatprep.mubr.bf16.mxu0 0
    %2147 = vmatmul.mubr.bf16.gmra.mrb[0].mxu0 %v2066
    %v2148 = vpop.f32.mrb[0].mxu0
    %v2149 = vadd.f32 %v2024, %v2148
    %v2150 = vpop.f32.mrb[0].mxu0
    %v2151 = vpop.f32.mrb[0].mxu0
    %v2152 = vadd.f32 %v2024, %v2151
    %v2153 = vpop.f32.mrb[0].mxu0
    %2154 = vmatprep.mubr.bf16.mxu0 0
    %2155 = vmatmul.mubr.bf16.gmra.mrb[0].mxu0 %v2069
    %v2156 = vpop.f32.mrb[0].mxu0
    %v2157 = vadd.f32 %v2024, %v2156
    %v2158 = vpop.f32.mrb[0].mxu0
    %v2159 = vpop.f32.mrb[0].mxu0
    %v2160 = vadd.f32 %v2024, %v2159
    %v2161 = vpop.f32.mrb[0].mxu0
    %2162 = vmatprep.mubr.bf16.mxu0 0
    %2163 = vmatmul.mubr.bf16.gmra.mrb[0].mxu0 %v2072
    %v2164 = vpop.f32.mrb[0].mxu0
    %v2165 = vadd.f32 %v2024, %v2164
    %v2166 = vpop.f32.mrb[0].mxu0
    %v2167 = vpop.f32.mrb[0].mxu0
    %v2168 = vadd.f32 %v2024, %v2167
    %v2169 = vpop.f32.mrb[0].mxu0
    %2170 = vdwg.mxu0
    %2187 = vrot.lane.b32.xlu0 %v2109, 64
    %v2188 = vpop.permute.xlu0 %2187
    %2189 = vrot.lane.b32.xlu0 %v2112, 64
    %v2190 = vpop.permute.xlu0 %2189
    %2191 = vrot.lane.b32.xlu0 %v2117, 64
    %v2192 = vpop.permute.xlu0 %2191
    %2193 = vrot.lane.b32.xlu0 %v2120, 64
    %v2194 = vpop.permute.xlu0 %2193
    %2195 = vrot.lane.b32.xlu0 %v2125, 64
    %v2196 = vpop.permute.xlu0 %2195
    %2197 = vrot.lane.b32.xlu0 %v2128, 64
    %v2198 = vpop.permute.xlu0 %2197
    %2199 = vrot.lane.b32.xlu0 %v2133, 64
    %v2200 = vpop.permute.xlu0 %2199
    %2201 = vrot.lane.b32.xlu0 %v2136, 64
    %v2202 = vpop.permute.xlu0 %2201
    %2203 = vrot.lane.b32.xlu0 %v2141, 64
    %v2204 = vpop.permute.xlu0 %2203
    %2205 = vrot.lane.b32.xlu0 %v2144, 64
    %v2206 = vpop.permute.xlu0 %2205
    %2207 = vrot.lane.b32.xlu0 %v2149, 64
    %v2208 = vpop.permute.xlu0 %2207
    %2209 = vrot.lane.b32.xlu0 %v2152, 64
    %v2210 = vpop.permute.xlu0 %2209
    %2211 = vrot.lane.b32.xlu0 %v2157, 64
    %v2212 = vpop.permute.xlu0 %2211
    %2213 = vrot.lane.b32.xlu0 %v2160, 64
    %v2214 = vpop.permute.xlu0 %2213
    %2215 = vrot.lane.b32.xlu0 %v2165, 64
    %v2216 = vpop.permute.xlu0 %2215
    %2217 = vrot.lane.b32.xlu0 %v2168, 64
    %v2218 = vpop.permute.xlu0 %2217
    %v2235 = vadd.f32 %v498, %v2188
    %v2236 = vadd.f32 %v499, %v2190
    %v2237 = vadd.f32 %v500, %v2192
    %v2238 = vadd.f32 %v501, %v2194
    %v2239 = vadd.f32 %v502, %v2196
    %v2240 = vadd.f32 %v503, %v2198
    %v2241 = vadd.f32 %v504, %v2200
    %v2242 = vadd.f32 %v505, %v2202
    %v2243 = vadd.f32 %v506, %v2204
    %v2244 = vadd.f32 %v507, %v2206
    %v2245 = vadd.f32 %v508, %v2208
    %v2246 = vadd.f32 %v509, %v2210
    %v2247 = vadd.f32 %v510, %v2212
    %v2248 = vadd.f32 %v511, %v2214
    %v2249 = vadd.f32 %v512, %v2216
    %v2250 = vadd.f32 %v513, %v2218
    %v2251 = vpack.c.bf16 %v2236, %v2235
    %v2252 = vpack.c.bf16 %v2238, %v2237
    %v2253 = vpack.c.bf16 %v2240, %v2239
    %v2254 = vpack.c.bf16 %v2242, %v2241
    %v2255 = vpack.c.bf16 %v2244, %v2243
    %v2256 = vpack.c.bf16 %v2246, %v2245
    %v2257 = vpack.c.bf16 %v2248, %v2247
    %v2258 = vpack.c.bf16 %v2250, %v2249
    %v2259 = vld [vmem:[%s9] sm:$0xf]
    %v2260 = vld [vmem:[%s9 + $0x4] sm:$0xf]
    %v2261 = vld [vmem:[%s9 + $0x8] sm:$0xf]
    %v2262 = vld [vmem:[%s9 + $0xc] sm:$0xf]
    %v2263 = vld [vmem:[%s9 + $0x10] sm:$0xf]
    %v2264 = vld [vmem:[%s9 + $0x14] sm:$0xf]
    %v2265 = vld [vmem:[%s9 + $0x18] sm:$0xf]
    %v2266 = vld [vmem:[%s9 + $0x1c] sm:$0xf]
    %v2267 = vld [vmem:[%s10] sm:$0x1]
    %v2269 = vlaneseq
    %v2270 = vshrl.u32 %v2269, 7
    %v2271 = vsub.s32 0, %v2270
    %v2272 = vrot.slane %v2267, %v2271
    %2282 = vrot.lane.b32.xlu0 %v2251, 64
    %v2283 = vpop.permute.xlu0 %2282
    %2284 = vrot.lane.b32.xlu0 %v2252, 64
    %v2285 = vpop.permute.xlu0 %2284
    %2286 = vrot.lane.b32.xlu0 %v2253, 64
    %v2287 = vpop.permute.xlu0 %2286
    %2288 = vrot.lane.b32.xlu0 %v2254, 64
    %v2289 = vpop.permute.xlu0 %2288
    %2290 = vrot.lane.b32.xlu0 %v2255, 64
    %v2291 = vpop.permute.xlu0 %2290
    %2292 = vrot.lane.b32.xlu0 %v2256, 64
    %v2293 = vpop.permute.xlu0 %2292
    %2294 = vrot.lane.b32.xlu0 %v2257, 64
    %v2295 = vpop.permute.xlu0 %2294
    %2296 = vrot.lane.b32.xlu0 %v2258, 64
    %v2297 = vpop.permute.xlu0 %2296
    %v2306 = vunpack.c.l.b16 %v2259
    %v2307 = vunpack.c.l.b16 %v2260
    %v2308 = vunpack.c.l.b16 %v2261
    %v2309 = vunpack.c.l.b16 %v2262
    %v2310 = vunpack.c.l.b16 %v2263
    %v2311 = vunpack.c.l.b16 %v2264
    %v2312 = vunpack.c.l.b16 %v2265
    %v2313 = vunpack.c.l.b16 %v2266
    %v2314 = vpack.c.b16 %v2307, %v2306
    %v2315 = vpack.c.b16 %v2309, %v2308
    %v2316 = vpack.c.b16 %v2311, %v2310
    %v2317 = vpack.c.b16 %v2313, %v2312
    %v2323 = vsel %vm585, %v2283, 0
    %v2326 = vsel %vm585, %v2285, 0
    %v2329 = vsel %vm585, %v2287, 0
    %v2332 = vsel %vm585, %v2289, 0
    %v2335 = vsel %vm585, %v2291, 0
    %v2338 = vsel %vm585, %v2293, 0
    %v2341 = vsel %vm585, %v2295, 0
    %v2344 = vsel %vm585, %v2297, 0
    %2346 = vmatprep.subr.bf16.mxu0 0
    %2347 = vmatpush1.bf16.msra.mxu0 %v2314
    %2348 = vmatprep.subr.bf16.mxu0 0
    %2349 = vmatpush1.bf16.msra.mxu0 %v2315
    %2350 = vmatprep.subr.bf16.mxu0 0
    %2351 = vmatpush1.bf16.msra.mxu0 %v2316
    %2352 = vmatprep.subr.bf16.mxu0 0
    %2353 = vmatpush1.bf16.msra.mxu0 %v2317
    %2354 = vmatprep.subr.bf16.mxu0 0
    %2355 = vmatpush1.bf16.msra.mxu0 0
    %2356 = vmatprep.subr.bf16.mxu0 0
    %2357 = vmatpush1.bf16.msra.mxu0 0
    %2358 = vmatprep.subr.bf16.mxu0 0
    %2359 = vmatpush1.bf16.msra.mxu0 0
    %2360 = vmatprep.subr.bf16.mxu0 0
    %2361 = vmatpush1.bf16.msra.mxu0 0
    %2362 = vmatprep.subr.bf16.mxu0 0
    %2363 = vmatpush1.bf16.msra.mxu0 0
    %2364 = vmatprep.subr.bf16.mxu0 0
    %2365 = vmatpush1.bf16.msra.mxu0 0
    %2366 = vmatprep.subr.bf16.mxu0 0
    %2367 = vmatpush1.bf16.msra.mxu0 0
    %2368 = vmatprep.subr.bf16.mxu0 0
    %2369 = vmatpush1.bf16.msra.mxu0 0
    %2370 = vmatprep.subr.bf16.mxu0 0
    %2371 = vmatpush1.bf16.msra.mxu0 0
    %2372 = vmatprep.subr.bf16.mxu0 0
    %2373 = vmatpush1.bf16.msra.mxu0 0
    %2374 = vmatprep.subr.bf16.mxu0 0
    %2375 = vmatpush1.bf16.msra.mxu0 0
    %2376 = vmatprep.subr.bf16.mxu0 0
    %2377 = vmatpush1.bf16.msra.mxu0 0
    %2378 = vmatprep.mubr.bf16.mxu0 0
    %2379 = vmatmul.mubr.bf16.gmra.mrb[0].mxu0 %v2323
    %v2380 = vpop.f32.mrb[0].mxu0
    %v2381 = vadd.f32 %v2272, %v2380
    %v2382 = vpop.f32.mrb[0].mxu0
    %v2383 = vpop.f32.mrb[0].mxu0
    %v2384 = vadd.f32 %v2272, %v2383
    %v2385 = vpop.f32.mrb[0].mxu0
    %2386 = vmatprep.mubr.bf16.mxu0 0
    %2387 = vmatmul.mubr.bf16.gmra.mrb[0].mxu0 %v2326
    %v2388 = vpop.f32.mrb[0].mxu0
    %v2389 = vadd.f32 %v2272, %v2388
    %v2390 = vpop.f32.mrb[0].mxu0
    %v2391 = vpop.f32.mrb[0].mxu0
    %v2392 = vadd.f32 %v2272, %v2391
    %v2393 = vpop.f32.mrb[0].mxu0
    %2394 = vmatprep.mubr.bf16.mxu0 0
    %2395 = vmatmul.mubr.bf16.gmra.mrb[0].mxu0 %v2329
    %v2396 = vpop.f32.mrb[0].mxu0
    %v2397 = vadd.f32 %v2272, %v2396
    %v2398 = vpop.f32.mrb[0].mxu0
    %v2399 = vpop.f32.mrb[0].mxu0
    %v2400 = vadd.f32 %v2272, %v2399
    %v2401 = vpop.f32.mrb[0].mxu0
    %2402 = vmatprep.mubr.bf16.mxu0 0
    %2403 = vmatmul.mubr.bf16.gmra.mrb[0].mxu0 %v2332
    %v2404 = vpop.f32.mrb[0].mxu0
    %v2405 = vadd.f32 %v2272, %v2404
    %v2406 = vpop.f32.mrb[0].mxu0
    %v2407 = vpop.f32.mrb[0].mxu0
    %v2408 = vadd.f32 %v2272, %v2407
    %v2409 = vpop.f32.mrb[0].mxu0
    %2410 = vmatprep.mubr.bf16.mxu0 0
    %2411 = vmatmul.mubr.bf16.gmra.mrb[0].mxu0 %v2335
    %v2412 = vpop.f32.mrb[0].mxu0
    %v2413 = vadd.f32 %v2272, %v2412
    %v2414 = vpop.f32.mrb[0].mxu0
    %v2415 = vpop.f32.mrb[0].mxu0
    %v2416 = vadd.f32 %v2272, %v2415
    %v2417 = vpop.f32.mrb[0].mxu0
    %2418 = vmatprep.mubr.bf16.mxu0 0
    %2419 = vmatmul.mubr.bf16.gmra.mrb[0].mxu0 %v2338
    %v2420 = vpop.f32.mrb[0].mxu0
    %v2421 = vadd.f32 %v2272, %v2420
    %v2422 = vpop.f32.mrb[0].mxu0
    %v2423 = vpop.f32.mrb[0].mxu0
    %v2424 = vadd.f32 %v2272, %v2423
    %v2425 = vpop.f32.mrb[0].mxu0
    %2426 = vmatprep.mubr.bf16.mxu0 0
    %2427 = vmatmul.mubr.bf16.gmra.mrb[0].mxu0 %v2341
    %v2428 = vpop.f32.mrb[0].mxu0
    %v2429 = vadd.f32 %v2272, %v2428
    %v2430 = vpop.f32.mrb[0].mxu0
    %v2431 = vpop.f32.mrb[0].mxu0
    %v2432 = vadd.f32 %v2272, %v2431
    %v2433 = vpop.f32.mrb[0].mxu0
    %2434 = vmatprep.mubr.bf16.mxu0 0
    %2435 = vmatmul.mubr.bf16.gmra.mrb[0].mxu0 %v2344
    %v2436 = vpop.f32.mrb[0].mxu0
    %v2437 = vadd.f32 %v2272, %v2436
    %v2438 = vpop.f32.mrb[0].mxu0
    %v2439 = vpop.f32.mrb[0].mxu0
    %v2440 = vadd.f32 %v2272, %v2439
    %v2441 = vpop.f32.mrb[0].mxu0
    %2442 = vdwg.mxu0
    %v2443 = vxor.u32 %v2381, 2147483648
    %v2444 = vxor.u32 %v2384, 2147483648
    %v2445 = vxor.u32 %v2389, 2147483648
    %v2446 = vxor.u32 %v2392, 2147483648
    %v2447 = vxor.u32 %v2397, 2147483648
    %v2448 = vxor.u32 %v2400, 2147483648
    %v2449 = vxor.u32 %v2405, 2147483648
    %v2450 = vxor.u32 %v2408, 2147483648
    %v2451 = vxor.u32 %v2413, 2147483648
    %v2452 = vxor.u32 %v2416, 2147483648
    %v2453 = vxor.u32 %v2421, 2147483648
    %v2454 = vxor.u32 %v2424, 2147483648
    %v2455 = vxor.u32 %v2429, 2147483648
    %v2456 = vxor.u32 %v2432, 2147483648
    %v2457 = vxor.u32 %v2437, 2147483648
    %v2458 = vxor.u32 %v2440, 2147483648
    %v2459 = vmul.f32 %v2443, 1.442695
    %v2460 = vpow.pop %v2459
    %v2461 = vmul.f32 %v2444, 1.442695
    %v2462 = vpow.pop %v2461
    %v2463 = vmul.f32 %v2445, 1.442695
    %v2464 = vpow.pop %v2463
    %v2465 = vmul.f32 %v2446, 1.442695
    %v2466 = vpow.pop %v2465
    %v2467 = vmul.f32 %v2447, 1.442695
    %v2468 = vpow.pop %v2467
    %v2469 = vmul.f32 %v2448, 1.442695
    %v2470 = vpow.pop %v2469
    %v2471 = vmul.f32 %v2449, 1.442695
    %v2472 = vpow.pop %v2471
    %v2473 = vmul.f32 %v2450, 1.442695
    %v2474 = vpow.pop %v2473
    %v2475 = vmul.f32 %v2451, 1.442695
    %v2476 = vpow.pop %v2475
    %v2477 = vmul.f32 %v2452, 1.442695
    %v2478 = vpow.pop %v2477
    %v2479 = vmul.f32 %v2453, 1.442695
    %v2480 = vpow.pop %v2479
    %v2481 = vmul.f32 %v2454, 1.442695
    %v2482 = vpow.pop %v2481
    %v2483 = vmul.f32 %v2455, 1.442695
    %v2484 = vpow.pop %v2483
    %v2485 = vmul.f32 %v2456, 1.442695
    %v2486 = vpow.pop %v2485
    %v2487 = vmul.f32 %v2457, 1.442695
    %v2488 = vpow.pop %v2487
    %v2489 = vmul.f32 %v2458, 1.442695
    %v2490 = vpow.pop %v2489
    %v2491 = vadd.f32 %v2460, 1.0
    %v2492 = vadd.f32 %v2462, 1.0
    %v2493 = vadd.f32 %v2464, 1.0
    %v2494 = vadd.f32 %v2466, 1.0
    %v2495 = vadd.f32 %v2468, 1.0
    %v2496 = vadd.f32 %v2470, 1.0
    %v2497 = vadd.f32 %v2472, 1.0
    %v2498 = vadd.f32 %v2474, 1.0
    %v2499 = vadd.f32 %v2476, 1.0
    %v2500 = vadd.f32 %v2478, 1.0
    %v2501 = vadd.f32 %v2480, 1.0
    %v2502 = vadd.f32 %v2482, 1.0
    %v2503 = vadd.f32 %v2484, 1.0
    %v2504 = vadd.f32 %v2486, 1.0
    %v2505 = vadd.f32 %v2488, 1.0
    %v2506 = vadd.f32 %v2490, 1.0
    %v2507 = vrcp.pop %v2491
    %v2508 = vmul.f32 1.0, %v2507
    %v2509 = vrcp.pop %v2492
    %v2510 = vmul.f32 1.0, %v2509
    %v2511 = vrcp.pop %v2493
    %v2512 = vmul.f32 1.0, %v2511
    %v2513 = vrcp.pop %v2494
    %v2514 = vmul.f32 1.0, %v2513
    %v2515 = vrcp.pop %v2495
    %v2516 = vmul.f32 1.0, %v2515
    %v2517 = vrcp.pop %v2496
    %v2518 = vmul.f32 1.0, %v2517
    %v2519 = vrcp.pop %v2497
    %v2520 = vmul.f32 1.0, %v2519
    %v2521 = vrcp.pop %v2498
    %v2522 = vmul.f32 1.0, %v2521
    %v2523 = vrcp.pop %v2499
    %v2524 = vmul.f32 1.0, %v2523
    %v2525 = vrcp.pop %v2500
    %v2526 = vmul.f32 1.0, %v2525
    %v2527 = vrcp.pop %v2501
    %v2528 = vmul.f32 1.0, %v2527
    %v2529 = vrcp.pop %v2502
    %v2530 = vmul.f32 1.0, %v2529
    %v2531 = vrcp.pop %v2503
    %v2532 = vmul.f32 1.0, %v2531
    %v2533 = vrcp.pop %v2504
    %v2534 = vmul.f32 1.0, %v2533
    %v2535 = vrcp.pop %v2505
    %v2536 = vmul.f32 1.0, %v2535
    %v2537 = vrcp.pop %v2506
    %v2538 = vmul.f32 1.0, %v2537
    %v2539 = vmul.f32 %v2381, %v2508
    %v2540 = vmul.f32 %v2384, %v2510
    %v2541 = vmul.f32 %v2389, %v2512
    %v2542 = vmul.f32 %v2392, %v2514
    %v2543 = vmul.f32 %v2397, %v2516
    %v2544 = vmul.f32 %v2400, %v2518
    %v2545 = vmul.f32 %v2405, %v2520
    %v2546 = vmul.f32 %v2408, %v2522
    %v2547 = vmul.f32 %v2413, %v2524
    %v2548 = vmul.f32 %v2416, %v2526
    %v2549 = vmul.f32 %v2421, %v2528
    %v2550 = vmul.f32 %v2424, %v2530
    %v2551 = vmul.f32 %v2429, %v2532
    %v2552 = vmul.f32 %v2432, %v2534
    %v2553 = vmul.f32 %v2437, %v2536
    %v2554 = vmul.f32 %v2440, %v2538
    %v2555 = vpack.c.bf16 %v2540, %v2539
    %v2556 = vpack.c.bf16 %v2542, %v2541
    %v2557 = vpack.c.bf16 %v2544, %v2543
    %v2558 = vpack.c.bf16 %v2546, %v2545
    %v2559 = vpack.c.bf16 %v2548, %v2547
    %v2560 = vpack.c.bf16 %v2550, %v2549
    %v2561 = vpack.c.bf16 %v2552, %v2551
    %v2562 = vpack.c.bf16 %v2554, %v2553
    %v2563 = vld [vmem:[%s11] sm:$0xf]
    %v2564 = vld [vmem:[%s11 + $0x4] sm:$0xf]
    %v2565 = vld [vmem:[%s11 + $0x8] sm:$0xf]
    %v2566 = vld [vmem:[%s11 + $0xc] sm:$0xf]
    %v2567 = vld [vmem:[%s11 + $0x10] sm:$0xf]
    %v2568 = vld [vmem:[%s11 + $0x14] sm:$0xf]
    %v2569 = vld [vmem:[%s11 + $0x18] sm:$0xf]
    %v2570 = vld [vmem:[%s11 + $0x1c] sm:$0xf]
    %v2571 = vld [vmem:[%s11 + $0x20] sm:$0xf]
    %v2572 = vld [vmem:[%s11 + $0x24] sm:$0xf]
    %v2573 = vld [vmem:[%s11 + $0x28] sm:$0xf]
    %v2574 = vld [vmem:[%s11 + $0x2c] sm:$0xf]
    %v2575 = vld [vmem:[%s11 + $0x30] sm:$0xf]
    %v2576 = vld [vmem:[%s11 + $0x34] sm:$0xf]
    %v2577 = vld [vmem:[%s11 + $0x38] sm:$0xf]
    %v2578 = vld [vmem:[%s11 + $0x3c] sm:$0xf]
    %v2579 = vld [vmem:[%s12] sm:$0x1]
    %v2581 = vlaneseq
    %v2582 = vshrl.u32 %v2581, 7
    %v2583 = vsub.s32 0, %v2582
    %v2584 = vrot.slane %v2579, %v2583
    %v2602 = vunpack.c.l.b16 %v2563
    %v2603 = vunpack.c.l.b16 %v2564
    %v2604 = vunpack.c.l.b16 %v2565
    %v2605 = vunpack.c.l.b16 %v2566
    %v2606 = vunpack.c.l.b16 %v2567
    %v2607 = vunpack.c.l.b16 %v2568
    %v2608 = vunpack.c.l.b16 %v2569
    %v2609 = vunpack.c.l.b16 %v2570
    %v2610 = vunpack.c.l.b16 %v2571
    %v2611 = vunpack.c.l.b16 %v2572
    %v2612 = vunpack.c.l.b16 %v2573
    %v2613 = vunpack.c.l.b16 %v2574
    %v2614 = vunpack.c.l.b16 %v2575
    %v2615 = vunpack.c.l.b16 %v2576
    %v2616 = vunpack.c.l.b16 %v2577
    %v2617 = vunpack.c.l.b16 %v2578
    %v2618 = vpack.c.b16 %v2603, %v2602
    %v2619 = vpack.c.b16 %v2605, %v2604
    %v2620 = vpack.c.b16 %v2607, %v2606
    %v2621 = vpack.c.b16 %v2609, %v2608
    %v2622 = vpack.c.b16 %v2611, %v2610
    %v2623 = vpack.c.b16 %v2613, %v2612
    %v2624 = vpack.c.b16 %v2615, %v2614
    %v2625 = vpack.c.b16 %v2617, %v2616
    %2634 = vmatprep.subr.bf16.mxu0 0
    %2635 = vmatpush1.bf16.msra.mxu0 %v2618
    %2636 = vmatprep.subr.bf16.mxu0 0
    %2637 = vmatpush1.bf16.msra.mxu0 %v2619
    %2638 = vmatprep.subr.bf16.mxu0 0
    %2639 = vmatpush1.bf16.msra.mxu0 %v2620
    %2640 = vmatprep.subr.bf16.mxu0 0
    %2641 = vmatpush1.bf16.msra.mxu0 %v2621
    %2642 = vmatprep.subr.bf16.mxu0 0
    %2643 = vmatpush1.bf16.msra.mxu0 %v2622
    %2644 = vmatprep.subr.bf16.mxu0 0
    %2645 = vmatpush1.bf16.msra.mxu0 %v2623
    %2646 = vmatprep.subr.bf16.mxu0 0
    %2647 = vmatpush1.bf16.msra.mxu0 %v2624
    %2648 = vmatprep.subr.bf16.mxu0 0
    %2649 = vmatpush1.bf16.msra.mxu0 %v2625
    %2650 = vmatprep.subr.bf16.mxu0 0
    %2651 = vmatpush1.bf16.msra.mxu0 0
    %2652 = vmatprep.subr.bf16.mxu0 0
    %2653 = vmatpush1.bf16.msra.mxu0 0
    %2654 = vmatprep.subr.bf16.mxu0 0
    %2655 = vmatpush1.bf16.msra.mxu0 0
    %2656 = vmatprep.subr.bf16.mxu0 0
    %2657 = vmatpush1.bf16.msra.mxu0 0
    %2658 = vmatprep.subr.bf16.mxu0 0
    %2659 = vmatpush1.bf16.msra.mxu0 0
    %2660 = vmatprep.subr.bf16.mxu0 0
    %2661 = vmatpush1.bf16.msra.mxu0 0
    %2662 = vmatprep.subr.bf16.mxu0 0
    %2663 = vmatpush1.bf16.msra.mxu0 0
    %2664 = vmatprep.subr.bf16.mxu0 0
    %2665 = vmatpush1.bf16.msra.mxu0 0
    %2666 = vmatprep.mubr.bf16.mxu0 0
    %2667 = vmatmul.mubr.bf16.gmra.mrb[0].mxu0 %v2555
    %v2668 = vpop.f32.mrb[0].mxu0
    %v2669 = vadd.f32 %v2584, %v2668
    %v2670 = vpop.f32.mrb[0].mxu0
    %v2671 = vpop.f32.mrb[0].mxu0
    %v2672 = vadd.f32 %v2584, %v2671
    %v2673 = vpop.f32.mrb[0].mxu0
    %2674 = vmatprep.mubr.bf16.mxu0 0
    %2675 = vmatmul.mubr.bf16.gmra.mrb[0].mxu0 %v2556
    %v2676 = vpop.f32.mrb[0].mxu0
    %v2677 = vadd.f32 %v2584, %v2676
    %v2678 = vpop.f32.mrb[0].mxu0
    %v2679 = vpop.f32.mrb[0].mxu0
    %v2680 = vadd.f32 %v2584, %v2679
    %v2681 = vpop.f32.mrb[0].mxu0
    %2682 = vmatprep.mubr.bf16.mxu0 0
    %2683 = vmatmul.mubr.bf16.gmra.mrb[0].mxu0 %v2557
    %v2684 = vpop.f32.mrb[0].mxu0
    %v2685 = vadd.f32 %v2584, %v2684
    %v2686 = vpop.f32.mrb[0].mxu0
    %v2687 = vpop.f32.mrb[0].mxu0
    %v2688 = vadd.f32 %v2584, %v2687
    %v2689 = vpop.f32.mrb[0].mxu0
    %2690 = vmatprep.mubr.bf16.mxu0 0
    %2691 = vmatmul.mubr.bf16.gmra.mrb[0].mxu0 %v2558
    %v2692 = vpop.f32.mrb[0].mxu0
    %v2693 = vadd.f32 %v2584, %v2692
    %v2694 = vpop.f32.mrb[0].mxu0
    %v2695 = vpop.f32.mrb[0].mxu0
    %v2696 = vadd.f32 %v2584, %v2695
    %v2697 = vpop.f32.mrb[0].mxu0
    %2698 = vmatprep.mubr.bf16.mxu0 0
    %2699 = vmatmul.mubr.bf16.gmra.mrb[0].mxu0 %v2559
    %v2700 = vpop.f32.mrb[0].mxu0
    %v2701 = vadd.f32 %v2584, %v2700
    %v2702 = vpop.f32.mrb[0].mxu0
    %v2703 = vpop.f32.mrb[0].mxu0
    %v2704 = vadd.f32 %v2584, %v2703
    %v2705 = vpop.f32.mrb[0].mxu0
    %2706 = vmatprep.mubr.bf16.mxu0 0
    %2707 = vmatmul.mubr.bf16.gmra.mrb[0].mxu0 %v2560
    %v2708 = vpop.f32.mrb[0].mxu0
    %v2709 = vadd.f32 %v2584, %v2708
    %v2710 = vpop.f32.mrb[0].mxu0
    %v2711 = vpop.f32.mrb[0].mxu0
    %v2712 = vadd.f32 %v2584, %v2711
    %v2713 = vpop.f32.mrb[0].mxu0
    %2714 = vmatprep.mubr.bf16.mxu0 0
    %2715 = vmatmul.mubr.bf16.gmra.mrb[0].mxu0 %v2561
    %v2716 = vpop.f32.mrb[0].mxu0
    %v2717 = vadd.f32 %v2584, %v2716
    %v2718 = vpop.f32.mrb[0].mxu0
    %v2719 = vpop.f32.mrb[0].mxu0
    %v2720 = vadd.f32 %v2584, %v2719
    %v2721 = vpop.f32.mrb[0].mxu0
    %2722 = vmatprep.mubr.bf16.mxu0 0
    %2723 = vmatmul.mubr.bf16.gmra.mrb[0].mxu0 %v2562
    %v2724 = vpop.f32.mrb[0].mxu0
    %v2725 = vadd.f32 %v2584, %v2724
    %v2726 = vpop.f32.mrb[0].mxu0
    %v2727 = vpop.f32.mrb[0].mxu0
    %v2728 = vadd.f32 %v2584, %v2727
    %v2729 = vpop.f32.mrb[0].mxu0
    %2730 = vdwg.mxu0
    %2747 = vrot.lane.b32.xlu0 %v2669, 64
    %v2748 = vpop.permute.xlu0 %2747
    %2749 = vrot.lane.b32.xlu0 %v2672, 64
    %v2750 = vpop.permute.xlu0 %2749
    %2751 = vrot.lane.b32.xlu0 %v2677, 64
    %v2752 = vpop.permute.xlu0 %2751
    %2753 = vrot.lane.b32.xlu0 %v2680, 64
    %v2754 = vpop.permute.xlu0 %2753
    %2755 = vrot.lane.b32.xlu0 %v2685, 64
    %v2756 = vpop.permute.xlu0 %2755
    %2757 = vrot.lane.b32.xlu0 %v2688, 64
    %v2758 = vpop.permute.xlu0 %2757
    %2759 = vrot.lane.b32.xlu0 %v2693, 64
    %v2760 = vpop.permute.xlu0 %2759
    %2761 = vrot.lane.b32.xlu0 %v2696, 64
    %v2762 = vpop.permute.xlu0 %2761
    %2763 = vrot.lane.b32.xlu0 %v2701, 64
    %v2764 = vpop.permute.xlu0 %2763
    %2765 = vrot.lane.b32.xlu0 %v2704, 64
    %v2766 = vpop.permute.xlu0 %2765
    %2767 = vrot.lane.b32.xlu0 %v2709, 64
    %v2768 = vpop.permute.xlu0 %2767
    %2769 = vrot.lane.b32.xlu0 %v2712, 64
    %v2770 = vpop.permute.xlu0 %2769
    %2771 = vrot.lane.b32.xlu0 %v2717, 64
    %v2772 = vpop.permute.xlu0 %2771
    %2773 = vrot.lane.b32.xlu0 %v2720, 64
    %v2774 = vpop.permute.xlu0 %2773
    %2775 = vrot.lane.b32.xlu0 %v2725, 64
    %v2776 = vpop.permute.xlu0 %2775
    %2777 = vrot.lane.b32.xlu0 %v2728, 64
    %v2778 = vpop.permute.xlu0 %2777
    %v2795 = vadd.f32 %v2235, %v2748
    %v2796 = vadd.f32 %v2236, %v2750
    %v2797 = vadd.f32 %v2237, %v2752
    %v2798 = vadd.f32 %v2238, %v2754
    %v2799 = vadd.f32 %v2239, %v2756
    %v2800 = vadd.f32 %v2240, %v2758
    %v2801 = vadd.f32 %v2241, %v2760
    %v2802 = vadd.f32 %v2242, %v2762
    %v2803 = vadd.f32 %v2243, %v2764
    %v2804 = vadd.f32 %v2244, %v2766
    %v2805 = vadd.f32 %v2245, %v2768
    %v2806 = vadd.f32 %v2246, %v2770
    %v2807 = vadd.f32 %v2247, %v2772
    %v2808 = vadd.f32 %v2248, %v2774
    %v2809 = vadd.f32 %v2249, %v2776
    %v2810 = vadd.f32 %v2250, %v2778
    %v2811 = vpack.c.bf16 %v2796, %v2795
    %v2812 = vpack.c.bf16 %v2798, %v2797
    %v2813 = vpack.c.bf16 %v2800, %v2799
    %v2814 = vpack.c.bf16 %v2802, %v2801
    %v2815 = vpack.c.bf16 %v2804, %v2803
    %v2816 = vpack.c.bf16 %v2806, %v2805
    %v2817 = vpack.c.bf16 %v2808, %v2807
    %v2818 = vpack.c.bf16 %v2810, %v2809
    %v2819 = vld [vmem:[%s13] sm:$0xf]
    %v2820 = vld [vmem:[%s13 + $0x4] sm:$0xf]
    %v2821 = vld [vmem:[%s13 + $0x8] sm:$0xf]
    %v2822 = vld [vmem:[%s13 + $0xc] sm:$0xf]
    %v2823 = vld [vmem:[%s13 + $0x10] sm:$0xf]
    %v2824 = vld [vmem:[%s13 + $0x14] sm:$0xf]
    %v2825 = vld [vmem:[%s13 + $0x18] sm:$0xf]
    %v2826 = vld [vmem:[%s13 + $0x1c] sm:$0xf]
    %v2827 = vld [vmem:[%s13 + $0x20] sm:$0xf]
    %v2828 = vld [vmem:[%s13 + $0x24] sm:$0xf]
    %v2829 = vld [vmem:[%s13 + $0x28] sm:$0xf]
    %v2830 = vld [vmem:[%s13 + $0x2c] sm:$0xf]
    %v2831 = vld [vmem:[%s13 + $0x30] sm:$0xf]
    %v2832 = vld [vmem:[%s13 + $0x34] sm:$0xf]
    %v2833 = vld [vmem:[%s13 + $0x38] sm:$0xf]
    %v2834 = vld [vmem:[%s13 + $0x3c] sm:$0xf]
    %v2835 = vld [vmem:[%s14] sm:$0xf]
    %v2836 = vld [vmem:[%s14 + $0x4] sm:$0xf]
    %v2837 = vld [vmem:[%s14 + $0x8] sm:$0xf]
    %v2838 = vld [vmem:[%s14 + $0xc] sm:$0xf]
    %v2839 = vld [vmem:[%s14 + $0x10] sm:$0xf]
    %v2840 = vld [vmem:[%s14 + $0x14] sm:$0xf]
    %v2841 = vld [vmem:[%s14 + $0x18] sm:$0xf]
    %v2842 = vld [vmem:[%s14 + $0x1c] sm:$0xf]
    %v2843 = vld [vmem:[%s14 + $0x20] sm:$0xf]
    %v2844 = vld [vmem:[%s14 + $0x24] sm:$0xf]
    %v2845 = vld [vmem:[%s14 + $0x28] sm:$0xf]
    %v2846 = vld [vmem:[%s14 + $0x2c] sm:$0xf]
    %v2847 = vld [vmem:[%s14 + $0x30] sm:$0xf]
    %v2848 = vld [vmem:[%s14 + $0x34] sm:$0xf]
    %v2849 = vld [vmem:[%s14 + $0x38] sm:$0xf]
    %v2850 = vld [vmem:[%s14 + $0x3c] sm:$0xf]
    %v2851 = vld [vmem:[%s15] sm:$0xff]
    %v2852 = vld [vmem:[%s15 + $0x8] sm:$0xff]
    %v2853 = vld [vmem:[%s15 + $0x10] sm:$0xff]
    %v2854 = vld [vmem:[%s15 + $0x18] sm:$0xff]
    %v2855 = vld [vmem:[%s15 + $0x20] sm:$0xff]
    %v2856 = vld [vmem:[%s15 + $0x28] sm:$0xff]
    %v2857 = vld [vmem:[%s15 + $0x30] sm:$0xff]
    %v2858 = vld [vmem:[%s15 + $0x38] sm:$0xff]
    %v2859 = vld [vmem:[%s15 + $0x40] sm:$0xff]
    %v2860 = vld [vmem:[%s15 + $0x48] sm:$0xff]
    %v2861 = vld [vmem:[%s15 + $0x50] sm:$0xff]
    %v2862 = vld [vmem:[%s15 + $0x58] sm:$0xff]
    %v2863 = vld [vmem:[%s15 + $0x60] sm:$0xff]
    %v2864 = vld [vmem:[%s15 + $0x68] sm:$0xff]
    %v2865 = vld [vmem:[%s15 + $0x70] sm:$0xff]
    %v2866 = vld [vmem:[%s15 + $0x78] sm:$0xff]
    %v2883 = vunpack.c.l.b16 %v2835
    %v2884 = vunpack.c.l.b16 %v2836
    %v2885 = vunpack.c.l.b16 %v2837
    %v2886 = vunpack.c.l.b16 %v2838
    %v2887 = vunpack.c.l.b16 %v2839
    %v2888 = vunpack.c.l.b16 %v2840
    %v2889 = vunpack.c.l.b16 %v2841
    %v2890 = vunpack.c.l.b16 %v2842
    %v2891 = vunpack.c.l.b16 %v2843
    %v2892 = vunpack.c.l.b16 %v2844
    %v2893 = vunpack.c.l.b16 %v2845
    %v2894 = vunpack.c.l.b16 %v2846
    %v2895 = vunpack.c.l.b16 %v2847
    %v2896 = vunpack.c.l.b16 %v2848
    %v2897 = vunpack.c.l.b16 %v2849
    %v2898 = vunpack.c.l.b16 %v2850
    %v2899 = vpack.c.b16 %v2884, %v2883
    %v2900 = vpack.c.b16 %v2886, %v2885
    %v2901 = vpack.c.b16 %v2888, %v2887
    %v2902 = vpack.c.b16 %v2890, %v2889
    %v2903 = vpack.c.b16 %v2892, %v2891
    %v2904 = vpack.c.b16 %v2894, %v2893
    %v2905 = vpack.c.b16 %v2896, %v2895
    %v2906 = vpack.c.b16 %v2898, %v2897
    %2911 = vrot.lane.b32.xlu0 %v2811, 64
    %v2912 = vpop.permute.xlu0 %2911
    %2913 = vrot.lane.b32.xlu0 %v2812, 64
    %v2914 = vpop.permute.xlu0 %2913
    %2915 = vrot.lane.b32.xlu0 %v2813, 64
    %v2916 = vpop.permute.xlu0 %2915
    %2917 = vrot.lane.b32.xlu0 %v2814, 64
    %v2918 = vpop.permute.xlu0 %2917
    %v2920 = vsel %vm585, %v2899, 0
    %v2923 = vsel %vm585, %v2900, 0
    %v2926 = vsel %vm585, %v2901, 0
    %v2929 = vsel %vm585, %v2902, 0
    %v2932 = vsel %vm585, %v2903, 0
    %v2935 = vsel %vm585, %v2904, 0
    %v2938 = vsel %vm585, %v2905, 0
    %v2941 = vsel %vm585, %v2906, 0
    %v2944 = vsel %vm585, %v2912, 0
    %v2947 = vsel %vm585, %v2914, 0
    %v2950 = vsel %vm585, %v2916, 0
    %v2953 = vsel %vm585, %v2918, 0
    %2955 = vmatprep.subr.bf16.mxu0 0
    %2956 = vmatpush1.bf16.xpose.msra.mxu0 %v2944
    %2957 = vmatprep.subr.bf16.mxu0 0
    %2958 = vmatpush1.bf16.xpose.msra.mxu0 %v2947
    %2959 = vmatprep.subr.bf16.mxu0 0
    %2960 = vmatpush1.bf16.xpose.msra.mxu0 %v2950
    %2961 = vmatprep.subr.bf16.mxu0 0
    %2962 = vmatpush1.bf16.xpose.msra.mxu0 %v2953
    %2963 = vmatprep.subr.bf16.mxu0 0
    %2964 = vmatpush1.bf16.xpose.msra.mxu0 0
    %2965 = vmatprep.subr.bf16.mxu0 0
    %2966 = vmatpush1.bf16.xpose.msra.mxu0 0
    %2967 = vmatprep.subr.bf16.mxu0 0
    %2968 = vmatpush1.bf16.xpose.msra.mxu0 0
    %2969 = vmatprep.subr.bf16.mxu0 0
    %2970 = vmatpush1.bf16.xpose.msra.mxu0 0
    %2971 = vmatprep.subr.bf16.mxu0 0
    %2972 = vmatpush1.bf16.xpose.msra.mxu0 0
    %2973 = vmatprep.subr.bf16.mxu0 0
    %2974 = vmatpush1.bf16.xpose.msra.mxu0 0
    %2975 = vmatprep.subr.bf16.mxu0 0
    %2976 = vmatpush1.bf16.xpose.msra.mxu0 0
    %2977 = vmatprep.subr.bf16.mxu0 0
    %2978 = vmatpush1.bf16.xpose.msra.mxu0 0
    %2979 = vmatprep.subr.bf16.mxu0 0
    %2980 = vmatpush1.bf16.xpose.msra.mxu0 0
    %2981 = vmatprep.subr.bf16.mxu0 0
    %2982 = vmatpush1.bf16.xpose.msra.mxu0 0
    %2983 = vmatprep.subr.bf16.mxu0 0
    %2984 = vmatpush1.bf16.xpose.msra.mxu0 0
    %2985 = vmatprep.subr.bf16.mxu0 0
    %2986 = vmatpush1.bf16.xpose.msra.mxu0 0
    %2987 = vmatprep.mubr.bf16.mxu0 0
    %2988 = vmatmul.mubr.bf16.gmra.mrb[0].mxu0 %v2920
    %v2989 = vpop.f32.mrb[0].mxu0
    %v2990 = vadd.f32 0.0, %v2989
    %v2991 = vpop.f32.mrb[0].mxu0
    %v2992 = vpop.f32.mrb[0].mxu0
    %v2993 = vadd.f32 0.0, %v2992
    %v2994 = vpop.f32.mrb[0].mxu0
    %2995 = vmatprep.mubr.bf16.mxu0 0
    %2996 = vmatmul.mubr.bf16.gmra.mrb[0].mxu0 %v2923
    %v2997 = vpop.f32.mrb[0].mxu0
    %v2998 = vadd.f32 0.0, %v2997
    %v2999 = vpop.f32.mrb[0].mxu0
    %v3000 = vpop.f32.mrb[0].mxu0
    %v3001 = vadd.f32 0.0, %v3000
    %v3002 = vpop.f32.mrb[0].mxu0
    %3003 = vmatprep.mubr.bf16.mxu0 0
    %3004 = vmatmul.mubr.bf16.gmra.mrb[0].mxu0 %v2926
    %v3005 = vpop.f32.mrb[0].mxu0
    %v3006 = vadd.f32 0.0, %v3005
    %v3007 = vpop.f32.mrb[0].mxu0
    %v3008 = vpop.f32.mrb[0].mxu0
    %v3009 = vadd.f32 0.0, %v3008
    %v3010 = vpop.f32.mrb[0].mxu0
    %3011 = vmatprep.mubr.bf16.mxu0 0
    %3012 = vmatmul.mubr.bf16.gmra.mrb[0].mxu0 %v2929
    %v3013 = vpop.f32.mrb[0].mxu0
    %v3014 = vadd.f32 0.0, %v3013
    %v3015 = vpop.f32.mrb[0].mxu0
    %v3016 = vpop.f32.mrb[0].mxu0
    %v3017 = vadd.f32 0.0, %v3016
    %v3018 = vpop.f32.mrb[0].mxu0
    %3019 = vmatprep.mubr.bf16.mxu0 0
    %3020 = vmatmul.mubr.bf16.gmra.mrb[0].mxu0 %v2932
    %v3021 = vpop.f32.mrb[0].mxu0
    %v3022 = vadd.f32 0.0, %v3021
    %v3023 = vpop.f32.mrb[0].mxu0
    %v3024 = vpop.f32.mrb[0].mxu0
    %v3025 = vadd.f32 0.0, %v3024
    %v3026 = vpop.f32.mrb[0].mxu0
    %3027 = vmatprep.mubr.bf16.mxu0 0
    %3028 = vmatmul.mubr.bf16.gmra.mrb[0].mxu0 %v2935
    %v3029 = vpop.f32.mrb[0].mxu0
    %v3030 = vadd.f32 0.0, %v3029
    %v3031 = vpop.f32.mrb[0].mxu0
    %v3032 = vpop.f32.mrb[0].mxu0
    %v3033 = vadd.f32 0.0, %v3032
    %v3034 = vpop.f32.mrb[0].mxu0
    %3035 = vmatprep.mubr.bf16.mxu0 0
    %3036 = vmatmul.mubr.bf16.gmra.mrb[0].mxu0 %v2938
    %v3037 = vpop.f32.mrb[0].mxu0
    %v3038 = vadd.f32 0.0, %v3037
    %v3039 = vpop.f32.mrb[0].mxu0
    %v3040 = vpop.f32.mrb[0].mxu0
    %v3041 = vadd.f32 0.0, %v3040
    %v3042 = vpop.f32.mrb[0].mxu0
    %3043 = vmatprep.mubr.bf16.mxu0 0
    %3044 = vmatmul.mubr.bf16.gmra.mrb[0].mxu0 %v2941
    %v3045 = vpop.f32.mrb[0].mxu0
    %v3046 = vadd.f32 0.0, %v3045
    %v3047 = vpop.f32.mrb[0].mxu0
    %v3048 = vpop.f32.mrb[0].mxu0
    %v3049 = vadd.f32 0.0, %v3048
    %v3050 = vpop.f32.mrb[0].mxu0
    %3051 = vdwg.mxu0
    %v3068 = vunpack.c.l.b16 %v2819
    %v3069 = vunpack.c.l.b16 %v2820
    %v3070 = vunpack.c.l.b16 %v2821
    %v3071 = vunpack.c.l.b16 %v2822
    %v3072 = vunpack.c.l.b16 %v2823
    %v3073 = vunpack.c.l.b16 %v2824
    %v3074 = vunpack.c.l.b16 %v2825
    %v3075 = vunpack.c.l.b16 %v2826
    %v3076 = vunpack.c.l.b16 %v2827
    %v3077 = vunpack.c.l.b16 %v2828
    %v3078 = vunpack.c.l.b16 %v2829
    %v3079 = vunpack.c.l.b16 %v2830
    %v3080 = vunpack.c.l.b16 %v2831
    %v3081 = vunpack.c.l.b16 %v2832
    %v3082 = vunpack.c.l.b16 %v2833
    %v3083 = vunpack.c.l.b16 %v2834
    %v3084 = vpack.c.b16 %v3069, %v3068
    %v3085 = vpack.c.b16 %v3071, %v3070
    %v3086 = vpack.c.b16 %v3073, %v3072
    %v3087 = vpack.c.b16 %v3075, %v3074
    %v3088 = vpack.c.b16 %v3077, %v3076
    %v3089 = vpack.c.b16 %v3079, %v3078
    %v3090 = vpack.c.b16 %v3081, %v3080
    %v3091 = vpack.c.b16 %v3083, %v3082
    %v3093 = vsel %vm585, %v3084, 0
    %v3096 = vsel %vm585, %v3085, 0
    %v3099 = vsel %vm585, %v3086, 0
    %v3102 = vsel %vm585, %v3087, 0
    %v3105 = vsel %vm585, %v3088, 0
    %v3108 = vsel %vm585, %v3089, 0
    %v3111 = vsel %vm585, %v3090, 0
    %v3114 = vsel %vm585, %v3091, 0
    %v3117 = vsel %vm585, %v514, 0
    %v3120 = vsel %vm585, %v515, 0
    %v3123 = vsel %vm585, %v516, 0
    %v3126 = vsel %vm585, %v517, 0
    %3128 = vmatprep.subr.bf16.mxu0 0
    %3129 = vmatpush1.bf16.xpose.msra.mxu0 %v3117
    %3130 = vmatprep.subr.bf16.mxu0 0
    %3131 = vmatpush1.bf16.xpose.msra.mxu0 %v3120
    %3132 = vmatprep.subr.bf16.mxu0 0
    %3133 = vmatpush1.bf16.xpose.msra.mxu0 %v3123
    %3134 = vmatprep.subr.bf16.mxu0 0
    %3135 = vmatpush1.bf16.xpose.msra.mxu0 %v3126
    %3136 = vmatprep.subr.bf16.mxu0 0
    %3137 = vmatpush1.bf16.xpose.msra.mxu0 0
    %3138 = vmatprep.subr.bf16.mxu0 0
    %3139 = vmatpush1.bf16.xpose.msra.mxu0 0
    %3140 = vmatprep.subr.bf16.mxu0 0
    %3141 = vmatpush1.bf16.xpose.msra.mxu0 0
    %3142 = vmatprep.subr.bf16.mxu0 0
    %3143 = vmatpush1.bf16.xpose.msra.mxu0 0
    %3144 = vmatprep.subr.bf16.mxu0 0
    %3145 = vmatpush1.bf16.xpose.msra.mxu0 0
    %3146 = vmatprep.subr.bf16.mxu0 0
    %3147 = vmatpush1.bf16.xpose.msra.mxu0 0
    %3148 = vmatprep.subr.bf16.mxu0 0
    %3149 = vmatpush1.bf16.xpose.msra.mxu0 0
    %3150 = vmatprep.subr.bf16.mxu0 0
    %3151 = vmatpush1.bf16.xpose.msra.mxu0 0
    %3152 = vmatprep.subr.bf16.mxu0 0
    %3153 = vmatpush1.bf16.xpose.msra.mxu0 0
    %3154 = vmatprep.subr.bf16.mxu0 0
    %3155 = vmatpush1.bf16.xpose.msra.mxu0 0
    %3156 = vmatprep.subr.bf16.mxu0 0
    %3157 = vmatpush1.bf16.xpose.msra.mxu0 0
    %3158 = vmatprep.subr.bf16.mxu0 0
    %3159 = vmatpush1.bf16.xpose.msra.mxu0 0
    %3160 = vmatprep.mubr.bf16.mxu0 0
    %3161 = vmatmul.mubr.bf16.gmra.mrb[0].mxu0 %v3093
    %v3162 = vpop.f32.mrb[0].mxu0
    %v3163 = vadd.f32 %v2990, %v3162
    %v3164 = vpop.f32.mrb[0].mxu0
    %v3165 = vpop.f32.mrb[0].mxu0
    %v3166 = vadd.f32 %v2993, %v3165
    %v3167 = vpop.f32.mrb[0].mxu0
    %3168 = vmatprep.mubr.bf16.mxu0 0
    %3169 = vmatmul.mubr.bf16.gmra.mrb[0].mxu0 %v3096
    %v3170 = vpop.f32.mrb[0].mxu0
    %v3171 = vadd.f32 %v2998, %v3170
    %v3172 = vpop.f32.mrb[0].mxu0
    %v3173 = vpop.f32.mrb[0].mxu0
    %v3174 = vadd.f32 %v3001, %v3173
    %v3175 = vpop.f32.mrb[0].mxu0
    %3176 = vmatprep.mubr.bf16.mxu0 0
    %3177 = vmatmul.mubr.bf16.gmra.mrb[0].mxu0 %v3099
    %v3178 = vpop.f32.mrb[0].mxu0
    %v3179 = vadd.f32 %v3006, %v3178
    %v3180 = vpop.f32.mrb[0].mxu0
    %v3181 = vpop.f32.mrb[0].mxu0
    %v3182 = vadd.f32 %v3009, %v3181
    %v3183 = vpop.f32.mrb[0].mxu0
    %3184 = vmatprep.mubr.bf16.mxu0 0
    %3185 = vmatmul.mubr.bf16.gmra.mrb[0].mxu0 %v3102
    %v3186 = vpop.f32.mrb[0].mxu0
    %v3187 = vadd.f32 %v3014, %v3186
    %v3188 = vpop.f32.mrb[0].mxu0
    %v3189 = vpop.f32.mrb[0].mxu0
    %v3190 = vadd.f32 %v3017, %v3189
    %v3191 = vpop.f32.mrb[0].mxu0
    %3192 = vmatprep.mubr.bf16.mxu0 0
    %3193 = vmatmul.mubr.bf16.gmra.mrb[0].mxu0 %v3105
    %v3194 = vpop.f32.mrb[0].mxu0
    %v3195 = vadd.f32 %v3022, %v3194
    %v3196 = vpop.f32.mrb[0].mxu0
    %v3197 = vpop.f32.mrb[0].mxu0
    %v3198 = vadd.f32 %v3025, %v3197
    %v3199 = vpop.f32.mrb[0].mxu0
    %3200 = vmatprep.mubr.bf16.mxu0 0
    %3201 = vmatmul.mubr.bf16.gmra.mrb[0].mxu0 %v3108
    %v3202 = vpop.f32.mrb[0].mxu0
    %v3203 = vadd.f32 %v3030, %v3202
    %v3204 = vpop.f32.mrb[0].mxu0
    %v3205 = vpop.f32.mrb[0].mxu0
    %v3206 = vadd.f32 %v3033, %v3205
    %v3207 = vpop.f32.mrb[0].mxu0
    %3208 = vmatprep.mubr.bf16.mxu0 0
    %3209 = vmatmul.mubr.bf16.gmra.mrb[0].mxu0 %v3111
    %v3210 = vpop.f32.mrb[0].mxu0
    %v3211 = vadd.f32 %v3038, %v3210
    %v3212 = vpop.f32.mrb[0].mxu0
    %v3213 = vpop.f32.mrb[0].mxu0
    %v3214 = vadd.f32 %v3041, %v3213
    %v3215 = vpop.f32.mrb[0].mxu0
    %3216 = vmatprep.mubr.bf16.mxu0 0
    %3217 = vmatmul.mubr.bf16.gmra.mrb[0].mxu0 %v3114
    %v3218 = vpop.f32.mrb[0].mxu0
    %v3219 = vadd.f32 %v3046, %v3218
    %v3220 = vpop.f32.mrb[0].mxu0
    %v3221 = vpop.f32.mrb[0].mxu0
    %v3222 = vadd.f32 %v3049, %v3221
    %v3223 = vpop.f32.mrb[0].mxu0
    %3224 = vdwg.mxu0
    %3226 = vset.pattern.permute.xlu0 0
    %3227 = vperm.xlu0 %3226, %v2851
    %v3228 = vpop.permute.xlu0 %3227
    %3231 = vset.pattern.permute.xlu0 0
    %3232 = vperm.xlu0 %3231, %v2852
    %v3233 = vpop.permute.xlu0 %3232
    %3236 = vset.pattern.permute.xlu0 0
    %3237 = vperm.xlu0 %3236, %v2853
    %v3238 = vpop.permute.xlu0 %3237
    %3241 = vset.pattern.permute.xlu0 0
    %3242 = vperm.xlu0 %3241, %v2854
    %v3243 = vpop.permute.xlu0 %3242
    %3246 = vset.pattern.permute.xlu0 0
    %3247 = vperm.xlu0 %3246, %v2855
    %v3248 = vpop.permute.xlu0 %3247
    %3251 = vset.pattern.permute.xlu0 0
    %3252 = vperm.xlu0 %3251, %v2856
    %v3253 = vpop.permute.xlu0 %3252
    %3256 = vset.pattern.permute.xlu0 0
    %3257 = vperm.xlu0 %3256, %v2857
    %v3258 = vpop.permute.xlu0 %3257
    %3261 = vset.pattern.permute.xlu0 0
    %3262 = vperm.xlu0 %3261, %v2858
    %v3263 = vpop.permute.xlu0 %3262
    %3266 = vset.pattern.permute.xlu0 0
    %3267 = vperm.xlu0 %3266, %v2859
    %v3268 = vpop.permute.xlu0 %3267
    %3271 = vset.pattern.permute.xlu0 0
    %3272 = vperm.xlu0 %3271, %v2860
    %v3273 = vpop.permute.xlu0 %3272
    %3276 = vset.pattern.permute.xlu0 0
    %3277 = vperm.xlu0 %3276, %v2861
    %v3278 = vpop.permute.xlu0 %3277
    %3281 = vset.pattern.permute.xlu0 0
    %3282 = vperm.xlu0 %3281, %v2862
    %v3283 = vpop.permute.xlu0 %3282
    %3286 = vset.pattern.permute.xlu0 0
    %3287 = vperm.xlu0 %3286, %v2863
    %v3288 = vpop.permute.xlu0 %3287
    %3291 = vset.pattern.permute.xlu0 0
    %3292 = vperm.xlu0 %3291, %v2864
    %v3293 = vpop.permute.xlu0 %3292
    %3296 = vset.pattern.permute.xlu0 0
    %3297 = vperm.xlu0 %3296, %v2865
    %v3298 = vpop.permute.xlu0 %3297
    %3301 = vset.pattern.permute.xlu0 0
    %3302 = vperm.xlu0 %3301, %v2866
    %v3303 = vpop.permute.xlu0 %3302
    %v3305 = vadd.f32 %v3163, %v3228
    %v3306 = vadd.f32 %v3166, %v3233
    %v3307 = vadd.f32 %v3171, %v3238
    %v3308 = vadd.f32 %v3174, %v3243
    %v3309 = vadd.f32 %v3179, %v3248
    %v3310 = vadd.f32 %v3182, %v3253
    %v3311 = vadd.f32 %v3187, %v3258
    %v3312 = vadd.f32 %v3190, %v3263
    %v3313 = vadd.f32 %v3195, %v3268
    %v3314 = vadd.f32 %v3198, %v3273
    %v3315 = vadd.f32 %v3203, %v3278
    %v3316 = vadd.f32 %v3206, %v3283
    %v3317 = vadd.f32 %v3211, %v3288
    %v3318 = vadd.f32 %v3214, %v3293
    %v3319 = vadd.f32 %v3219, %v3298
    %v3320 = vadd.f32 %v3222, %v3303
    %v3321 = vxor.u32 %v3305, 2147483648
    %v3322 = vxor.u32 %v3306, 2147483648
    %v3323 = vxor.u32 %v3307, 2147483648
    %v3324 = vxor.u32 %v3308, 2147483648
    %v3325 = vxor.u32 %v3309, 2147483648
    %v3326 = vxor.u32 %v3310, 2147483648
    %v3327 = vxor.u32 %v3311, 2147483648
    %v3328 = vxor.u32 %v3312, 2147483648
    %v3329 = vxor.u32 %v3313, 2147483648
    %v3330 = vxor.u32 %v3314, 2147483648
    %v3331 = vxor.u32 %v3315, 2147483648
    %v3332 = vxor.u32 %v3316, 2147483648
    %v3333 = vxor.u32 %v3317, 2147483648
    %v3334 = vxor.u32 %v3318, 2147483648
    %v3335 = vxor.u32 %v3319, 2147483648
    %v3336 = vxor.u32 %v3320, 2147483648
    %v3337 = vmul.f32 %v3321, 1.442695
    %v3338 = vpow.pop %v3337
    %v3339 = vmul.f32 %v3322, 1.442695
    %v3340 = vpow.pop %v3339
    %v3341 = vmul.f32 %v3323, 1.442695
    %v3342 = vpow.pop %v3341
    %v3343 = vmul.f32 %v3324, 1.442695
    %v3344 = vpow.pop %v3343
    %v3345 = vmul.f32 %v3325, 1.442695
    %v3346 = vpow.pop %v3345
    %v3347 = vmul.f32 %v3326, 1.442695
    %v3348 = vpow.pop %v3347
    %v3349 = vmul.f32 %v3327, 1.442695
    %v3350 = vpow.pop %v3349
    %v3351 = vmul.f32 %v3328, 1.442695
    %v3352 = vpow.pop %v3351
    %v3353 = vmul.f32 %v3329, 1.442695
    %v3354 = vpow.pop %v3353
    %v3355 = vmul.f32 %v3330, 1.442695
    %v3356 = vpow.pop %v3355
    %v3357 = vmul.f32 %v3331, 1.442695
    %v3358 = vpow.pop %v3357
    %v3359 = vmul.f32 %v3332, 1.442695
    %v3360 = vpow.pop %v3359
    %v3361 = vmul.f32 %v3333, 1.442695
    %v3362 = vpow.pop %v3361
    %v3363 = vmul.f32 %v3334, 1.442695
    %v3364 = vpow.pop %v3363
    %v3365 = vmul.f32 %v3335, 1.442695
    %v3366 = vpow.pop %v3365
    %v3367 = vmul.f32 %v3336, 1.442695
    %v3368 = vpow.pop %v3367
    %v3369 = vadd.f32 %v3338, 1.0
    %v3370 = vadd.f32 %v3340, 1.0
    %v3371 = vadd.f32 %v3342, 1.0
    %v3372 = vadd.f32 %v3344, 1.0
    %v3373 = vadd.f32 %v3346, 1.0
    %v3374 = vadd.f32 %v3348, 1.0
    %v3375 = vadd.f32 %v3350, 1.0
    %v3376 = vadd.f32 %v3352, 1.0
    %v3377 = vadd.f32 %v3354, 1.0
    %v3378 = vadd.f32 %v3356, 1.0
    %v3379 = vadd.f32 %v3358, 1.0
    %v3380 = vadd.f32 %v3360, 1.0
    %v3381 = vadd.f32 %v3362, 1.0
    %v3382 = vadd.f32 %v3364, 1.0
    %v3383 = vadd.f32 %v3366, 1.0
    %v3384 = vadd.f32 %v3368, 1.0
    %v3385 = vrcp.pop %v3369
    %v3386 = vmul.f32 1.0, %v3385
    %v3387 = vrcp.pop %v3370
    %v3388 = vmul.f32 1.0, %v3387
    %v3389 = vrcp.pop %v3371
    %v3390 = vmul.f32 1.0, %v3389
    %v3391 = vrcp.pop %v3372
    %v3392 = vmul.f32 1.0, %v3391
    %v3393 = vrcp.pop %v3373
    %v3394 = vmul.f32 1.0, %v3393
    %v3395 = vrcp.pop %v3374
    %v3396 = vmul.f32 1.0, %v3395
    %v3397 = vrcp.pop %v3375
    %v3398 = vmul.f32 1.0, %v3397
    %v3399 = vrcp.pop %v3376
    %v3400 = vmul.f32 1.0, %v3399
    %v3401 = vrcp.pop %v3377
    %v3402 = vmul.f32 1.0, %v3401
    %v3403 = vrcp.pop %v3378
    %v3404 = vmul.f32 1.0, %v3403
    %v3405 = vrcp.pop %v3379
    %v3406 = vmul.f32 1.0, %v3405
    %v3407 = vrcp.pop %v3380
    %v3408 = vmul.f32 1.0, %v3407
    %v3409 = vrcp.pop %v3381
    %v3410 = vmul.f32 1.0, %v3409
    %v3411 = vrcp.pop %v3382
    %v3412 = vmul.f32 1.0, %v3411
    %v3413 = vrcp.pop %v3383
    %v3414 = vmul.f32 1.0, %v3413
    %v3415 = vrcp.pop %v3384
    %v3416 = vmul.f32 1.0, %v3415
    %v3417 = vmul.f32 %v3305, %v3386
    %v3418 = vmul.f32 %v3306, %v3388
    %v3419 = vmul.f32 %v3307, %v3390
    %v3420 = vmul.f32 %v3308, %v3392
    %v3421 = vmul.f32 %v3309, %v3394
    %v3422 = vmul.f32 %v3310, %v3396
    %v3423 = vmul.f32 %v3311, %v3398
    %v3424 = vmul.f32 %v3312, %v3400
    %v3425 = vmul.f32 %v3313, %v3402
    %v3426 = vmul.f32 %v3314, %v3404
    %v3427 = vmul.f32 %v3315, %v3406
    %v3428 = vmul.f32 %v3316, %v3408
    %v3429 = vmul.f32 %v3317, %v3410
    %v3430 = vmul.f32 %v3318, %v3412
    %v3431 = vmul.f32 %v3319, %v3414
    %v3432 = vmul.f32 %v3320, %v3416
    %3433 = vst.msk [vmem:[%s16] sm:$0xff] %vm585, %v3417
    %3434 = vst.msk [vmem:[%s16 + $0x8] sm:$0xff] %vm585, %v3418
    %3435 = vst.msk [vmem:[%s16 + $0x10] sm:$0xff] %vm585, %v3419
    %3436 = vst.msk [vmem:[%s16 + $0x18] sm:$0xff] %vm585, %v3420
    %3437 = vst.msk [vmem:[%s16 + $0x20] sm:$0xff] %vm585, %v3421
    %3438 = vst.msk [vmem:[%s16 + $0x28] sm:$0xff] %vm585, %v3422
    %3439 = vst.msk [vmem:[%s16 + $0x30] sm:$0xff] %vm585, %v3423
    %3440 = vst.msk [vmem:[%s16 + $0x38] sm:$0xff] %vm585, %v3424
    %3441 = vst.msk [vmem:[%s16 + $0x40] sm:$0xff] %vm585, %v3425
    %3442 = vst.msk [vmem:[%s16 + $0x48] sm:$0xff] %vm585, %v3426
    %3443 = vst.msk [vmem:[%s16 + $0x50] sm:$0xff] %vm585, %v3427
    %3444 = vst.msk [vmem:[%s16 + $0x58] sm:$0xff] %vm585, %v3428
    %3445 = vst.msk [vmem:[%s16 + $0x60] sm:$0xff] %vm585, %v3429
    %3446 = vst.msk [vmem:[%s16 + $0x68] sm:$0xff] %vm585, %v3430
    %3447 = vst.msk [vmem:[%s16 + $0x70] sm:$0xff] %vm585, %v3431
    %3448 = vst.msk [vmem:[%s16 + $0x78] sm:$0xff] %vm585, %v3432
    %3453 = vrot.lane.b32.xlu0 %v2815, 64
    %v3454 = vpop.permute.xlu0 %3453
    %3455 = vrot.lane.b32.xlu0 %v2816, 64
    %v3456 = vpop.permute.xlu0 %3455
    %3457 = vrot.lane.b32.xlu0 %v2817, 64
    %v3458 = vpop.permute.xlu0 %3457
    %3459 = vrot.lane.b32.xlu0 %v2818, 64
    %v3460 = vpop.permute.xlu0 %3459
    %v3462 = vsel %vm585, %v3454, 0
    %v3465 = vsel %vm585, %v3456, 0
    %v3468 = vsel %vm585, %v3458, 0
    %v3471 = vsel %vm585, %v3460, 0
    %3473 = vmatprep.subr.bf16.mxu0 0
    %3474 = vmatpush1.bf16.xpose.msra.mxu0 %v3462
    %3475 = vmatprep.subr.bf16.mxu0 0
    %3476 = vmatpush1.bf16.xpose.msra.mxu0 %v3465
    %3477 = vmatprep.subr.bf16.mxu0 0
    %3478 = vmatpush1.bf16.xpose.msra.mxu0 %v3468
    %3479 = vmatprep.subr.bf16.mxu0 0
    %3480 = vmatpush1.bf16.xpose.msra.mxu0 %v3471
    %3481 = vmatprep.subr.bf16.mxu0 0
    %3482 = vmatpush1.bf16.xpose.msra.mxu0 0
    %3483 = vmatprep.subr.bf16.mxu0 0
    %3484 = vmatpush1.bf16.xpose.msra.mxu0 0
    %3485 = vmatprep.subr.bf16.mxu0 0
    %3486 = vmatpush1.bf16.xpose.msra.mxu0 0
    %3487 = vmatprep.subr.bf16.mxu0 0
    %3488 = vmatpush1.bf16.xpose.msra.mxu0 0
    %3489 = vmatprep.subr.bf16.mxu0 0
    %3490 = vmatpush1.bf16.xpose.msra.mxu0 0
    %3491 = vmatprep.subr.bf16.mxu0 0
    %3492 = vmatpush1.bf16.xpose.msra.mxu0 0
    %3493 = vmatprep.subr.bf16.mxu0 0
    %3494 = vmatpush1.bf16.xpose.msra.mxu0 0
    %3495 = vmatprep.subr.bf16.mxu0 0
    %3496 = vmatpush1.bf16.xpose.msra.mxu0 0
    %3497 = vmatprep.subr.bf16.mxu0 0
    %3498 = vmatpush1.bf16.xpose.msra.mxu0 0
    %3499 = vmatprep.subr.bf16.mxu0 0
    %3500 = vmatpush1.bf16.xpose.msra.mxu0 0
    %3501 = vmatprep.subr.bf16.mxu0 0
    %3502 = vmatpush1.bf16.xpose.msra.mxu0 0
    %3503 = vmatprep.subr.bf16.mxu0 0
    %3504 = vmatpush1.bf16.xpose.msra.mxu0 0
    %3505 = vmatprep.mubr.bf16.mxu0 0
    %3506 = vmatmul.mubr.bf16.gmra.mrb[0].mxu0 %v2920
    %v3507 = vpop.f32.mrb[0].mxu0
    %v3508 = vadd.f32 0.0, %v3507
    %v3509 = vpop.f32.mrb[0].mxu0
    %v3510 = vpop.f32.mrb[0].mxu0
    %v3511 = vadd.f32 0.0, %v3510
    %v3512 = vpop.f32.mrb[0].mxu0
    %3513 = vmatprep.mubr.bf16.mxu0 0
    %3514 = vmatmul.mubr.bf16.gmra.mrb[0].mxu0 %v2923
    %v3515 = vpop.f32.mrb[0].mxu0
    %v3516 = vadd.f32 0.0, %v3515
    %v3517 = vpop.f32.mrb[0].mxu0
    %v3518 = vpop.f32.mrb[0].mxu0
    %v3519 = vadd.f32 0.0, %v3518
    %v3520 = vpop.f32.mrb[0].mxu0
    %3521 = vmatprep.mubr.bf16.mxu0 0
    %3522 = vmatmul.mubr.bf16.gmra.mrb[0].mxu0 %v2926
    %v3523 = vpop.f32.mrb[0].mxu0
    %v3524 = vadd.f32 0.0, %v3523
    %v3525 = vpop.f32.mrb[0].mxu0
    %v3526 = vpop.f32.mrb[0].mxu0
    %v3527 = vadd.f32 0.0, %v3526
    %v3528 = vpop.f32.mrb[0].mxu0
    %3529 = vmatprep.mubr.bf16.mxu0 0
    %3530 = vmatmul.mubr.bf16.gmra.mrb[0].mxu0 %v2929
    %v3531 = vpop.f32.mrb[0].mxu0
    %v3532 = vadd.f32 0.0, %v3531
    %v3533 = vpop.f32.mrb[0].mxu0
    %v3534 = vpop.f32.mrb[0].mxu0
    %v3535 = vadd.f32 0.0, %v3534
    %v3536 = vpop.f32.mrb[0].mxu0
    %3537 = vmatprep.mubr.bf16.mxu0 0
    %3538 = vmatmul.mubr.bf16.gmra.mrb[0].mxu0 %v2932
    %v3539 = vpop.f32.mrb[0].mxu0
    %v3540 = vadd.f32 0.0, %v3539
    %v3541 = vpop.f32.mrb[0].mxu0
    %v3542 = vpop.f32.mrb[0].mxu0
    %v3543 = vadd.f32 0.0, %v3542
    %v3544 = vpop.f32.mrb[0].mxu0
    %3545 = vmatprep.mubr.bf16.mxu0 0
    %3546 = vmatmul.mubr.bf16.gmra.mrb[0].mxu0 %v2935
    %v3547 = vpop.f32.mrb[0].mxu0
    %v3548 = vadd.f32 0.0, %v3547
    %v3549 = vpop.f32.mrb[0].mxu0
    %v3550 = vpop.f32.mrb[0].mxu0
    %v3551 = vadd.f32 0.0, %v3550
    %v3552 = vpop.f32.mrb[0].mxu0
    %3553 = vmatprep.mubr.bf16.mxu0 0
    %3554 = vmatmul.mubr.bf16.gmra.mrb[0].mxu0 %v2938
    %v3555 = vpop.f32.mrb[0].mxu0
    %v3556 = vadd.f32 0.0, %v3555
    %v3557 = vpop.f32.mrb[0].mxu0
    %v3558 = vpop.f32.mrb[0].mxu0
    %v3559 = vadd.f32 0.0, %v3558
    %v3560 = vpop.f32.mrb[0].mxu0
    %3561 = vmatprep.mubr.bf16.mxu0 0
    %3562 = vmatmul.mubr.bf16.gmra.mrb[0].mxu0 %v2941
    %v3563 = vpop.f32.mrb[0].mxu0
    %v3564 = vadd.f32 0.0, %v3563
    %v3565 = vpop.f32.mrb[0].mxu0
    %v3566 = vpop.f32.mrb[0].mxu0
    %v3567 = vadd.f32 0.0, %v3566
    %v3568 = vpop.f32.mrb[0].mxu0
    %3569 = vdwg.mxu0
    %v3571 = vsel %vm585, %v518, 0
    %v3574 = vsel %vm585, %v519, 0
    %v3577 = vsel %vm585, %v520, 0
    %v3580 = vsel %vm585, %v521, 0
    %3582 = vmatprep.subr.bf16.mxu0 0
    %3583 = vmatpush1.bf16.xpose.msra.mxu0 %v3571
    %3584 = vmatprep.subr.bf16.mxu0 0
    %3585 = vmatpush1.bf16.xpose.msra.mxu0 %v3574
    %3586 = vmatprep.subr.bf16.mxu0 0
    %3587 = vmatpush1.bf16.xpose.msra.mxu0 %v3577
    %3588 = vmatprep.subr.bf16.mxu0 0
    %3589 = vmatpush1.bf16.xpose.msra.mxu0 %v3580
    %3590 = vmatprep.subr.bf16.mxu0 0
    %3591 = vmatpush1.bf16.xpose.msra.mxu0 0
    %3592 = vmatprep.subr.bf16.mxu0 0
    %3593 = vmatpush1.bf16.xpose.msra.mxu0 0
    %3594 = vmatprep.subr.bf16.mxu0 0
    %3595 = vmatpush1.bf16.xpose.msra.mxu0 0
    %3596 = vmatprep.subr.bf16.mxu0 0
    %3597 = vmatpush1.bf16.xpose.msra.mxu0 0
    %3598 = vmatprep.subr.bf16.mxu0 0
    %3599 = vmatpush1.bf16.xpose.msra.mxu0 0
    %3600 = vmatprep.subr.bf16.mxu0 0
    %3601 = vmatpush1.bf16.xpose.msra.mxu0 0
    %3602 = vmatprep.subr.bf16.mxu0 0
    %3603 = vmatpush1.bf16.xpose.msra.mxu0 0
    %3604 = vmatprep.subr.bf16.mxu0 0
    %3605 = vmatpush1.bf16.xpose.msra.mxu0 0
    %3606 = vmatprep.subr.bf16.mxu0 0
    %3607 = vmatpush1.bf16.xpose.msra.mxu0 0
    %3608 = vmatprep.subr.bf16.mxu0 0
    %3609 = vmatpush1.bf16.xpose.msra.mxu0 0
    %3610 = vmatprep.subr.bf16.mxu0 0
    %3611 = vmatpush1.bf16.xpose.msra.mxu0 0
    %3612 = vmatprep.subr.bf16.mxu0 0
    %3613 = vmatpush1.bf16.xpose.msra.mxu0 0
    %3614 = vmatprep.mubr.bf16.mxu0 0
    %3615 = vmatmul.mubr.bf16.gmra.mrb[0].mxu0 %v3093
    %v3616 = vpop.f32.mrb[0].mxu0
    %v3617 = vadd.f32 %v3508, %v3616
    %v3618 = vpop.f32.mrb[0].mxu0
    %v3619 = vpop.f32.mrb[0].mxu0
    %v3620 = vadd.f32 %v3511, %v3619
    %v3621 = vpop.f32.mrb[0].mxu0
    %3622 = vmatprep.mubr.bf16.mxu0 0
    %3623 = vmatmul.mubr.bf16.gmra.mrb[0].mxu0 %v3096
    %v3624 = vpop.f32.mrb[0].mxu0
    %v3625 = vadd.f32 %v3516, %v3624
    %v3626 = vpop.f32.mrb[0].mxu0
    %v3627 = vpop.f32.mrb[0].mxu0
    %v3628 = vadd.f32 %v3519, %v3627
    %v3629 = vpop.f32.mrb[0].mxu0
    %3630 = vmatprep.mubr.bf16.mxu0 0
    %3631 = vmatmul.mubr.bf16.gmra.mrb[0].mxu0 %v3099
    %v3632 = vpop.f32.mrb[0].mxu0
    %v3633 = vadd.f32 %v3524, %v3632
    %v3634 = vpop.f32.mrb[0].mxu0
    %v3635 = vpop.f32.mrb[0].mxu0
    %v3636 = vadd.f32 %v3527, %v3635
    %v3637 = vpop.f32.mrb[0].mxu0
    %3638 = vmatprep.mubr.bf16.mxu0 0
    %3639 = vmatmul.mubr.bf16.gmra.mrb[0].mxu0 %v3102
    %v3640 = vpop.f32.mrb[0].mxu0
    %v3641 = vadd.f32 %v3532, %v3640
    %v3642 = vpop.f32.mrb[0].mxu0
    %v3643 = vpop.f32.mrb[0].mxu0
    %v3644 = vadd.f32 %v3535, %v3643
    %v3645 = vpop.f32.mrb[0].mxu0
    %3646 = vmatprep.mubr.bf16.mxu0 0
    %3647 = vmatmul.mubr.bf16.gmra.mrb[0].mxu0 %v3105
    %v3648 = vpop.f32.mrb[0].mxu0
    %v3649 = vadd.f32 %v3540, %v3648
    %v3650 = vpop.f32.mrb[0].mxu0
    %v3651 = vpop.f32.mrb[0].mxu0
    %v3652 = vadd.f32 %v3543, %v3651
    %v3653 = vpop.f32.mrb[0].mxu0
    %3654 = vmatprep.mubr.bf16.mxu0 0
    %3655 = vmatmul.mubr.bf16.gmra.mrb[0].mxu0 %v3108
    %v3656 = vpop.f32.mrb[0].mxu0
    %v3657 = vadd.f32 %v3548, %v3656
    %v3658 = vpop.f32.mrb[0].mxu0
    %v3659 = vpop.f32.mrb[0].mxu0
    %v3660 = vadd.f32 %v3551, %v3659
    %v3661 = vpop.f32.mrb[0].mxu0
    %3662 = vmatprep.mubr.bf16.mxu0 0
    %3663 = vmatmul.mubr.bf16.gmra.mrb[0].mxu0 %v3111
    %v3664 = vpop.f32.mrb[0].mxu0
    %v3665 = vadd.f32 %v3556, %v3664
    %v3666 = vpop.f32.mrb[0].mxu0
    %v3667 = vpop.f32.mrb[0].mxu0
    %v3668 = vadd.f32 %v3559, %v3667
    %v3669 = vpop.f32.mrb[0].mxu0
    %3670 = vmatprep.mubr.bf16.mxu0 0
    %3671 = vmatmul.mubr.bf16.gmra.mrb[0].mxu0 %v3114
    %v3672 = vpop.f32.mrb[0].mxu0
    %v3673 = vadd.f32 %v3564, %v3672
    %v3674 = vpop.f32.mrb[0].mxu0
    %v3675 = vpop.f32.mrb[0].mxu0
    %v3676 = vadd.f32 %v3567, %v3675
    %v3677 = vpop.f32.mrb[0].mxu0
    %3678 = vdwg.mxu0
    %v3679 = vadd.f32 %v3617, %v3228
    %v3680 = vadd.f32 %v3620, %v3233
    %v3681 = vadd.f32 %v3625, %v3238
    %v3682 = vadd.f32 %v3628, %v3243
    %v3683 = vadd.f32 %v3633, %v3248
    %v3684 = vadd.f32 %v3636, %v3253
    %v3685 = vadd.f32 %v3641, %v3258
    %v3686 = vadd.f32 %v3644, %v3263
    %v3687 = vadd.f32 %v3649, %v3268
    %v3688 = vadd.f32 %v3652, %v3273
    %v3689 = vadd.f32 %v3657, %v3278
    %v3690 = vadd.f32 %v3660, %v3283
    %v3691 = vadd.f32 %v3665, %v3288
    %v3692 = vadd.f32 %v3668, %v3293
    %v3693 = vadd.f32 %v3673, %v3298
    %v3694 = vadd.f32 %v3676, %v3303
    %v3695 = vxor.u32 %v3679, 2147483648
    %v3696 = vxor.u32 %v3680, 2147483648
    %v3697 = vxor.u32 %v3681, 2147483648
    %v3698 = vxor.u32 %v3682, 2147483648
    %v3699 = vxor.u32 %v3683, 2147483648
    %v3700 = vxor.u32 %v3684, 2147483648
    %v3701 = vxor.u32 %v3685, 2147483648
    %v3702 = vxor.u32 %v3686, 2147483648
    %v3703 = vxor.u32 %v3687, 2147483648
    %v3704 = vxor.u32 %v3688, 2147483648
    %v3705 = vxor.u32 %v3689, 2147483648
    %v3706 = vxor.u32 %v3690, 2147483648
    %v3707 = vxor.u32 %v3691, 2147483648
    %v3708 = vxor.u32 %v3692, 2147483648
    %v3709 = vxor.u32 %v3693, 2147483648
    %v3710 = vxor.u32 %v3694, 2147483648
    %v3711 = vmul.f32 %v3695, 1.442695
    %v3712 = vpow.pop %v3711
    %v3713 = vmul.f32 %v3696, 1.442695
    %v3714 = vpow.pop %v3713
    %v3715 = vmul.f32 %v3697, 1.442695
    %v3716 = vpow.pop %v3715
    %v3717 = vmul.f32 %v3698, 1.442695
    %v3718 = vpow.pop %v3717
    %v3719 = vmul.f32 %v3699, 1.442695
    %v3720 = vpow.pop %v3719
    %v3721 = vmul.f32 %v3700, 1.442695
    %v3722 = vpow.pop %v3721
    %v3723 = vmul.f32 %v3701, 1.442695
    %v3724 = vpow.pop %v3723
    %v3725 = vmul.f32 %v3702, 1.442695
    %v3726 = vpow.pop %v3725
    %v3727 = vmul.f32 %v3703, 1.442695
    %v3728 = vpow.pop %v3727
    %v3729 = vmul.f32 %v3704, 1.442695
    %v3730 = vpow.pop %v3729
    %v3731 = vmul.f32 %v3705, 1.442695
    %v3732 = vpow.pop %v3731
    %v3733 = vmul.f32 %v3706, 1.442695
    %v3734 = vpow.pop %v3733
    %v3735 = vmul.f32 %v3707, 1.442695
    %v3736 = vpow.pop %v3735
    %v3737 = vmul.f32 %v3708, 1.442695
    %v3738 = vpow.pop %v3737
    %v3739 = vmul.f32 %v3709, 1.442695
    %v3740 = vpow.pop %v3739
    %v3741 = vmul.f32 %v3710, 1.442695
    %v3742 = vpow.pop %v3741
    %v3743 = vadd.f32 %v3712, 1.0
    %v3744 = vadd.f32 %v3714, 1.0
    %v3745 = vadd.f32 %v3716, 1.0
    %v3746 = vadd.f32 %v3718, 1.0
    %v3747 = vadd.f32 %v3720, 1.0
    %v3748 = vadd.f32 %v3722, 1.0
    %v3749 = vadd.f32 %v3724, 1.0
    %v3750 = vadd.f32 %v3726, 1.0
    %v3751 = vadd.f32 %v3728, 1.0
    %v3752 = vadd.f32 %v3730, 1.0
    %v3753 = vadd.f32 %v3732, 1.0
    %v3754 = vadd.f32 %v3734, 1.0
    %v3755 = vadd.f32 %v3736, 1.0
    %v3756 = vadd.f32 %v3738, 1.0
    %v3757 = vadd.f32 %v3740, 1.0
    %v3758 = vadd.f32 %v3742, 1.0
    %v3759 = vrcp.pop %v3743
    %v3760 = vmul.f32 1.0, %v3759
    %v3761 = vrcp.pop %v3744
    %v3762 = vmul.f32 1.0, %v3761
    %v3763 = vrcp.pop %v3745
    %v3764 = vmul.f32 1.0, %v3763
    %v3765 = vrcp.pop %v3746
    %v3766 = vmul.f32 1.0, %v3765
    %v3767 = vrcp.pop %v3747
    %v3768 = vmul.f32 1.0, %v3767
    %v3769 = vrcp.pop %v3748
    %v3770 = vmul.f32 1.0, %v3769
    %v3771 = vrcp.pop %v3749
    %v3772 = vmul.f32 1.0, %v3771
    %v3773 = vrcp.pop %v3750
    %v3774 = vmul.f32 1.0, %v3773
    %v3775 = vrcp.pop %v3751
    %v3776 = vmul.f32 1.0, %v3775
    %v3777 = vrcp.pop %v3752
    %v3778 = vmul.f32 1.0, %v3777
    %v3779 = vrcp.pop %v3753
    %v3780 = vmul.f32 1.0, %v3779
    %v3781 = vrcp.pop %v3754
    %v3782 = vmul.f32 1.0, %v3781
    %v3783 = vrcp.pop %v3755
    %v3784 = vmul.f32 1.0, %v3783
    %v3785 = vrcp.pop %v3756
    %v3786 = vmul.f32 1.0, %v3785
    %v3787 = vrcp.pop %v3757
    %v3788 = vmul.f32 1.0, %v3787
    %v3789 = vrcp.pop %v3758
    %v3790 = vmul.f32 1.0, %v3789
    %v3791 = vmul.f32 %v3679, %v3760
    %v3792 = vmul.f32 %v3680, %v3762
    %v3793 = vmul.f32 %v3681, %v3764
    %v3794 = vmul.f32 %v3682, %v3766
    %v3795 = vmul.f32 %v3683, %v3768
    %v3796 = vmul.f32 %v3684, %v3770
    %v3797 = vmul.f32 %v3685, %v3772
    %v3798 = vmul.f32 %v3686, %v3774
    %v3799 = vmul.f32 %v3687, %v3776
    %v3800 = vmul.f32 %v3688, %v3778
    %v3801 = vmul.f32 %v3689, %v3780
    %v3802 = vmul.f32 %v3690, %v3782
    %v3803 = vmul.f32 %v3691, %v3784
    %v3804 = vmul.f32 %v3692, %v3786
    %v3805 = vmul.f32 %v3693, %v3788
    %v3806 = vmul.f32 %v3694, %v3790
    %s3807 = scalar_lea.vmem %s16, 128
    %3808 = vst.msk [vmem:[%s3807] sm:$0xff] %vm585, %v3791
    %3809 = vst.msk [vmem:[%s3807 + $0x8] sm:$0xff] %vm585, %v3792
    %3810 = vst.msk [vmem:[%s3807 + $0x10] sm:$0xff] %vm585, %v3793
    %3811 = vst.msk [vmem:[%s3807 + $0x18] sm:$0xff] %vm585, %v3794
    %3812 = vst.msk [vmem:[%s3807 + $0x20] sm:$0xff] %vm585, %v3795
    %3813 = vst.msk [vmem:[%s3807 + $0x28] sm:$0xff] %vm585, %v3796
    %3814 = vst.msk [vmem:[%s3807 + $0x30] sm:$0xff] %vm585, %v3797
    %3815 = vst.msk [vmem:[%s3807 + $0x38] sm:$0xff] %vm585, %v3798
    %3816 = vst.msk [vmem:[%s3807 + $0x40] sm:$0xff] %vm585, %v3799
    %3817 = vst.msk [vmem:[%s3807 + $0x48] sm:$0xff] %vm585, %v3800
    %3818 = vst.msk [vmem:[%s3807 + $0x50] sm:$0xff] %vm585, %v3801
    %3819 = vst.msk [vmem:[%s3807 + $0x58] sm:$0xff] %vm585, %v3802
    %3820 = vst.msk [vmem:[%s3807 + $0x60] sm:$0xff] %vm585, %v3803
    %3821 = vst.msk [vmem:[%s3807 + $0x68] sm:$0xff] %vm585, %v3804
    %3822 = vst.msk [vmem:[%s3807 + $0x70] sm:$0xff] %vm585, %v3805
    %3823 = vst.msk [vmem:[%s3807 + $0x78] sm:$0xff] %vm585, %v3806
    // Predicated region
    $region82: #{_lambda_.1} parent=1 // pred_check
      _
    $region83: #{_lambda_.1} parent=1 // pred_check_branch
      %3825 = sbr.rel (0) target = $region85
    $region84: #{_lambda_.1} parent=1 // pred_region
      _
    $region85: #{_lambda_.1} parent=1 // pred_fallthru
      _
    // Predicated region
    $region86: #{_lambda_.1} parent=1 // pred_check
      _
    $region87: #{_lambda_.1} parent=1 // pred_check_branch
      %3827 = sbr.rel (0) target = $region89
    $region88: #{_lambda_.1} parent=1 // pred_region
      _
    $region89: #{_lambda_.1} parent=1 // pred_fallthru
      _
    %3828 = vsyncpa [#allocation3], 1
    %3829 = vsyncpa [#allocation5], 1
    %3830 = vsyncpa [#allocation8], 1

</llo_original>
